<compile_context>
chip_gen: v7x
topology: tpu7x:2x2x1
jax: 0.10.0
libtpu: 0.0.40
codegen_flags: <defaults>
</compile_context>

<pallas_src>
import jax
import jax.numpy as jnp
from jax.experimental import pallas as pl
from jax.experimental.pallas import tpu as pltpu

HIDDEN = (1024, 512, 256)


def _round_up(n, m):
    return ((n + m - 1) // m) * m


def _pick_tile_b(batch, requested=512):
    """16-aligned batch tile (bf16 sublane packing); capped at `requested`;
    ensures >=2 grid tiles for B > 16 so the grid can shard across v7x's 2 TCs."""
    tile = min(requested, _round_up(batch, 16))
    if batch > 16:
        two_tile = max(16, _round_up(pl.cdiv(batch, 2), 16))
        tile = min(tile, two_tile)
    return max(16, _round_up(tile, 16))


def _mlp_kernel(x_ref,
                w1_ref, b1_ref,
                w2_ref, b2_ref,
                w3_ref, b3_ref,
                w4_ref, b4_ref,
                out_ref):
    # Layer 1: Linear (BN folded into W/b) -> ReLU.  Dropout = identity (eval).
    h = jnp.dot(x_ref[...], w1_ref[...], preferred_element_type=jnp.float32)
    h = jnp.maximum(h + b1_ref[...], 0.0)

    # Layer 2
    h = jnp.dot(h.astype(jnp.bfloat16), w2_ref[...], preferred_element_type=jnp.float32)
    h = jnp.maximum(h + b2_ref[...], 0.0)

    # Layer 3
    h = jnp.dot(h.astype(jnp.bfloat16), w3_ref[...], preferred_element_type=jnp.float32)
    h = jnp.maximum(h + b3_ref[...], 0.0)

    # Classifier head.  Output padded to 128 lanes -> unmasked lane-dense store;
    # stored in bf16 to halve HBM writeback (wrapper slices + upcasts).
    logits = jnp.dot(h.astype(jnp.bfloat16), w4_ref[...],
                     preferred_element_type=jnp.float32) + b4_ref[...]
    out_ref[...] = logits.astype(out_ref.dtype)


def _build_specs(tile_b, k_pad, n_pad, single_buffer_weights):
    if single_buffer_weights:
        def resident(shape):
            # Constant index_map + single buffer: weights stay VMEM-resident
            # across batch tiles without a wasted second pipeline buffer.
            return pl.BlockSpec(shape, lambda i: (0, 0),
                                pipeline_mode=pl.Buffered(1))
    else:
        def resident(shape):
            return pl.BlockSpec(shape, lambda i: (0, 0))

    in_specs = [
        pl.BlockSpec((tile_b, k_pad), lambda i: (i, 0)),   # activation tile
        resident((k_pad, HIDDEN[0])), resident((1, HIDDEN[0])),
        resident((HIDDEN[0], HIDDEN[1])), resident((1, HIDDEN[1])),
        resident((HIDDEN[1], HIDDEN[2])), resident((1, HIDDEN[2])),
        resident((HIDDEN[2], n_pad)), resident((1, n_pad)),
    ]
    out_spec = pl.BlockSpec((tile_b, n_pad), lambda i: (i, 0))
    return in_specs, out_spec


def emotion_classifier_forward(x, kparams, num_classes, tile_b=512):
    """x: (B, input_size) float32.  kparams: padded/bf16 kernel params."""
    B, in_size = x.shape
    k_pad = kparams["w1"].shape[0]
    n_pad = kparams["w4"].shape[1]

    tile_b = _pick_tile_b(B, tile_b)
    b_pad = _round_up(B, tile_b)

    # Pad batch + feature dims directly in bf16 (no f32 staging buffer);
    # zero rows/cols are inert through the matmuls.
    x_p = jnp.pad(x.astype(jnp.bfloat16),
                  ((0, b_pad - B), (0, k_pad - in_size)))

    flops = 2 * b_pad * (k_pad * HIDDEN[0] + HIDDEN[0] * HIDDEN[1]
                         + HIDDEN[1] * HIDDEN[2] + HIDDEN[2] * n_pad)
    weight_bytes = 2 * (k_pad * HIDDEN[0] + HIDDEN[0] * HIDDEN[1]
                        + HIDDEN[1] * HIDDEN[2] + HIDDEN[2] * n_pad)
    bias_bytes = 4 * (HIDDEN[0] + HIDDEN[1] + HIDDEN[2] + n_pad)
    io_bytes = 2 * b_pad * k_pad + 2 * b_pad * n_pad
    cost = pl.CostEstimate(flops=flops, transcendentals=0,
                           bytes_accessed=weight_bytes + bias_bytes + io_bytes)

    operands = (x_p,
                kparams["w1"], kparams["b1"],
                kparams["w2"], kparams["b2"],
                kparams["w3"], kparams["b3"],
                kparams["w4"], kparams["b4"])

    out = None
    last_err = None
    for single_buf in (True, False):   # fall back if Buffered(1) is unsupported
        try:
            in_specs, out_spec = _build_specs(tile_b, k_pad, n_pad, single_buf)
            out = pl.pallas_call(
                _mlp_kernel,
                out_shape=jax.ShapeDtypeStruct((b_pad, n_pad), jnp.bfloat16),
                grid=(b_pad // tile_b,),
                in_specs=in_specs,
                out_specs=out_spec,
                compiler_params=pltpu.CompilerParams(
                    dimension_semantics=("parallel",)),
                cost_estimate=cost,
            )(*operands)
            break
        except Exception as e:  # noqa: BLE001 - retry without single-buffering
            last_err = e
            out = None
    if out is None:
        raise last_err

    return out[:B, :num_classes].astype(jnp.float32)


def fold_batchnorm(w, b, gamma, beta, running_mean, running_var, eps=1e-5):
    """Fold eval-mode BatchNorm1d into the preceding Linear (W stored (in, out))."""
    scale = gamma / jnp.sqrt(running_var + eps)      # (1, out)
    shift = beta - running_mean * scale               # (1, out)
    return w * scale, b * scale + shift


def init_params(key, input_size, num_classes):
    """PyTorch-style Linear init + non-trivial eval-mode BatchNorm buffers."""
    dims = [input_size] + list(HIDDEN) + [num_classes]
    params = {}
    keys = jax.random.split(key, 20)
    ki = 0
    for i in range(4):
        fan_in, fan_out = dims[i], dims[i + 1]
        bound = 1.0 / (fan_in ** 0.5)
        params[f"w{i + 1}"] = jax.random.uniform(
            keys[ki], (fan_in, fan_out), minval=-bound, maxval=bound,
            dtype=jnp.float32); ki += 1
        params[f"b{i + 1}"] = jax.random.uniform(
            keys[ki], (1, fan_out), minval=-bound, maxval=bound,
            dtype=jnp.float32); ki += 1
        if i < 3:  # BatchNorm1d buffers (eval mode)
            params[f"bn{i + 1}"] = {
                "gamma": jax.random.uniform(keys[ki], (1, fan_out),
                                            minval=0.5, maxval=1.5), 
                "beta": 0.1 * jax.random.normal(keys[ki + 1], (1, fan_out)),
                "running_mean": 0.1 * jax.random.normal(keys[ki + 2], (1, fan_out)),
                "running_var": jax.random.uniform(keys[ki + 3], (1, fan_out),
                                                  minval=0.5, maxval=1.5),
            }
            ki += 4
    return params


def prepare_kernel_params(params, input_size, num_classes, eps=1e-5):
    """Fold BN into Linears, pad to lane-dense shapes (K -> 128k, N -> 128),
    cast weights to bf16 (biases stay f32 for the f32 epilogue)."""
    folded = {}
    for i in range(1, 5):
        w, b = params[f"w{i}"], params[f"b{i}"]
        if i <= 3:
            bn = params[f"bn{i}"]
            w, b = fold_batchnorm(w, b, bn["gamma"], bn["beta"],
                                  bn["running_mean"], bn["running_var"], eps)
        folded[f"w{i}"], folded[f"b{i}"] = w, b

    k_pad = _round_up(input_size, 128)
    n_pad = _round_up(num_classes, 128)
    w1 = jnp.zeros((k_pad, HIDDEN[0]), jnp.float32).at[:input_size, :].set(folded["w1"])
    w4 = jnp.zeros((HIDDEN[2], n_pad), jnp.float32).at[:, :num_classes].set(folded["w4"])
    b4 = jnp.zeros((1, n_pad), jnp.float32).at[:, :num_classes].set(folded["b4"])
    return {
        "w1": w1.astype(jnp.bfloat16), "b1": folded["b1"],
        "w2": folded["w2"].astype(jnp.bfloat16), "b2": folded["b2"],
        "w3": folded["w3"].astype(jnp.bfloat16), "b3": folded["b3"],
        "w4": w4.astype(jnp.bfloat16), "b4": b4,
    }


def _reference_forward(x, kparams, input_size, num_classes):
    """Pure-JAX reference mirroring the kernel numerics (bf16 operands, f32 acc,
    bf16 final store)."""
    k_pad = kparams["w1"].shape[0]
    h = jnp.pad(x.astype(jnp.bfloat16), ((0, 0), (0, k_pad - input_size)))
    for i in (1, 2, 3):
        h = jnp.dot(h, kparams[f"w{i}"], preferred_element_type=jnp.float32) + kparams[f"b{i}"]
        h = jnp.maximum(h, 0.0).astype(jnp.bfloat16)
    out = jnp.dot(h, kparams["w4"], preferred_element_type=jnp.float32) + kparams["b4"]
    out = out.astype(jnp.bfloat16).astype(jnp.float32)
    return out[:, :num_classes]


if __name__ == "__main__":
    key = jax.random.PRNGKey(0)
    k_x, k_p = jax.random.split(key)

    B = 8            # batch
    input_size = 64  # feature vector fed to the classifier
    num_classes = 7  # typical emotion-class count

    x = jax.random.normal(k_x, (B, input_size), dtype=jnp.float32)
    params = init_params(k_p, input_size, num_classes)
    kparams = prepare_kernel_params(params, input_size, num_classes)

    out = emotion_classifier_forward(x, kparams, num_classes)
    out = jax.block_until_ready(out)

    ref = _reference_forward(x, kparams, input_size, num_classes)
    assert out.shape == (B, num_classes)
    assert jnp.allclose(out, ref, atol=2e-2, rtol=2e-2), \
        float(jnp.max(jnp.abs(out - ref)))

    print("KERNEL_OK")
</pallas_src>

<mosaic_0001>
module attributes {stable_mosaic.version = 11 : i64} {
  func.func @_mlp_kernel(%arg0: i32, %arg1: memref<16x128xbf16, #tpu.memory_space<vmem>>, %arg2: memref<128x1024xbf16, #tpu.memory_space<vmem>>, %arg3: memref<1x1024xf32, #tpu.memory_space<vmem>>, %arg4: memref<1024x512xbf16, #tpu.memory_space<vmem>>, %arg5: memref<1x512xf32, #tpu.memory_space<vmem>>, %arg6: memref<512x256xbf16, #tpu.memory_space<vmem>>, %arg7: memref<1x256xf32, #tpu.memory_space<vmem>>, %arg8: memref<256x128xbf16, #tpu.memory_space<vmem>>, %arg9: memref<1x128xf32, #tpu.memory_space<vmem>>, %arg10: memref<16x128xbf16, #tpu.memory_space<vmem>>) attributes {dimension_semantics = [#tpu.dimension_semantics<parallel>], iteration_bounds = array<i64: 1>, scalar_prefetch = 0 : i64, scratch_operands = 0 : i64, tpu.core_type = #tpu.core_type<tc>, window_params = [{transform_indices = @transform_0, window_bounds = array<i64: 16, 128>}, {pipeline_mode = #tpu.pipeline_mode<synchronous>, transform_indices = @transform_1, window_bounds = array<i64: 128, 1024>}, {pipeline_mode = #tpu.pipeline_mode<synchronous>, transform_indices = @transform_2, window_bounds = array<i64: 1, 1024>}, {pipeline_mode = #tpu.pipeline_mode<synchronous>, transform_indices = @transform_3, window_bounds = array<i64: 1024, 512>}, {pipeline_mode = #tpu.pipeline_mode<synchronous>, transform_indices = @transform_4, window_bounds = array<i64: 1, 512>}, {pipeline_mode = #tpu.pipeline_mode<synchronous>, transform_indices = @transform_5, window_bounds = array<i64: 512, 256>}, {pipeline_mode = #tpu.pipeline_mode<synchronous>, transform_indices = @transform_6, window_bounds = array<i64: 1, 256>}, {pipeline_mode = #tpu.pipeline_mode<synchronous>, transform_indices = @transform_7, window_bounds = array<i64: 256, 128>}, {pipeline_mode = #tpu.pipeline_mode<synchronous>, transform_indices = @transform_8, window_bounds = array<i64: 1, 128>}, {transform_indices = @transform_9, window_bounds = array<i64: 16, 128>}]} {
    %c0 = arith.constant 0 : index
    %c0_0 = arith.constant 0 : index
    %0 = vector.load %arg1[%c0, %c0_0] : memref<16x128xbf16, #tpu.memory_space<vmem>>, vector<16x128xbf16>
    %c0_1 = arith.constant 0 : index
    %c0_2 = arith.constant 0 : index
    %1 = vector.load %arg2[%c0_1, %c0_2] : memref<128x1024xbf16, #tpu.memory_space<vmem>>, vector<128x1024xbf16>
    %cst = arith.constant dense<0.000000e+00> : vector<16x1024xf32>
    %2 = tpu.matmul %0, %1, %cst {dimension_numbers = #tpu.dot_dimension_numbers<[1], [0], [0], [1], [0, 0, 1, 1], [], []>} : vector<16x128xbf16>, vector<128x1024xbf16>, vector<16x1024xf32> -> vector<16x1024xf32>
    %c0_3 = arith.constant 0 : index
    %c0_4 = arith.constant 0 : index
    %3 = vector.load %arg3[%c0_3, %c0_4] : memref<1x1024xf32, #tpu.memory_space<vmem>>, vector<1x1024xf32>
    %4 = vector.broadcast %3 : vector<1x1024xf32> to vector<16x1024xf32>
    %5 = arith.addf %2, %4 : vector<16x1024xf32>
    %cst_5 = arith.constant 0.000000e+00 : f32
    %6 = vector.broadcast %cst_5 : f32 to vector<16x1024xf32>
    %7 = arith.maximumf %5, %6 : vector<16x1024xf32>
    %8 = arith.truncf %7 : vector<16x1024xf32> to vector<16x1024xbf16>
    %c0_6 = arith.constant 0 : index
    %c0_7 = arith.constant 0 : index
    %9 = vector.load %arg4[%c0_6, %c0_7] : memref<1024x512xbf16, #tpu.memory_space<vmem>>, vector<1024x512xbf16>
    %cst_8 = arith.constant dense<0.000000e+00> : vector<16x512xf32>
    %10 = tpu.matmul %8, %9, %cst_8 {dimension_numbers = #tpu.dot_dimension_numbers<[1], [0], [0], [1], [0, 0, 1, 1], [], []>} : vector<16x1024xbf16>, vector<1024x512xbf16>, vector<16x512xf32> -> vector<16x512xf32>
    %c0_9 = arith.constant 0 : index
    %c0_10 = arith.constant 0 : index
    %11 = vector.load %arg5[%c0_9, %c0_10] : memref<1x512xf32, #tpu.memory_space<vmem>>, vector<1x512xf32>
    %12 = vector.broadcast %11 : vector<1x512xf32> to vector<16x512xf32>
    %13 = arith.addf %10, %12 : vector<16x512xf32>
    %cst_11 = arith.constant 0.000000e+00 : f32
    %14 = vector.broadcast %cst_11 : f32 to vector<16x512xf32>
    %15 = arith.maximumf %13, %14 : vector<16x512xf32>
    %16 = arith.truncf %15 : vector<16x512xf32> to vector<16x512xbf16>
    %c0_12 = arith.constant 0 : index
    %c0_13 = arith.constant 0 : index
    %17 = vector.load %arg6[%c0_12, %c0_13] : memref<512x256xbf16, #tpu.memory_space<vmem>>, vector<512x256xbf16>
    %cst_14 = arith.constant dense<0.000000e+00> : vector<16x256xf32>
    %18 = tpu.matmul %16, %17, %cst_14 {dimension_numbers = #tpu.dot_dimension_numbers<[1], [0], [0], [1], [0, 0, 1, 1], [], []>} : vector<16x512xbf16>, vector<512x256xbf16>, vector<16x256xf32> -> vector<16x256xf32>
    %c0_15 = arith.constant 0 : index
    %c0_16 = arith.constant 0 : index
    %19 = vector.load %arg7[%c0_15, %c0_16] : memref<1x256xf32, #tpu.memory_space<vmem>>, vector<1x256xf32>
    %20 = vector.broadcast %19 : vector<1x256xf32> to vector<16x256xf32>
    %21 = arith.addf %18, %20 : vector<16x256xf32>
    %cst_17 = arith.constant 0.000000e+00 : f32
    %22 = vector.broadcast %cst_17 : f32 to vector<16x256xf32>
    %23 = arith.maximumf %21, %22 : vector<16x256xf32>
    %24 = arith.truncf %23 : vector<16x256xf32> to vector<16x256xbf16>
    %c0_18 = arith.constant 0 : index
    %c0_19 = arith.constant 0 : index
    %25 = vector.load %arg8[%c0_18, %c0_19] : memref<256x128xbf16, #tpu.memory_space<vmem>>, vector<256x128xbf16>
    %cst_20 = arith.constant dense<0.000000e+00> : vector<16x128xf32>
    %26 = tpu.matmul %24, %25, %cst_20 {dimension_numbers = #tpu.dot_dimension_numbers<[1], [0], [0], [1], [0, 0, 1, 1], [], []>} : vector<16x256xbf16>, vector<256x128xbf16>, vector<16x128xf32> -> vector<16x128xf32>
    %c0_21 = arith.constant 0 : index
    %c0_22 = arith.constant 0 : index
    %27 = vector.load %arg9[%c0_21, %c0_22] : memref<1x128xf32, #tpu.memory_space<vmem>>, vector<1x128xf32>
    %28 = vector.broadcast %27 : vector<1x128xf32> to vector<16x128xf32>
    %29 = arith.addf %26, %28 : vector<16x128xf32>
    %30 = arith.truncf %29 : vector<16x128xf32> to vector<16x128xbf16>
    %c0_23 = arith.constant 0 : index
    %c0_24 = arith.constant 0 : index
    %31 = vector.load %arg10[%c0_23, %c0_24] : memref<16x128xbf16, #tpu.memory_space<vmem>>, vector<16x128xbf16>
    tpu.vector_store %arg10[%c0_23, %c0_24], %30 {strides = array<i32>} : memref<16x128xbf16, #tpu.memory_space<vmem>>, vector<16x128xbf16>,
    return
  }
  func.func @transform_0(%arg0: i32) -> (i32, i32) {
    %c0_i32 = arith.constant 0 : i32
    %c0_i32_0 = arith.constant 0 : i32
    return %arg0, %c0_i32 : i32, i32
  }
  func.func @transform_1(%arg0: i32) -> (i32, i32) {
    %c0_i32 = arith.constant 0 : i32
    %c0_i32_0 = arith.constant 0 : i32
    %c0_i32_1 = arith.constant 0 : i32
    return %c0_i32, %c0_i32_0 : i32, i32
  }
  func.func @transform_2(%arg0: i32) -> (i32, i32) {
    %c0_i32 = arith.constant 0 : i32
    %c0_i32_0 = arith.constant 0 : i32
    %c0_i32_1 = arith.constant 0 : i32
    return %c0_i32, %c0_i32_0 : i32, i32
  }
  func.func @transform_3(%arg0: i32) -> (i32, i32) {
    %c0_i32 = arith.constant 0 : i32
    %c0_i32_0 = arith.constant 0 : i32
    %c0_i32_1 = arith.constant 0 : i32
    return %c0_i32, %c0_i32_0 : i32, i32
  }
  func.func @transform_4(%arg0: i32) -> (i32, i32) {
    %c0_i32 = arith.constant 0 : i32
    %c0_i32_0 = arith.constant 0 : i32
    %c0_i32_1 = arith.constant 0 : i32
    return %c0_i32, %c0_i32_0 : i32, i32
  }
  func.func @transform_5(%arg0: i32) -> (i32, i32) {
    %c0_i32 = arith.constant 0 : i32
    %c0_i32_0 = arith.constant 0 : i32
    %c0_i32_1 = arith.constant 0 : i32
    return %c0_i32, %c0_i32_0 : i32, i32
  }
  func.func @transform_6(%arg0: i32) -> (i32, i32) {
    %c0_i32 = arith.constant 0 : i32
    %c0_i32_0 = arith.constant 0 : i32
    %c0_i32_1 = arith.constant 0 : i32
    return %c0_i32, %c0_i32_0 : i32, i32
  }
  func.func @transform_7(%arg0: i32) -> (i32, i32) {
    %c0_i32 = arith.constant 0 : i32
    %c0_i32_0 = arith.constant 0 : i32
    %c0_i32_1 = arith.constant 0 : i32
    return %c0_i32, %c0_i32_0 : i32, i32
  }
  func.func @transform_8(%arg0: i32) -> (i32, i32) {
    %c0_i32 = arith.constant 0 : i32
    %c0_i32_0 = arith.constant 0 : i32
    %c0_i32_1 = arith.constant 0 : i32
    return %c0_i32, %c0_i32_0 : i32, i32
  }
  func.func @transform_9(%arg0: i32) -> (i32, i32) {
    %c0_i32 = arith.constant 0 : i32
    %c0_i32_0 = arith.constant 0 : i32
    return %arg0, %c0_i32 : i32, i32
  }
}

module attributes {stable_mosaic.version = 11 : i64} {
  func.func @_mlp_kernel(%arg0: i32, %arg1: memref<16x128xbf16, #tpu.memory_space<vmem>>, %arg2: memref<128x1024xbf16, #tpu.memory_space<vmem>>, %arg3: memref<1x1024xf32, #tpu.memory_space<vmem>>, %arg4: memref<1024x512xbf16, #tpu.memory_space<vmem>>, %arg5: memref<1x512xf32, #tpu.memory_space<vmem>>, %arg6: memref<512x256xbf16, #tpu.memory_space<vmem>>, %arg7: memref<1x256xf32, #tpu.memory_space<vmem>>, %arg8: memref<256x128xbf16, #tpu.memory_space<vmem>>, %arg9: memref<1x128xf32, #tpu.memory_space<vmem>>, %arg10: memref<16x128xbf16, #tpu.memory_space<vmem>>) attributes {dimension_semantics = [#tpu.dimension_semantics<parallel>], iteration_bounds = array<i64: 1>, scalar_prefetch = 0 : i64, scratch_operands = 0 : i64, tpu.core_type = #tpu.core_type<tc>, window_params = [{transform_indices = @transform_0, window_bounds = array<i64: 16, 128>}, {pipeline_mode = #tpu.pipeline_mode<synchronous>, transform_indices = @transform_1, window_bounds = array<i64: 128, 1024>}, {pipeline_mode = #tpu.pipeline_mode<synchronous>, transform_indices = @transform_2, window_bounds = array<i64: 1, 1024>}, {pipeline_mode = #tpu.pipeline_mode<synchronous>, transform_indices = @transform_3, window_bounds = array<i64: 1024, 512>}, {pipeline_mode = #tpu.pipeline_mode<synchronous>, transform_indices = @transform_4, window_bounds = array<i64: 1, 512>}, {pipeline_mode = #tpu.pipeline_mode<synchronous>, transform_indices = @transform_5, window_bounds = array<i64: 512, 256>}, {pipeline_mode = #tpu.pipeline_mode<synchronous>, transform_indices = @transform_6, window_bounds = array<i64: 1, 256>}, {pipeline_mode = #tpu.pipeline_mode<synchronous>, transform_indices = @transform_7, window_bounds = array<i64: 256, 128>}, {pipeline_mode = #tpu.pipeline_mode<synchronous>, transform_indices = @transform_8, window_bounds = array<i64: 1, 128>}, {transform_indices = @transform_9, window_bounds = array<i64: 16, 128>}]} {
    %c0 = arith.constant 0 : index
    %c0_0 = arith.constant 0 : index
    %0 = vector.load %arg1[%c0, %c0_0] : memref<16x128xbf16, #tpu.memory_space<vmem>>, vector<16x128xbf16>
    %c0_1 = arith.constant 0 : index
    %c0_2 = arith.constant 0 : index
    %1 = vector.load %arg2[%c0_1, %c0_2] : memref<128x1024xbf16, #tpu.memory_space<vmem>>, vector<128x1024xbf16>
    %cst = arith.constant dense<0.000000e+00> : vector<16x1024xf32>
    %2 = tpu.matmul %0, %1, %cst {dimension_numbers = #tpu.dot_dimension_numbers<[1], [0], [0], [1], [0, 0, 1, 1], [], []>} : vector<16x128xbf16>, vector<128x1024xbf16>, vector<16x1024xf32> -> vector<16x1024xf32>
    %c0_3 = arith.constant 0 : index
    %c0_4 = arith.constant 0 : index
    %3 = vector.load %arg3[%c0_3, %c0_4] : memref<1x1024xf32, #tpu.memory_space<vmem>>, vector<1x1024xf32>
    %4 = vector.broadcast %3 : vector<1x1024xf32> to vector<16x1024xf32>
    %5 = arith.addf %2, %4 : vector<16x1024xf32>
    %cst_5 = arith.constant 0.000000e+00 : f32
    %6 = vector.broadcast %cst_5 : f32 to vector<16x1024xf32>
    %7 = arith.maximumf %5, %6 : vector<16x1024xf32>
    %8 = arith.truncf %7 : vector<16x1024xf32> to vector<16x1024xbf16>
    %c0_6 = arith.constant 0 : index
    %c0_7 = arith.constant 0 : index
    %9 = vector.load %arg4[%c0_6, %c0_7] : memref<1024x512xbf16, #tpu.memory_space<vmem>>, vector<1024x512xbf16>
    %cst_8 = arith.constant dense<0.000000e+00> : vector<16x512xf32>
    %10 = tpu.matmul %8, %9, %cst_8 {dimension_numbers = #tpu.dot_dimension_numbers<[1], [0], [0], [1], [0, 0, 1, 1], [], []>} : vector<16x1024xbf16>, vector<1024x512xbf16>, vector<16x512xf32> -> vector<16x512xf32>
    %c0_9 = arith.constant 0 : index
    %c0_10 = arith.constant 0 : index
    %11 = vector.load %arg5[%c0_9, %c0_10] : memref<1x512xf32, #tpu.memory_space<vmem>>, vector<1x512xf32>
    %12 = vector.broadcast %11 : vector<1x512xf32> to vector<16x512xf32>
    %13 = arith.addf %10, %12 : vector<16x512xf32>
    %cst_11 = arith.constant 0.000000e+00 : f32
    %14 = vector.broadcast %cst_11 : f32 to vector<16x512xf32>
    %15 = arith.maximumf %13, %14 : vector<16x512xf32>
    %16 = arith.truncf %15 : vector<16x512xf32> to vector<16x512xbf16>
    %c0_12 = arith.constant 0 : index
    %c0_13 = arith.constant 0 : index
    %17 = vector.load %arg6[%c0_12, %c0_13] : memref<512x256xbf16, #tpu.memory_space<vmem>>, vector<512x256xbf16>
    %cst_14 = arith.constant dense<0.000000e+00> : vector<16x256xf32>
    %18 = tpu.matmul %16, %17, %cst_14 {dimension_numbers = #tpu.dot_dimension_numbers<[1], [0], [0], [1], [0, 0, 1, 1], [], []>} : vector<16x512xbf16>, vector<512x256xbf16>, vector<16x256xf32> -> vector<16x256xf32>
    %c0_15 = arith.constant 0 : index
    %c0_16 = arith.constant 0 : index
    %19 = vector.load %arg7[%c0_15, %c0_16] : memref<1x256xf32, #tpu.memory_space<vmem>>, vector<1x256xf32>
    %20 = vector.broadcast %19 : vector<1x256xf32> to vector<16x256xf32>
    %21 = arith.addf %18, %20 : vector<16x256xf32>
    %cst_17 = arith.constant 0.000000e+00 : f32
    %22 = vector.broadcast %cst_17 : f32 to vector<16x256xf32>
    %23 = arith.maximumf %21, %22 : vector<16x256xf32>
    %24 = arith.truncf %23 : vector<16x256xf32> to vector<16x256xbf16>
    %c0_18 = arith.constant 0 : index
    %c0_19 = arith.constant 0 : index
    %25 = vector.load %arg8[%c0_18, %c0_19] : memref<256x128xbf16, #tpu.memory_space<vmem>>, vector<256x128xbf16>
    %cst_20 = arith.constant dense<0.000000e+00> : vector<16x128xf32>
    %26 = tpu.matmul %24, %25, %cst_20 {dimension_numbers = #tpu.dot_dimension_numbers<[1], [0], [0], [1], [0, 0, 1, 1], [], []>} : vector<16x256xbf16>, vector<256x128xbf16>, vector<16x128xf32> -> vector<16x128xf32>
    %c0_21 = arith.constant 0 : index
    %c0_22 = arith.constant 0 : index
    %27 = vector.load %arg9[%c0_21, %c0_22] : memref<1x128xf32, #tpu.memory_space<vmem>>, vector<1x128xf32>
    %28 = vector.broadcast %27 : vector<1x128xf32> to vector<16x128xf32>
    %29 = arith.addf %26, %28 : vector<16x128xf32>
    %30 = arith.truncf %29 : vector<16x128xf32> to vector<16x128xbf16>
    %c0_23 = arith.constant 0 : index
    %c0_24 = arith.constant 0 : index
    %31 = vector.load %arg10[%c0_23, %c0_24] : memref<16x128xbf16, #tpu.memory_space<vmem>>, vector<16x128xbf16>
    tpu.vector_store %arg10[%c0_23, %c0_24], %30 {strides = array<i32>} : memref<16x128xbf16, #tpu.memory_space<vmem>>, vector<16x128xbf16>,
    return
  }
  func.func @transform_0(%arg0: i32) -> (i32, i32) {
    %c0_i32 = arith.constant 0 : i32
    %c0_i32_0 = arith.constant 0 : i32
    return %arg0, %c0_i32 : i32, i32
  }
  func.func @transform_1(%arg0: i32) -> (i32, i32) {
    %c0_i32 = arith.constant 0 : i32
    %c0_i32_0 = arith.constant 0 : i32
    %c0_i32_1 = arith.constant 0 : i32
    return %c0_i32, %c0_i32_0 : i32, i32
  }
  func.func @transform_2(%arg0: i32) -> (i32, i32) {
    %c0_i32 = arith.constant 0 : i32
    %c0_i32_0 = arith.constant 0 : i32
    %c0_i32_1 = arith.constant 0 : i32
    return %c0_i32, %c0_i32_0 : i32, i32
  }
  func.func @transform_3(%arg0: i32) -> (i32, i32) {
    %c0_i32 = arith.constant 0 : i32
    %c0_i32_0 = arith.constant 0 : i32
    %c0_i32_1 = arith.constant 0 : i32
    return %c0_i32, %c0_i32_0 : i32, i32
  }
  func.func @transform_4(%arg0: i32) -> (i32, i32) {
    %c0_i32 = arith.constant 0 : i32
    %c0_i32_0 = arith.constant 0 : i32
    %c0_i32_1 = arith.constant 0 : i32
    return %c0_i32, %c0_i32_0 : i32, i32
  }
  func.func @transform_5(%arg0: i32) -> (i32, i32) {
    %c0_i32 = arith.constant 0 : i32
    %c0_i32_0 = arith.constant 0 : i32
    %c0_i32_1 = arith.constant 0 : i32
    return %c0_i32, %c0_i32_0 : i32, i32
  }
  func.func @transform_6(%arg0: i32) -> (i32, i32) {
    %c0_i32 = arith.constant 0 : i32
    %c0_i32_0 = arith.constant 0 : i32
    %c0_i32_1 = arith.constant 0 : i32
    return %c0_i32, %c0_i32_0 : i32, i32
  }
  func.func @transform_7(%arg0: i32) -> (i32, i32) {
    %c0_i32 = arith.constant 0 : i32
    %c0_i32_0 = arith.constant 0 : i32
    %c0_i32_1 = arith.constant 0 : i32
    return %c0_i32, %c0_i32_0 : i32, i32
  }
  func.func @transform_8(%arg0: i32) -> (i32, i32) {
    %c0_i32 = arith.constant 0 : i32
    %c0_i32_0 = arith.constant 0 : i32
    %c0_i32_1 = arith.constant 0 : i32
    return %c0_i32, %c0_i32_0 : i32, i32
  }
  func.func @transform_9(%arg0: i32) -> (i32, i32) {
    %c0_i32 = arith.constant 0 : i32
    %c0_i32_0 = arith.constant 0 : i32
    return %arg0, %c0_i32 : i32, i32
  }
}

</mosaic_0001>

<llo_original>
// kernel: tpu_custom_call.1
$region0: #{tpu_custom_call.1}
  #allocation0 [shape = 'u32[]', space=smem, size = 0x4, offset = 0x4, fixed_abs, tag = 'smem constant byte address 0x4 - core index']
  #allocation1 [shape = 'u32[144,128]{1,0:T(1,128)}', space=vmem, size = 0x12000, scoped, tag = 'internal scratch']
  %s0 = inlined_call_operand.hbm [shape: bf16[16,128], index: 0, kind: input, shape index: {}]
  %s1 = inlined_call_operand.hbm [shape: bf16[128,1024], index: 1, kind: input, shape index: {}]
  %s2 = inlined_call_operand.hbm [shape: f32[1,1024], index: 2, kind: input, shape index: {}]
  %s3 = inlined_call_operand.hbm [shape: bf16[1024,512], index: 3, kind: input, shape index: {}]
  %s4 = inlined_call_operand.vmem [shape: f32[1,512], index: 4, kind: input, shape index: {}]
  %s5 = inlined_call_operand.hbm [shape: bf16[512,256], index: 5, kind: input, shape index: {}]
  %s6 = inlined_call_operand.vmem [shape: f32[1,256], index: 6, kind: input, shape index: {}]
  %s7 = inlined_call_operand.hbm [shape: bf16[256,128], index: 7, kind: input, shape index: {}]
  %s8 = inlined_call_operand.vmem [shape: f32[1,128], index: 8, kind: input, shape index: {}]
  %s9 = inlined_call_operand.hbm [shape: bf16[16,128], index: 9, kind: output, shape index: {}]
  %s10 = sld [smem:[#allocation0]]
  $region70: #{tpu_custom_call.1} parent=0
    _
  %s12 = ssub.s32 1, %s10
  %s13 = scalar_select 0, %s12, %s10
  $region1: #{tpu_custom_call.1} parent=0
    #allocation2 [shape = 'u8[4096]{0}', space=vmem, size = 0x1000, scoped, tag = 'input window, operand 0, single buffered']
    #allocation3 [shape = 's32[1]{0}', space=sflag, size = 0x4, scoped, tag = 'scoped memory for tpu_custom_call.1']
    #allocation4 [shape = 's32[1]{0}', space=sflag, size = 0x4, scoped, tag = 'scoped memory for tpu_custom_call.1']
    #allocation5 [shape = 'u8[262144]{0}', space=vmem, size = 0x40000, scoped, tag = 'input window, operand 1, single buffered']
    #allocation6 [shape = 's32[1]{0}', space=sflag, size = 0x4, scoped, tag = 'scoped memory for tpu_custom_call.1']
    #allocation7 [shape = 'u8[4096]{0}', space=vmem, size = 0x1000, scoped, tag = 'input window, operand 2, single buffered']
    #allocation8 [shape = 'u8[1048576]{0}', space=vmem, size = 0x100000, scoped, tag = 'input window, operand 3, single buffered']
    #allocation9 [shape = 's32[1]{0}', space=sflag, size = 0x4, scoped, tag = 'scoped memory for tpu_custom_call.1']
    #allocation10 [shape = 'u8[262144]{0}', space=vmem, size = 0x40000, scoped, tag = 'input window, operand 5, single buffered']
    #allocation11 [shape = 'u8[65536]{0}', space=vmem, size = 0x10000, scoped, tag = 'input window, operand 7, single buffered']
    #allocation12 [shape = 's32[1]{0}', space=sflag, size = 0x4, scoped, tag = 'scoped memory for tpu_custom_call.1']
    #allocation13 [shape = 'u8[4096]{0}', space=vmem, size = 0x1000, scoped, tag = 'output window, operand 0, single buffered']
    %14 = vsyncpa [#allocation3], 0
    %15 = vsyncpa [#allocation6], 0
    %16 = vsyncpa [#allocation9], 0
    %17 = vsyncpa [#allocation12], 0
    %18 = vsyncpa [#allocation4], 0
    // Predicated region
    $region2: #{tpu_custom_call.1} parent=1 // pred_check
      _
    $region3: #{tpu_custom_call.1} parent=1 // pred_check_branch
      %20 = sbr.rel (0) target = $region5
    $region4: #{tpu_custom_call.1} parent=1 // pred_region
      %s22 = ssub.s32 128, 128
      %23 = vsyncadd [#allocation3], %s22
      %s24 = sshll.u32 [#allocation2], 4
      %s25 = int_to_ptr.vmem [resolvable:$true] %s24
      %30 = dma.hbm_to_vmem [thread:$0]  %s0, 128, %s25, [#allocation3], 64, 64, 4
    $region5: #{tpu_custom_call.1} parent=1 // pred_fallthru
      _
    // Predicated region
    $region6: #{tpu_custom_call.1} parent=1 // pred_check
      _
    $region7: #{tpu_custom_call.1} parent=1 // pred_check_branch
      %32 = sbr.rel (0) target = $region9
    $region8: #{tpu_custom_call.1} parent=1 // pred_region
      %s34 = ssub.s32 8192, 8192
      %35 = vsyncadd [#allocation6], %s34
      %s36 = sshll.u32 [#allocation5], 4
      %s37 = int_to_ptr.vmem [resolvable:$true] %s36
      %42 = dma.hbm_to_vmem [thread:$0]  %s1, 8192, %s37, [#allocation6], 512, 512, 32
    $region9: #{tpu_custom_call.1} parent=1 // pred_fallthru
      _
    // Predicated region
    $region10: #{tpu_custom_call.1} parent=1 // pred_check
      _
    $region11: #{tpu_custom_call.1} parent=1 // pred_check_branch
      %44 = sbr.rel (0) target = $region13
    $region12: #{tpu_custom_call.1} parent=1 // pred_region
      %s46 = ssub.s32 128, 128
      %47 = vsyncadd [#allocation6], %s46
      %s49 = sshll.u32 [#allocation7], 4
      %s50 = int_to_ptr.vmem [resolvable:$true] %s49
      %52 = dma.hbm_to_vmem [thread:$0]  %s2, 128, %s50, [#allocation6]
    $region13: #{tpu_custom_call.1} parent=1 // pred_fallthru
      _
    // Predicated region
    $region14: #{tpu_custom_call.1} parent=1 // pred_check
      _
    $region15: #{tpu_custom_call.1} parent=1 // pred_check_branch
      %54 = sbr.rel (0) target = $region17
    $region16: #{tpu_custom_call.1} parent=1 // pred_region
      %s56 = ssub.s32 32768, 32768
      %57 = vsyncadd [#allocation9], %s56
      %s58 = sshll.u32 [#allocation8], 4
      %s59 = int_to_ptr.vmem [resolvable:$true] %s58
      %64 = dma.hbm_to_vmem [thread:$0]  %s3, 32768, %s59, [#allocation9], 256, 256, 16
    $region17: #{tpu_custom_call.1} parent=1 // pred_fallthru
      _
    // Predicated region
    $region18: #{tpu_custom_call.1} parent=1 // pred_check
      _
    $region19: #{tpu_custom_call.1} parent=1 // pred_check_branch
      %66 = sbr.rel (0) target = $region21
    $region20: #{tpu_custom_call.1} parent=1 // pred_region
      _
    $region21: #{tpu_custom_call.1} parent=1 // pred_fallthru
      _
    // Predicated region
    $region22: #{tpu_custom_call.1} parent=1 // pred_check
      _
    $region23: #{tpu_custom_call.1} parent=1 // pred_check_branch
      %68 = sbr.rel (0) target = $region25
    $region24: #{tpu_custom_call.1} parent=1 // pred_region
      %s70 = ssub.s32 8192, 8192
      %71 = vsyncadd [#allocation9], %s70
      %s72 = sshll.u32 [#allocation10], 4
      %s73 = int_to_ptr.vmem [resolvable:$true] %s72
      %78 = dma.hbm_to_vmem [thread:$0]  %s5, 8192, %s73, [#allocation9], 128, 128, 8
    $region25: #{tpu_custom_call.1} parent=1 // pred_fallthru
      _
    // Predicated region
    $region26: #{tpu_custom_call.1} parent=1 // pred_check
      _
    $region27: #{tpu_custom_call.1} parent=1 // pred_check_branch
      %80 = sbr.rel (0) target = $region29
    $region28: #{tpu_custom_call.1} parent=1 // pred_region
      _
    $region29: #{tpu_custom_call.1} parent=1 // pred_fallthru
      _
    // Predicated region
    $region30: #{tpu_custom_call.1} parent=1 // pred_check
      _
    $region31: #{tpu_custom_call.1} parent=1 // pred_check_branch
      %82 = sbr.rel (0) target = $region33
    $region32: #{tpu_custom_call.1} parent=1 // pred_region
      %s84 = ssub.s32 2048, 2048
      %85 = vsyncadd [#allocation12], %s84
      %s86 = sshll.u32 [#allocation11], 4
      %s87 = int_to_ptr.vmem [resolvable:$true] %s86
      %92 = dma.hbm_to_vmem [thread:$0]  %s7, 2048, %s87, [#allocation12], 64, 64, 4
    $region33: #{tpu_custom_call.1} parent=1 // pred_fallthru
      _
    // Predicated region
    $region34: #{tpu_custom_call.1} parent=1 // pred_check
      _
    $region35: #{tpu_custom_call.1} parent=1 // pred_check_branch
      %94 = sbr.rel (0) target = $region37
    $region36: #{tpu_custom_call.1} parent=1 // pred_region
      _
    $region37: #{tpu_custom_call.1} parent=1 // pred_fallthru
      _
    // Predicated region
    $region38: #{tpu_custom_call.1} parent=1 // pred_check
      _
    $region39: #{tpu_custom_call.1} parent=1 // pred_check_branch
      %96 = sbr.rel (0) target = $region41
    $region40: #{tpu_custom_call.1} parent=1 // pred_region
      %97 = dma.done [#allocation3], 128
    $region41: #{tpu_custom_call.1} parent=1 // pred_fallthru
      _
    // Predicated region
    $region42: #{tpu_custom_call.1} parent=1 // pred_check
      _
    $region43: #{tpu_custom_call.1} parent=1 // pred_check_branch
      %99 = sbr.rel (0) target = $region45
    $region44: #{tpu_custom_call.1} parent=1 // pred_region
      %100 = dma.done [#allocation6], 8192
    $region45: #{tpu_custom_call.1} parent=1 // pred_fallthru
      _
    // Predicated region
    $region46: #{tpu_custom_call.1} parent=1 // pred_check
      _
    $region47: #{tpu_custom_call.1} parent=1 // pred_check_branch
      %102 = sbr.rel (0) target = $region49
    $region48: #{tpu_custom_call.1} parent=1 // pred_region
      %103 = dma.done [#allocation6], 128
    $region49: #{tpu_custom_call.1} parent=1 // pred_fallthru
      _
    // Predicated region
    $region50: #{tpu_custom_call.1} parent=1 // pred_check
      _
    $region51: #{tpu_custom_call.1} parent=1 // pred_check_branch
      %105 = sbr.rel (0) target = $region53
    $region52: #{tpu_custom_call.1} parent=1 // pred_region
      %106 = dma.done [#allocation9], 32768
    $region53: #{tpu_custom_call.1} parent=1 // pred_fallthru
      _
    // Predicated region
    $region54: #{tpu_custom_call.1} parent=1 // pred_check
      _
    $region55: #{tpu_custom_call.1} parent=1 // pred_check_branch
      %108 = sbr.rel (0) target = $region57
    $region56: #{tpu_custom_call.1} parent=1 // pred_region
      %109 = dma.done [#allocation9], 8192
    $region57: #{tpu_custom_call.1} parent=1 // pred_fallthru
      _
    // Predicated region
    $region58: #{tpu_custom_call.1} parent=1 // pred_check
      _
    $region59: #{tpu_custom_call.1} parent=1 // pred_check_branch
      %111 = sbr.rel (0) target = $region61
    $region60: #{tpu_custom_call.1} parent=1 // pred_region
      %112 = dma.done [#allocation12], 2048
    $region61: #{tpu_custom_call.1} parent=1 // pred_fallthru
      _
    %v114 = vld [vmem:[#allocation2] sm:$0xf]
    %v115 = vld [vmem:[#allocation2 + $0x4] sm:$0xf]
    %v116 = vld [vmem:[#allocation5] sm:$0xff]
    %v117 = vld [vmem:[#allocation5 + $0x8] sm:$0xff]
    %v118 = vld [vmem:[#allocation5 + $0x10] sm:$0xff]
    %v119 = vld [vmem:[#allocation5 + $0x18] sm:$0xff]
    %v120 = vld [vmem:[#allocation5 + $0x20] sm:$0xff]
    %v121 = vld [vmem:[#allocation5 + $0x28] sm:$0xff]
    %v122 = vld [vmem:[#allocation5 + $0x30] sm:$0xff]
    %v123 = vld [vmem:[#allocation5 + $0x38] sm:$0xff]
    %v124 = vld [vmem:[#allocation5 + $0x40] sm:$0xff]
    %v125 = vld [vmem:[#allocation5 + $0x48] sm:$0xff]
    %v126 = vld [vmem:[#allocation5 + $0x50] sm:$0xff]
    %v127 = vld [vmem:[#allocation5 + $0x58] sm:$0xff]
    %v128 = vld [vmem:[#allocation5 + $0x60] sm:$0xff]
    %v129 = vld [vmem:[#allocation5 + $0x68] sm:$0xff]
    %v130 = vld [vmem:[#allocation5 + $0x70] sm:$0xff]
    %v131 = vld [vmem:[#allocation5 + $0x78] sm:$0xff]
    %v132 = vld [vmem:[#allocation5 + $0x80] sm:$0xff]
    %v133 = vld [vmem:[#allocation5 + $0x88] sm:$0xff]
    %v134 = vld [vmem:[#allocation5 + $0x90] sm:$0xff]
    %v135 = vld [vmem:[#allocation5 + $0x98] sm:$0xff]
    %v136 = vld [vmem:[#allocation5 + $0xa0] sm:$0xff]
    %v137 = vld [vmem:[#allocation5 + $0xa8] sm:$0xff]
    %v138 = vld [vmem:[#allocation5 + $0xb0] sm:$0xff]
    %v139 = vld [vmem:[#allocation5 + $0xb8] sm:$0xff]
    %v140 = vld [vmem:[#allocation5 + $0xc0] sm:$0xff]
    %v141 = vld [vmem:[#allocation5 + $0xc8] sm:$0xff]
    %v142 = vld [vmem:[#allocation5 + $0xd0] sm:$0xff]
    %v143 = vld [vmem:[#allocation5 + $0xd8] sm:$0xff]
    %v144 = vld [vmem:[#allocation5 + $0xe0] sm:$0xff]
    %v145 = vld [vmem:[#allocation5 + $0xe8] sm:$0xff]
    %v146 = vld [vmem:[#allocation5 + $0xf0] sm:$0xff]
    %v147 = vld [vmem:[#allocation5 + $0xf8] sm:$0xff]
    %v148 = vld [vmem:[#allocation5 + $0x100] sm:$0xff]
    %v149 = vld [vmem:[#allocation5 + $0x108] sm:$0xff]
    %v150 = vld [vmem:[#allocation5 + $0x110] sm:$0xff]
    %v151 = vld [vmem:[#allocation5 + $0x118] sm:$0xff]
    %v152 = vld [vmem:[#allocation5 + $0x120] sm:$0xff]
    %v153 = vld [vmem:[#allocation5 + $0x128] sm:$0xff]
    %v154 = vld [vmem:[#allocation5 + $0x130] sm:$0xff]
    %v155 = vld [vmem:[#allocation5 + $0x138] sm:$0xff]
    %v156 = vld [vmem:[#allocation5 + $0x140] sm:$0xff]
    %v157 = vld [vmem:[#allocation5 + $0x148] sm:$0xff]
    %v158 = vld [vmem:[#allocation5 + $0x150] sm:$0xff]
    %v159 = vld [vmem:[#allocation5 + $0x158] sm:$0xff]
    %v160 = vld [vmem:[#allocation5 + $0x160] sm:$0xff]
    %v161 = vld [vmem:[#allocation5 + $0x168] sm:$0xff]
    %v162 = vld [vmem:[#allocation5 + $0x170] sm:$0xff]
    %v163 = vld [vmem:[#allocation5 + $0x178] sm:$0xff]
    %v164 = vld [vmem:[#allocation5 + $0x180] sm:$0xff]
    %v165 = vld [vmem:[#allocation5 + $0x188] sm:$0xff]
    %v166 = vld [vmem:[#allocation5 + $0x190] sm:$0xff]
    %v167 = vld [vmem:[#allocation5 + $0x198] sm:$0xff]
    %v168 = vld [vmem:[#allocation5 + $0x1a0] sm:$0xff]
    %v169 = vld [vmem:[#allocation5 + $0x1a8] sm:$0xff]
    %v170 = vld [vmem:[#allocation5 + $0x1b0] sm:$0xff]
    %v171 = vld [vmem:[#allocation5 + $0x1b8] sm:$0xff]
    %v172 = vld [vmem:[#allocation5 + $0x1c0] sm:$0xff]
    %v173 = vld [vmem:[#allocation5 + $0x1c8] sm:$0xff]
    %v174 = vld [vmem:[#allocation5 + $0x1d0] sm:$0xff]
    %v175 = vld [vmem:[#allocation5 + $0x1d8] sm:$0xff]
    %v176 = vld [vmem:[#allocation5 + $0x1e0] sm:$0xff]
    %v177 = vld [vmem:[#allocation5 + $0x1e8] sm:$0xff]
    %v178 = vld [vmem:[#allocation5 + $0x1f0] sm:$0xff]
    %v179 = vld [vmem:[#allocation5 + $0x1f8] sm:$0xff]
    %v180 = vld [vmem:[#allocation7] sm:$0xff]
    %v182 = vlaneseq
    %v183 = vshrl.u32 %v182, 7
    %v184 = vsub.s32 0, %v183
    %v185 = vrot.slane %v180, %v184
    %v186 = vlaneseq
    %v187 = vshrl.u32 %v186, 7
    %v188 = vsub.s32 1, %v187
    %v189 = vrot.slane %v180, %v188
    %v190 = vlaneseq
    %v191 = vshrl.u32 %v190, 7
    %v192 = vsub.s32 2, %v191
    %v193 = vrot.slane %v180, %v192
    %v194 = vlaneseq
    %v195 = vshrl.u32 %v194, 7
    %v196 = vsub.s32 3, %v195
    %v197 = vrot.slane %v180, %v196
    %v198 = vlaneseq
    %v199 = vshrl.u32 %v198, 7
    %v200 = vsub.s32 4, %v199
    %v201 = vrot.slane %v180, %v200
    %v202 = vlaneseq
    %v203 = vshrl.u32 %v202, 7
    %v204 = vsub.s32 5, %v203
    %v205 = vrot.slane %v180, %v204
    %v206 = vlaneseq
    %v207 = vshrl.u32 %v206, 7
    %v208 = vsub.s32 6, %v207
    %v209 = vrot.slane %v180, %v208
    %v210 = vlaneseq
    %v211 = vshrl.u32 %v210, 7
    %v212 = vsub.s32 7, %v211
    %v213 = vrot.slane %v180, %v212
    %v224 = vunpack.c.l.b16 %v114
    %v225 = vunpack.c.l.b16 %v115
    %v226 = vpack.c.b16 %v225, %v224
    %v292 = vunpack.c.l.b16 %v116
    %v293 = vunpack.c.h.b16 %v116
    %v294 = vunpack.c.l.b16 %v117
    %v295 = vunpack.c.h.b16 %v117
    %v296 = vunpack.c.l.b16 %v118
    %v297 = vunpack.c.h.b16 %v118
    %v298 = vunpack.c.l.b16 %v119
    %v299 = vunpack.c.h.b16 %v119
    %v300 = vunpack.c.l.b16 %v120
    %v301 = vunpack.c.h.b16 %v120
    %v302 = vunpack.c.l.b16 %v121
    %v303 = vunpack.c.h.b16 %v121
    %v304 = vunpack.c.l.b16 %v122
    %v305 = vunpack.c.h.b16 %v122
    %v306 = vunpack.c.l.b16 %v123
    %v307 = vunpack.c.h.b16 %v123
    %v308 = vunpack.c.l.b16 %v124
    %v309 = vunpack.c.h.b16 %v124
    %v310 = vunpack.c.l.b16 %v125
    %v311 = vunpack.c.h.b16 %v125
    %v312 = vunpack.c.l.b16 %v126
    %v313 = vunpack.c.h.b16 %v126
    %v314 = vunpack.c.l.b16 %v127
    %v315 = vunpack.c.h.b16 %v127
    %v316 = vunpack.c.l.b16 %v128
    %v317 = vunpack.c.h.b16 %v128
    %v318 = vunpack.c.l.b16 %v129
    %v319 = vunpack.c.h.b16 %v129
    %v320 = vunpack.c.l.b16 %v130
    %v321 = vunpack.c.h.b16 %v130
    %v322 = vunpack.c.l.b16 %v131
    %v323 = vunpack.c.h.b16 %v131
    %v324 = vunpack.c.l.b16 %v132
    %v325 = vunpack.c.h.b16 %v132
    %v326 = vunpack.c.l.b16 %v133
    %v327 = vunpack.c.h.b16 %v133
    %v328 = vunpack.c.l.b16 %v134
    %v329 = vunpack.c.h.b16 %v134
    %v330 = vunpack.c.l.b16 %v135
    %v331 = vunpack.c.h.b16 %v135
    %v332 = vunpack.c.l.b16 %v136
    %v333 = vunpack.c.h.b16 %v136
    %v334 = vunpack.c.l.b16 %v137
    %v335 = vunpack.c.h.b16 %v137
    %v336 = vunpack.c.l.b16 %v138
    %v337 = vunpack.c.h.b16 %v138
    %v338 = vunpack.c.l.b16 %v139
    %v339 = vunpack.c.h.b16 %v139
    %v340 = vunpack.c.l.b16 %v140
    %v341 = vunpack.c.h.b16 %v140
    %v342 = vunpack.c.l.b16 %v141
    %v343 = vunpack.c.h.b16 %v141
    %v344 = vunpack.c.l.b16 %v142
    %v345 = vunpack.c.h.b16 %v142
    %v346 = vunpack.c.l.b16 %v143
    %v347 = vunpack.c.h.b16 %v143
    %v348 = vunpack.c.l.b16 %v144
    %v349 = vunpack.c.h.b16 %v144
    %v350 = vunpack.c.l.b16 %v145
    %v351 = vunpack.c.h.b16 %v145
    %v352 = vunpack.c.l.b16 %v146
    %v353 = vunpack.c.h.b16 %v146
    %v354 = vunpack.c.l.b16 %v147
    %v355 = vunpack.c.h.b16 %v147
    %v356 = vunpack.c.l.b16 %v148
    %v357 = vunpack.c.h.b16 %v148
    %v358 = vunpack.c.l.b16 %v149
    %v359 = vunpack.c.h.b16 %v149
    %v360 = vunpack.c.l.b16 %v150
    %v361 = vunpack.c.h.b16 %v150
    %v362 = vunpack.c.l.b16 %v151
    %v363 = vunpack.c.h.b16 %v151
    %v364 = vunpack.c.l.b16 %v152
    %v365 = vunpack.c.h.b16 %v152
    %v366 = vunpack.c.l.b16 %v153
    %v367 = vunpack.c.h.b16 %v153
    %v368 = vunpack.c.l.b16 %v154
    %v369 = vunpack.c.h.b16 %v154
    %v370 = vunpack.c.l.b16 %v155
    %v371 = vunpack.c.h.b16 %v155
    %v372 = vunpack.c.l.b16 %v156
    %v373 = vunpack.c.h.b16 %v156
    %v374 = vunpack.c.l.b16 %v157
    %v375 = vunpack.c.h.b16 %v157
    %v376 = vunpack.c.l.b16 %v158
    %v377 = vunpack.c.h.b16 %v158
    %v378 = vunpack.c.l.b16 %v159
    %v379 = vunpack.c.h.b16 %v159
    %v380 = vunpack.c.l.b16 %v160
    %v381 = vunpack.c.h.b16 %v160
    %v382 = vunpack.c.l.b16 %v161
    %v383 = vunpack.c.h.b16 %v161
    %v384 = vunpack.c.l.b16 %v162
    %v385 = vunpack.c.h.b16 %v162
    %v386 = vunpack.c.l.b16 %v163
    %v387 = vunpack.c.h.b16 %v163
    %v388 = vunpack.c.l.b16 %v164
    %v389 = vunpack.c.h.b16 %v164
    %v390 = vunpack.c.l.b16 %v165
    %v391 = vunpack.c.h.b16 %v165
    %v392 = vunpack.c.l.b16 %v166
    %v393 = vunpack.c.h.b16 %v166
    %v394 = vunpack.c.l.b16 %v167
    %v395 = vunpack.c.h.b16 %v167
    %v396 = vunpack.c.l.b16 %v168
    %v397 = vunpack.c.h.b16 %v168
    %v398 = vunpack.c.l.b16 %v169
    %v399 = vunpack.c.h.b16 %v169
    %v400 = vunpack.c.l.b16 %v170
    %v401 = vunpack.c.h.b16 %v170
    %v402 = vunpack.c.l.b16 %v171
    %v403 = vunpack.c.h.b16 %v171
    %v404 = vunpack.c.l.b16 %v172
    %v405 = vunpack.c.h.b16 %v172
    %v406 = vunpack.c.l.b16 %v173
    %v407 = vunpack.c.h.b16 %v173
    %v408 = vunpack.c.l.b16 %v174
    %v409 = vunpack.c.h.b16 %v174
    %v410 = vunpack.c.l.b16 %v175
    %v411 = vunpack.c.h.b16 %v175
    %v412 = vunpack.c.l.b16 %v176
    %v413 = vunpack.c.h.b16 %v176
    %v414 = vunpack.c.l.b16 %v177
    %v415 = vunpack.c.h.b16 %v177
    %v416 = vunpack.c.l.b16 %v178
    %v417 = vunpack.c.h.b16 %v178
    %v418 = vunpack.c.l.b16 %v179
    %v419 = vunpack.c.h.b16 %v179
    %v420 = vpack.c.b16 %v300, %v292
    %v421 = vpack.c.b16 %v301, %v293
    %v422 = vpack.c.b16 %v302, %v294
    %v423 = vpack.c.b16 %v303, %v295
    %v424 = vpack.c.b16 %v304, %v296
    %v425 = vpack.c.b16 %v305, %v297
    %v426 = vpack.c.b16 %v306, %v298
    %v427 = vpack.c.b16 %v307, %v299
    %v428 = vpack.c.b16 %v316, %v308
    %v429 = vpack.c.b16 %v317, %v309
    %v430 = vpack.c.b16 %v318, %v310
    %v431 = vpack.c.b16 %v319, %v311
    %v432 = vpack.c.b16 %v320, %v312
    %v433 = vpack.c.b16 %v321, %v313
    %v434 = vpack.c.b16 %v322, %v314
    %v435 = vpack.c.b16 %v323, %v315
    %v436 = vpack.c.b16 %v332, %v324
    %v437 = vpack.c.b16 %v333, %v325
    %v438 = vpack.c.b16 %v334, %v326
    %v439 = vpack.c.b16 %v335, %v327
    %v440 = vpack.c.b16 %v336, %v328
    %v441 = vpack.c.b16 %v337, %v329
    %v442 = vpack.c.b16 %v338, %v330
    %v443 = vpack.c.b16 %v339, %v331
    %v444 = vpack.c.b16 %v348, %v340
    %v445 = vpack.c.b16 %v349, %v341
    %v446 = vpack.c.b16 %v350, %v342
    %v447 = vpack.c.b16 %v351, %v343
    %v448 = vpack.c.b16 %v352, %v344
    %v449 = vpack.c.b16 %v353, %v345
    %v450 = vpack.c.b16 %v354, %v346
    %v451 = vpack.c.b16 %v355, %v347
    %v452 = vpack.c.b16 %v364, %v356
    %v453 = vpack.c.b16 %v365, %v357
    %v454 = vpack.c.b16 %v366, %v358
    %v455 = vpack.c.b16 %v367, %v359
    %v456 = vpack.c.b16 %v368, %v360
    %v457 = vpack.c.b16 %v369, %v361
    %v458 = vpack.c.b16 %v370, %v362
    %v459 = vpack.c.b16 %v371, %v363
    %v460 = vpack.c.b16 %v380, %v372
    %v461 = vpack.c.b16 %v381, %v373
    %v462 = vpack.c.b16 %v382, %v374
    %v463 = vpack.c.b16 %v383, %v375
    %v464 = vpack.c.b16 %v384, %v376
    %v465 = vpack.c.b16 %v385, %v377
    %v466 = vpack.c.b16 %v386, %v378
    %v467 = vpack.c.b16 %v387, %v379
    %v468 = vpack.c.b16 %v396, %v388
    %v469 = vpack.c.b16 %v397, %v389
    %v470 = vpack.c.b16 %v398, %v390
    %v471 = vpack.c.b16 %v399, %v391
    %v472 = vpack.c.b16 %v400, %v392
    %v473 = vpack.c.b16 %v401, %v393
    %v474 = vpack.c.b16 %v402, %v394
    %v475 = vpack.c.b16 %v403, %v395
    %v476 = vpack.c.b16 %v412, %v404
    %v477 = vpack.c.b16 %v413, %v405
    %v478 = vpack.c.b16 %v414, %v406
    %v479 = vpack.c.b16 %v415, %v407
    %v480 = vpack.c.b16 %v416, %v408
    %v481 = vpack.c.b16 %v417, %v409
    %v482 = vpack.c.b16 %v418, %v410
    %v483 = vpack.c.b16 %v419, %v411
    %548 = vmatprep.subr.bf16.mxu0 %v421
    %549 = vmatpush1.bf16.msra.mxu0 %v420
    %550 = vmatprep.subr.bf16.mxu0 %v429
    %551 = vmatpush1.bf16.msra.mxu0 %v428
    %552 = vmatprep.subr.bf16.mxu0 %v437
    %553 = vmatpush1.bf16.msra.mxu0 %v436
    %554 = vmatprep.subr.bf16.mxu0 %v445
    %555 = vmatpush1.bf16.msra.mxu0 %v444
    %556 = vmatprep.subr.bf16.mxu0 %v453
    %557 = vmatpush1.bf16.msra.mxu0 %v452
    %558 = vmatprep.subr.bf16.mxu0 %v461
    %559 = vmatpush1.bf16.msra.mxu0 %v460
    %560 = vmatprep.subr.bf16.mxu0 %v469
    %561 = vmatpush1.bf16.msra.mxu0 %v468
    %562 = vmatprep.subr.bf16.mxu0 %v477
    %563 = vmatpush1.bf16.msra.mxu0 %v476
    %564 = vmatprep.subr.bf16.mxu0 0
    %565 = vmatpush1.bf16.msra.mxu0 0
    %566 = vmatprep.subr.bf16.mxu0 0
    %567 = vmatpush1.bf16.msra.mxu0 0
    %568 = vmatprep.subr.bf16.mxu0 0
    %569 = vmatpush1.bf16.msra.mxu0 0
    %570 = vmatprep.subr.bf16.mxu0 0
    %571 = vmatpush1.bf16.msra.mxu0 0
    %572 = vmatprep.subr.bf16.mxu0 0
    %573 = vmatpush1.bf16.msra.mxu0 0
    %574 = vmatprep.subr.bf16.mxu0 0
    %575 = vmatpush1.bf16.msra.mxu0 0
    %576 = vmatprep.subr.bf16.mxu0 0
    %577 = vmatpush1.bf16.msra.mxu0 0
    %578 = vmatprep.subr.bf16.mxu0 0
    %579 = vmatpush1.bf16.msra.mxu0 0
    %580 = vmatprep.mubr.bf16.mxu0 0
    %581 = vmatmul.mubr.bf16.gmra.mrb[0].mxu0 %v226
    %v582 = vpop.f32.mrb[0].mxu0
    %v583 = vadd.f32 %v185, %v582
    %v584 = vpop.f32.mrb[0].mxu0
    %v585 = vadd.f32 %v189, %v584
    %v586 = vpop.f32.mrb[0].mxu0
    %v587 = vadd.f32 %v185, %v586
    %v588 = vpop.f32.mrb[0].mxu0
    %v589 = vadd.f32 %v189, %v588
    %590 = vdwg.mxu0
    %591 = vmatprep.subr.bf16.mxu0 %v423
    %592 = vmatpush1.bf16.msra.mxu0 %v422
    %593 = vmatprep.subr.bf16.mxu0 %v431
    %594 = vmatpush1.bf16.msra.mxu0 %v430
    %595 = vmatprep.subr.bf16.mxu0 %v439
    %596 = vmatpush1.bf16.msra.mxu0 %v438
    %597 = vmatprep.subr.bf16.mxu0 %v447
    %598 = vmatpush1.bf16.msra.mxu0 %v446
    %599 = vmatprep.subr.bf16.mxu0 %v455
    %600 = vmatpush1.bf16.msra.mxu0 %v454
    %601 = vmatprep.subr.bf16.mxu0 %v463
    %602 = vmatpush1.bf16.msra.mxu0 %v462
    %603 = vmatprep.subr.bf16.mxu0 %v471
    %604 = vmatpush1.bf16.msra.mxu0 %v470
    %605 = vmatprep.subr.bf16.mxu0 %v479
    %606 = vmatpush1.bf16.msra.mxu0 %v478
    %607 = vmatprep.subr.bf16.mxu0 0
    %608 = vmatpush1.bf16.msra.mxu0 0
    %609 = vmatprep.subr.bf16.mxu0 0
    %610 = vmatpush1.bf16.msra.mxu0 0
    %611 = vmatprep.subr.bf16.mxu0 0
    %612 = vmatpush1.bf16.msra.mxu0 0
    %613 = vmatprep.subr.bf16.mxu0 0
    %614 = vmatpush1.bf16.msra.mxu0 0
    %615 = vmatprep.subr.bf16.mxu0 0
    %616 = vmatpush1.bf16.msra.mxu0 0
    %617 = vmatprep.subr.bf16.mxu0 0
    %618 = vmatpush1.bf16.msra.mxu0 0
    %619 = vmatprep.subr.bf16.mxu0 0
    %620 = vmatpush1.bf16.msra.mxu0 0
    %621 = vmatprep.subr.bf16.mxu0 0
    %622 = vmatpush1.bf16.msra.mxu0 0
    %623 = vmatprep.mubr.bf16.mxu0 0
    %624 = vmatmul.mubr.bf16.gmra.mrb[0].mxu0 %v226
    %v625 = vpop.f32.mrb[0].mxu0
    %v626 = vadd.f32 %v193, %v625
    %v627 = vpop.f32.mrb[0].mxu0
    %v628 = vadd.f32 %v197, %v627
    %v629 = vpop.f32.mrb[0].mxu0
    %v630 = vadd.f32 %v193, %v629
    %v631 = vpop.f32.mrb[0].mxu0
    %v632 = vadd.f32 %v197, %v631
    %633 = vdwg.mxu0
    %634 = vmatprep.subr.bf16.mxu0 %v425
    %635 = vmatpush1.bf16.msra.mxu0 %v424
    %636 = vmatprep.subr.bf16.mxu0 %v433
    %637 = vmatpush1.bf16.msra.mxu0 %v432
    %638 = vmatprep.subr.bf16.mxu0 %v441
    %639 = vmatpush1.bf16.msra.mxu0 %v440
    %640 = vmatprep.subr.bf16.mxu0 %v449
    %641 = vmatpush1.bf16.msra.mxu0 %v448
    %642 = vmatprep.subr.bf16.mxu0 %v457
    %643 = vmatpush1.bf16.msra.mxu0 %v456
    %644 = vmatprep.subr.bf16.mxu0 %v465
    %645 = vmatpush1.bf16.msra.mxu0 %v464
    %646 = vmatprep.subr.bf16.mxu0 %v473
    %647 = vmatpush1.bf16.msra.mxu0 %v472
    %648 = vmatprep.subr.bf16.mxu0 %v481
    %649 = vmatpush1.bf16.msra.mxu0 %v480
    %650 = vmatprep.subr.bf16.mxu0 0
    %651 = vmatpush1.bf16.msra.mxu0 0
    %652 = vmatprep.subr.bf16.mxu0 0
    %653 = vmatpush1.bf16.msra.mxu0 0
    %654 = vmatprep.subr.bf16.mxu0 0
    %655 = vmatpush1.bf16.msra.mxu0 0
    %656 = vmatprep.subr.bf16.mxu0 0
    %657 = vmatpush1.bf16.msra.mxu0 0
    %658 = vmatprep.subr.bf16.mxu0 0
    %659 = vmatpush1.bf16.msra.mxu0 0
    %660 = vmatprep.subr.bf16.mxu0 0
    %661 = vmatpush1.bf16.msra.mxu0 0
    %662 = vmatprep.subr.bf16.mxu0 0
    %663 = vmatpush1.bf16.msra.mxu0 0
    %664 = vmatprep.subr.bf16.mxu0 0
    %665 = vmatpush1.bf16.msra.mxu0 0
    %666 = vmatprep.mubr.bf16.mxu0 0
    %667 = vmatmul.mubr.bf16.gmra.mrb[0].mxu0 %v226
    %v668 = vpop.f32.mrb[0].mxu0
    %v669 = vadd.f32 %v201, %v668
    %v670 = vpop.f32.mrb[0].mxu0
    %v671 = vadd.f32 %v205, %v670
    %v672 = vpop.f32.mrb[0].mxu0
    %v673 = vadd.f32 %v201, %v672
    %v674 = vpop.f32.mrb[0].mxu0
    %v675 = vadd.f32 %v205, %v674
    %676 = vdwg.mxu0
    %677 = vmatprep.subr.bf16.mxu0 %v427
    %678 = vmatpush1.bf16.msra.mxu0 %v426
    %679 = vmatprep.subr.bf16.mxu0 %v435
    %680 = vmatpush1.bf16.msra.mxu0 %v434
    %681 = vmatprep.subr.bf16.mxu0 %v443
    %682 = vmatpush1.bf16.msra.mxu0 %v442
    %683 = vmatprep.subr.bf16.mxu0 %v451
    %684 = vmatpush1.bf16.msra.mxu0 %v450
    %685 = vmatprep.subr.bf16.mxu0 %v459
    %686 = vmatpush1.bf16.msra.mxu0 %v458
    %687 = vmatprep.subr.bf16.mxu0 %v467
    %688 = vmatpush1.bf16.msra.mxu0 %v466
    %689 = vmatprep.subr.bf16.mxu0 %v475
    %690 = vmatpush1.bf16.msra.mxu0 %v474
    %691 = vmatprep.subr.bf16.mxu0 %v483
    %692 = vmatpush1.bf16.msra.mxu0 %v482
    %693 = vmatprep.subr.bf16.mxu0 0
    %694 = vmatpush1.bf16.msra.mxu0 0
    %695 = vmatprep.subr.bf16.mxu0 0
    %696 = vmatpush1.bf16.msra.mxu0 0
    %697 = vmatprep.subr.bf16.mxu0 0
    %698 = vmatpush1.bf16.msra.mxu0 0
    %699 = vmatprep.subr.bf16.mxu0 0
    %700 = vmatpush1.bf16.msra.mxu0 0
    %701 = vmatprep.subr.bf16.mxu0 0
    %702 = vmatpush1.bf16.msra.mxu0 0
    %703 = vmatprep.subr.bf16.mxu0 0
    %704 = vmatpush1.bf16.msra.mxu0 0
    %705 = vmatprep.subr.bf16.mxu0 0
    %706 = vmatpush1.bf16.msra.mxu0 0
    %707 = vmatprep.subr.bf16.mxu0 0
    %708 = vmatpush1.bf16.msra.mxu0 0
    %709 = vmatprep.mubr.bf16.mxu0 0
    %710 = vmatmul.mubr.bf16.gmra.mrb[0].mxu0 %v226
    %v711 = vpop.f32.mrb[0].mxu0
    %v712 = vadd.f32 %v209, %v711
    %v713 = vpop.f32.mrb[0].mxu0
    %v714 = vadd.f32 %v213, %v713
    %v715 = vpop.f32.mrb[0].mxu0
    %v716 = vadd.f32 %v209, %v715
    %v717 = vpop.f32.mrb[0].mxu0
    %v718 = vadd.f32 %v213, %v717
    %719 = vdwg.mxu0
    %v720 = vmax.f32 %v583, 0.0
    %v721 = vmax.f32 %v585, 0.0
    %v722 = vmax.f32 %v626, 0.0
    %v723 = vmax.f32 %v628, 0.0
    %v724 = vmax.f32 %v669, 0.0
    %v725 = vmax.f32 %v671, 0.0
    %v726 = vmax.f32 %v712, 0.0
    %v727 = vmax.f32 %v714, 0.0
    %v728 = vmax.f32 %v587, 0.0
    %v729 = vmax.f32 %v589, 0.0
    %v730 = vmax.f32 %v630, 0.0
    %v731 = vmax.f32 %v632, 0.0
    %v732 = vmax.f32 %v673, 0.0
    %v733 = vmax.f32 %v675, 0.0
    %v734 = vmax.f32 %v716, 0.0
    %v735 = vmax.f32 %v718, 0.0
    %v736 = vpack.c.bf16 %v728, %v720
    %v737 = vpack.c.bf16 %v729, %v721
    %v738 = vpack.c.bf16 %v730, %v722
    %v739 = vpack.c.bf16 %v731, %v723
    %v740 = vpack.c.bf16 %v732, %v724
    %v741 = vpack.c.bf16 %v733, %v725
    %v742 = vpack.c.bf16 %v734, %v726
    %v743 = vpack.c.bf16 %v735, %v727
    %v744 = vld [vmem:[#allocation8] sm:$0xff]
    %v745 = vld [vmem:[#allocation8 + $0x8] sm:$0xff]
    %v746 = vld [vmem:[#allocation8 + $0x10] sm:$0xff]
    %v747 = vld [vmem:[#allocation8 + $0x18] sm:$0xff]
    %v748 = vld [vmem:[#allocation8 + $0x20] sm:$0xff]
    %v749 = vld [vmem:[#allocation8 + $0x28] sm:$0xff]
    %v750 = vld [vmem:[#allocation8 + $0x30] sm:$0xff]
    %v751 = vld [vmem:[#allocation8 + $0x38] sm:$0xff]
    %v752 = vld [vmem:[#allocation8 + $0x40] sm:$0xff]
    %v753 = vld [vmem:[#allocation8 + $0x48] sm:$0xff]
    %v754 = vld [vmem:[#allocation8 + $0x50] sm:$0xff]
    %v755 = vld [vmem:[#allocation8 + $0x58] sm:$0xff]
    %v756 = vld [vmem:[#allocation8 + $0x60] sm:$0xff]
    %v757 = vld [vmem:[#allocation8 + $0x68] sm:$0xff]
    %v758 = vld [vmem:[#allocation8 + $0x70] sm:$0xff]
    %v759 = vld [vmem:[#allocation8 + $0x78] sm:$0xff]
    %v760 = vld [vmem:[#allocation8 + $0x80] sm:$0xff]
    %v761 = vld [vmem:[#allocation8 + $0x88] sm:$0xff]
    %v762 = vld [vmem:[#allocation8 + $0x90] sm:$0xff]
    %v763 = vld [vmem:[#allocation8 + $0x98] sm:$0xff]
    %v764 = vld [vmem:[#allocation8 + $0xa0] sm:$0xff]
    %v765 = vld [vmem:[#allocation8 + $0xa8] sm:$0xff]
    %v766 = vld [vmem:[#allocation8 + $0xb0] sm:$0xff]
    %v767 = vld [vmem:[#allocation8 + $0xb8] sm:$0xff]
    %v768 = vld [vmem:[#allocation8 + $0xc0] sm:$0xff]
    %v769 = vld [vmem:[#allocation8 + $0xc8] sm:$0xff]
    %v770 = vld [vmem:[#allocation8 + $0xd0] sm:$0xff]
    %v771 = vld [vmem:[#allocation8 + $0xd8] sm:$0xff]
    %v772 = vld [vmem:[#allocation8 + $0xe0] sm:$0xff]
    %v773 = vld [vmem:[#allocation8 + $0xe8] sm:$0xff]
    %v774 = vld [vmem:[#allocation8 + $0xf0] sm:$0xff]
    %v775 = vld [vmem:[#allocation8 + $0xf8] sm:$0xff]
    %v776 = vld [vmem:[#allocation8 + $0x100] sm:$0xff]
    %v777 = vld [vmem:[#allocation8 + $0x108] sm:$0xff]
    %v778 = vld [vmem:[#allocation8 + $0x110] sm:$0xff]
    %v779 = vld [vmem:[#allocation8 + $0x118] sm:$0xff]
    %v780 = vld [vmem:[#allocation8 + $0x120] sm:$0xff]
    %v781 = vld [vmem:[#allocation8 + $0x128] sm:$0xff]
    %v782 = vld [vmem:[#allocation8 + $0x130] sm:$0xff]
    %v783 = vld [vmem:[#allocation8 + $0x138] sm:$0xff]
    %v784 = vld [vmem:[#allocation8 + $0x140] sm:$0xff]
    %v785 = vld [vmem:[#allocation8 + $0x148] sm:$0xff]
    %v786 = vld [vmem:[#allocation8 + $0x150] sm:$0xff]
    %v787 = vld [vmem:[#allocation8 + $0x158] sm:$0xff]
    %v788 = vld [vmem:[#allocation8 + $0x160] sm:$0xff]
    %v789 = vld [vmem:[#allocation8 + $0x168] sm:$0xff]
    %v790 = vld [vmem:[#allocation8 + $0x170] sm:$0xff]
    %v791 = vld [vmem:[#allocation8 + $0x178] sm:$0xff]
    %v792 = vld [vmem:[#allocation8 + $0x180] sm:$0xff]
    %v793 = vld [vmem:[#allocation8 + $0x188] sm:$0xff]
    %v794 = vld [vmem:[#allocation8 + $0x190] sm:$0xff]
    %v795 = vld [vmem:[#allocation8 + $0x198] sm:$0xff]
    %v796 = vld [vmem:[#allocation8 + $0x1a0] sm:$0xff]
    %v797 = vld [vmem:[#allocation8 + $0x1a8] sm:$0xff]
    %v798 = vld [vmem:[#allocation8 + $0x1b0] sm:$0xff]
    %v799 = vld [vmem:[#allocation8 + $0x1b8] sm:$0xff]
    %v800 = vld [vmem:[#allocation8 + $0x1c0] sm:$0xff]
    %v801 = vld [vmem:[#allocation8 + $0x1c8] sm:$0xff]
    %v802 = vld [vmem:[#allocation8 + $0x1d0] sm:$0xff]
    %v803 = vld [vmem:[#allocation8 + $0x1d8] sm:$0xff]
    %v804 = vld [vmem:[#allocation8 + $0x1e0] sm:$0xff]
    %v805 = vld [vmem:[#allocation8 + $0x1e8] sm:$0xff]
    %v806 = vld [vmem:[#allocation8 + $0x1f0] sm:$0xff]
    %v807 = vld [vmem:[#allocation8 + $0x1f8] sm:$0xff]
    %v808 = vld [vmem:[#allocation8 + $0x200] sm:$0xff]
    %v809 = vld [vmem:[#allocation8 + $0x208] sm:$0xff]
    %v810 = vld [vmem:[#allocation8 + $0x210] sm:$0xff]
    %v811 = vld [vmem:[#allocation8 + $0x218] sm:$0xff]
    %v812 = vld [vmem:[#allocation8 + $0x220] sm:$0xff]
    %v813 = vld [vmem:[#allocation8 + $0x228] sm:$0xff]
    %v814 = vld [vmem:[#allocation8 + $0x230] sm:$0xff]
    %v815 = vld [vmem:[#allocation8 + $0x238] sm:$0xff]
    %v816 = vld [vmem:[#allocation8 + $0x240] sm:$0xff]
    %v817 = vld [vmem:[#allocation8 + $0x248] sm:$0xff]
    %v818 = vld [vmem:[#allocation8 + $0x250] sm:$0xff]
    %v819 = vld [vmem:[#allocation8 + $0x258] sm:$0xff]
    %v820 = vld [vmem:[#allocation8 + $0x260] sm:$0xff]
    %v821 = vld [vmem:[#allocation8 + $0x268] sm:$0xff]
    %v822 = vld [vmem:[#allocation8 + $0x270] sm:$0xff]
    %v823 = vld [vmem:[#allocation8 + $0x278] sm:$0xff]
    %v824 = vld [vmem:[#allocation8 + $0x280] sm:$0xff]
    %v825 = vld [vmem:[#allocation8 + $0x288] sm:$0xff]
    %v826 = vld [vmem:[#allocation8 + $0x290] sm:$0xff]
    %v827 = vld [vmem:[#allocation8 + $0x298] sm:$0xff]
    %v828 = vld [vmem:[#allocation8 + $0x2a0] sm:$0xff]
    %v829 = vld [vmem:[#allocation8 + $0x2a8] sm:$0xff]
    %v830 = vld [vmem:[#allocation8 + $0x2b0] sm:$0xff]
    %v831 = vld [vmem:[#allocation8 + $0x2b8] sm:$0xff]
    %v832 = vld [vmem:[#allocation8 + $0x2c0] sm:$0xff]
    %v833 = vld [vmem:[#allocation8 + $0x2c8] sm:$0xff]
    %v834 = vld [vmem:[#allocation8 + $0x2d0] sm:$0xff]
    %v835 = vld [vmem:[#allocation8 + $0x2d8] sm:$0xff]
    %v836 = vld [vmem:[#allocation8 + $0x2e0] sm:$0xff]
    %v837 = vld [vmem:[#allocation8 + $0x2e8] sm:$0xff]
    %v838 = vld [vmem:[#allocation8 + $0x2f0] sm:$0xff]
    %v839 = vld [vmem:[#allocation8 + $0x2f8] sm:$0xff]
    %v840 = vld [vmem:[#allocation8 + $0x300] sm:$0xff]
    %v841 = vld [vmem:[#allocation8 + $0x308] sm:$0xff]
    %v842 = vld [vmem:[#allocation8 + $0x310] sm:$0xff]
    %v843 = vld [vmem:[#allocation8 + $0x318] sm:$0xff]
    %v844 = vld [vmem:[#allocation8 + $0x320] sm:$0xff]
    %v845 = vld [vmem:[#allocation8 + $0x328] sm:$0xff]
    %v846 = vld [vmem:[#allocation8 + $0x330] sm:$0xff]
    %v847 = vld [vmem:[#allocation8 + $0x338] sm:$0xff]
    %v848 = vld [vmem:[#allocation8 + $0x340] sm:$0xff]
    %v849 = vld [vmem:[#allocation8 + $0x348] sm:$0xff]
    %v850 = vld [vmem:[#allocation8 + $0x350] sm:$0xff]
    %v851 = vld [vmem:[#allocation8 + $0x358] sm:$0xff]
    %v852 = vld [vmem:[#allocation8 + $0x360] sm:$0xff]
    %v853 = vld [vmem:[#allocation8 + $0x368] sm:$0xff]
    %v854 = vld [vmem:[#allocation8 + $0x370] sm:$0xff]
    %v855 = vld [vmem:[#allocation8 + $0x378] sm:$0xff]
    %v856 = vld [vmem:[#allocation8 + $0x380] sm:$0xff]
    %v857 = vld [vmem:[#allocation8 + $0x388] sm:$0xff]
    %v858 = vld [vmem:[#allocation8 + $0x390] sm:$0xff]
    %v859 = vld [vmem:[#allocation8 + $0x398] sm:$0xff]
    %v860 = vld [vmem:[#allocation8 + $0x3a0] sm:$0xff]
    %v861 = vld [vmem:[#allocation8 + $0x3a8] sm:$0xff]
    %v862 = vld [vmem:[#allocation8 + $0x3b0] sm:$0xff]
    %v863 = vld [vmem:[#allocation8 + $0x3b8] sm:$0xff]
    %v864 = vld [vmem:[#allocation8 + $0x3c0] sm:$0xff]
    %v865 = vld [vmem:[#allocation8 + $0x3c8] sm:$0xff]
    %v866 = vld [vmem:[#allocation8 + $0x3d0] sm:$0xff]
    %v867 = vld [vmem:[#allocation8 + $0x3d8] sm:$0xff]
    %v868 = vld [vmem:[#allocation8 + $0x3e0] sm:$0xff]
    %v869 = vld [vmem:[#allocation8 + $0x3e8] sm:$0xff]
    %v870 = vld [vmem:[#allocation8 + $0x3f0] sm:$0xff]
    %v871 = vld [vmem:[#allocation8 + $0x3f8] sm:$0xff]
    %v872 = vld [vmem:[#allocation8 + $0x400] sm:$0xff]
    %v873 = vld [vmem:[#allocation8 + $0x408] sm:$0xff]
    %v874 = vld [vmem:[#allocation8 + $0x410] sm:$0xff]
    %v875 = vld [vmem:[#allocation8 + $0x418] sm:$0xff]
    %v876 = vld [vmem:[#allocation8 + $0x420] sm:$0xff]
    %v877 = vld [vmem:[#allocation8 + $0x428] sm:$0xff]
    %v878 = vld [vmem:[#allocation8 + $0x430] sm:$0xff]
    %v879 = vld [vmem:[#allocation8 + $0x438] sm:$0xff]
    %v880 = vld [vmem:[#allocation8 + $0x440] sm:$0xff]
    %v881 = vld [vmem:[#allocation8 + $0x448] sm:$0xff]
    %v882 = vld [vmem:[#allocation8 + $0x450] sm:$0xff]
    %v883 = vld [vmem:[#allocation8 + $0x458] sm:$0xff]
    %v884 = vld [vmem:[#allocation8 + $0x460] sm:$0xff]
    %v885 = vld [vmem:[#allocation8 + $0x468] sm:$0xff]
    %v886 = vld [vmem:[#allocation8 + $0x470] sm:$0xff]
    %v887 = vld [vmem:[#allocation8 + $0x478] sm:$0xff]
    %v888 = vld [vmem:[#allocation8 + $0x480] sm:$0xff]
    %v889 = vld [vmem:[#allocation8 + $0x488] sm:$0xff]
    %v890 = vld [vmem:[#allocation8 + $0x490] sm:$0xff]
    %v891 = vld [vmem:[#allocation8 + $0x498] sm:$0xff]
    %v892 = vld [vmem:[#allocation8 + $0x4a0] sm:$0xff]
    %v893 = vld [vmem:[#allocation8 + $0x4a8] sm:$0xff]
    %v894 = vld [vmem:[#allocation8 + $0x4b0] sm:$0xff]
    %v895 = vld [vmem:[#allocation8 + $0x4b8] sm:$0xff]
    %v896 = vld [vmem:[#allocation8 + $0x4c0] sm:$0xff]
    %v897 = vld [vmem:[#allocation8 + $0x4c8] sm:$0xff]
    %v898 = vld [vmem:[#allocation8 + $0x4d0] sm:$0xff]
    %v899 = vld [vmem:[#allocation8 + $0x4d8] sm:$0xff]
    %v900 = vld [vmem:[#allocation8 + $0x4e0] sm:$0xff]
    %v901 = vld [vmem:[#allocation8 + $0x4e8] sm:$0xff]
    %v902 = vld [vmem:[#allocation8 + $0x4f0] sm:$0xff]
    %v903 = vld [vmem:[#allocation8 + $0x4f8] sm:$0xff]
    %v904 = vld [vmem:[#allocation8 + $0x500] sm:$0xff]
    %v905 = vld [vmem:[#allocation8 + $0x508] sm:$0xff]
    %v906 = vld [vmem:[#allocation8 + $0x510] sm:$0xff]
    %v907 = vld [vmem:[#allocation8 + $0x518] sm:$0xff]
    %v908 = vld [vmem:[#allocation8 + $0x520] sm:$0xff]
    %v909 = vld [vmem:[#allocation8 + $0x528] sm:$0xff]
    %v910 = vld [vmem:[#allocation8 + $0x530] sm:$0xff]
    %v911 = vld [vmem:[#allocation8 + $0x538] sm:$0xff]
    %v912 = vld [vmem:[#allocation8 + $0x540] sm:$0xff]
    %v913 = vld [vmem:[#allocation8 + $0x548] sm:$0xff]
    %v914 = vld [vmem:[#allocation8 + $0x550] sm:$0xff]
    %v915 = vld [vmem:[#allocation8 + $0x558] sm:$0xff]
    %v916 = vld [vmem:[#allocation8 + $0x560] sm:$0xff]
    %v917 = vld [vmem:[#allocation8 + $0x568] sm:$0xff]
    %v918 = vld [vmem:[#allocation8 + $0x570] sm:$0xff]
    %v919 = vld [vmem:[#allocation8 + $0x578] sm:$0xff]
    %v920 = vld [vmem:[#allocation8 + $0x580] sm:$0xff]
    %v921 = vld [vmem:[#allocation8 + $0x588] sm:$0xff]
    %v922 = vld [vmem:[#allocation8 + $0x590] sm:$0xff]
    %v923 = vld [vmem:[#allocation8 + $0x598] sm:$0xff]
    %v924 = vld [vmem:[#allocation8 + $0x5a0] sm:$0xff]
    %v925 = vld [vmem:[#allocation8 + $0x5a8] sm:$0xff]
    %v926 = vld [vmem:[#allocation8 + $0x5b0] sm:$0xff]
    %v927 = vld [vmem:[#allocation8 + $0x5b8] sm:$0xff]
    %v928 = vld [vmem:[#allocation8 + $0x5c0] sm:$0xff]
    %v929 = vld [vmem:[#allocation8 + $0x5c8] sm:$0xff]
    %v930 = vld [vmem:[#allocation8 + $0x5d0] sm:$0xff]
    %v931 = vld [vmem:[#allocation8 + $0x5d8] sm:$0xff]
    %v932 = vld [vmem:[#allocation8 + $0x5e0] sm:$0xff]
    %v933 = vld [vmem:[#allocation8 + $0x5e8] sm:$0xff]
    %v934 = vld [vmem:[#allocation8 + $0x5f0] sm:$0xff]
    %v935 = vld [vmem:[#allocation8 + $0x5f8] sm:$0xff]
    %v936 = vld [vmem:[#allocation8 + $0x600] sm:$0xff]
    %v937 = vld [vmem:[#allocation8 + $0x608] sm:$0xff]
    %v938 = vld [vmem:[#allocation8 + $0x610] sm:$0xff]
    %v939 = vld [vmem:[#allocation8 + $0x618] sm:$0xff]
    %v940 = vld [vmem:[#allocation8 + $0x620] sm:$0xff]
    %v941 = vld [vmem:[#allocation8 + $0x628] sm:$0xff]
    %v942 = vld [vmem:[#allocation8 + $0x630] sm:$0xff]
    %v943 = vld [vmem:[#allocation8 + $0x638] sm:$0xff]
    %v944 = vld [vmem:[#allocation8 + $0x640] sm:$0xff]
    %v945 = vld [vmem:[#allocation8 + $0x648] sm:$0xff]
    %v946 = vld [vmem:[#allocation8 + $0x650] sm:$0xff]
    %v947 = vld [vmem:[#allocation8 + $0x658] sm:$0xff]
    %v948 = vld [vmem:[#allocation8 + $0x660] sm:$0xff]
    %v949 = vld [vmem:[#allocation8 + $0x668] sm:$0xff]
    %v950 = vld [vmem:[#allocation8 + $0x670] sm:$0xff]
    %v951 = vld [vmem:[#allocation8 + $0x678] sm:$0xff]
    %v952 = vld [vmem:[#allocation8 + $0x680] sm:$0xff]
    %v953 = vld [vmem:[#allocation8 + $0x688] sm:$0xff]
    %v954 = vld [vmem:[#allocation8 + $0x690] sm:$0xff]
    %v955 = vld [vmem:[#allocation8 + $0x698] sm:$0xff]
    %v956 = vld [vmem:[#allocation8 + $0x6a0] sm:$0xff]
    %v957 = vld [vmem:[#allocation8 + $0x6a8] sm:$0xff]
    %v958 = vld [vmem:[#allocation8 + $0x6b0] sm:$0xff]
    %v959 = vld [vmem:[#allocation8 + $0x6b8] sm:$0xff]
    %v960 = vld [vmem:[#allocation8 + $0x6c0] sm:$0xff]
    %v961 = vld [vmem:[#allocation8 + $0x6c8] sm:$0xff]
    %v962 = vld [vmem:[#allocation8 + $0x6d0] sm:$0xff]
    %v963 = vld [vmem:[#allocation8 + $0x6d8] sm:$0xff]
    %v964 = vld [vmem:[#allocation8 + $0x6e0] sm:$0xff]
    %v965 = vld [vmem:[#allocation8 + $0x6e8] sm:$0xff]
    %v966 = vld [vmem:[#allocation8 + $0x6f0] sm:$0xff]
    %v967 = vld [vmem:[#allocation8 + $0x6f8] sm:$0xff]
    %v968 = vld [vmem:[#allocation8 + $0x700] sm:$0xff]
    %v969 = vld [vmem:[#allocation8 + $0x708] sm:$0xff]
    %v970 = vld [vmem:[#allocation8 + $0x710] sm:$0xff]
    %v971 = vld [vmem:[#allocation8 + $0x718] sm:$0xff]
    %v972 = vld [vmem:[#allocation8 + $0x720] sm:$0xff]
    %v973 = vld [vmem:[#allocation8 + $0x728] sm:$0xff]
    %v974 = vld [vmem:[#allocation8 + $0x730] sm:$0xff]
    %v975 = vld [vmem:[#allocation8 + $0x738] sm:$0xff]
    %v976 = vld [vmem:[#allocation8 + $0x740] sm:$0xff]
    %v977 = vld [vmem:[#allocation8 + $0x748] sm:$0xff]
    %v978 = vld [vmem:[#allocation8 + $0x750] sm:$0xff]
    %v979 = vld [vmem:[#allocation8 + $0x758] sm:$0xff]
    %v980 = vld [vmem:[#allocation8 + $0x760] sm:$0xff]
    %v981 = vld [vmem:[#allocation8 + $0x768] sm:$0xff]
    %v982 = vld [vmem:[#allocation8 + $0x770] sm:$0xff]
    %v983 = vld [vmem:[#allocation8 + $0x778] sm:$0xff]
    %v984 = vld [vmem:[#allocation8 + $0x780] sm:$0xff]
    %v985 = vld [vmem:[#allocation8 + $0x788] sm:$0xff]
    %v986 = vld [vmem:[#allocation8 + $0x790] sm:$0xff]
    %v987 = vld [vmem:[#allocation8 + $0x798] sm:$0xff]
    %v988 = vld [vmem:[#allocation8 + $0x7a0] sm:$0xff]
    %v989 = vld [vmem:[#allocation8 + $0x7a8] sm:$0xff]
    %v990 = vld [vmem:[#allocation8 + $0x7b0] sm:$0xff]
    %v991 = vld [vmem:[#allocation8 + $0x7b8] sm:$0xff]
    %v992 = vld [vmem:[#allocation8 + $0x7c0] sm:$0xff]
    %v993 = vld [vmem:[#allocation8 + $0x7c8] sm:$0xff]
    %v994 = vld [vmem:[#allocation8 + $0x7d0] sm:$0xff]
    %v995 = vld [vmem:[#allocation8 + $0x7d8] sm:$0xff]
    %v996 = vld [vmem:[#allocation8 + $0x7e0] sm:$0xff]
    %v997 = vld [vmem:[#allocation8 + $0x7e8] sm:$0xff]
    %v998 = vld [vmem:[#allocation8 + $0x7f0] sm:$0xff]
    %v999 = vld [vmem:[#allocation8 + $0x7f8] sm:$0xff]
    %v1000 = vld [vmem:[%s4] sm:$0xf]
    %v1002 = vlaneseq
    %v1003 = vshrl.u32 %v1002, 7
    %v1004 = vsub.s32 0, %v1003
    %v1005 = vrot.slane %v1000, %v1004
    %v1006 = vlaneseq
    %v1007 = vshrl.u32 %v1006, 7
    %v1008 = vsub.s32 1, %v1007
    %v1009 = vrot.slane %v1000, %v1008
    %v1010 = vlaneseq
    %v1011 = vshrl.u32 %v1010, 7
    %v1012 = vsub.s32 2, %v1011
    %v1013 = vrot.slane %v1000, %v1012
    %v1014 = vlaneseq
    %v1015 = vshrl.u32 %v1014, 7
    %v1016 = vsub.s32 3, %v1015
    %v1017 = vrot.slane %v1000, %v1016
    %v1278 = vunpack.c.l.b16 %v744
    %v1279 = vunpack.c.h.b16 %v744
    %v1280 = vunpack.c.l.b16 %v745
    %v1281 = vunpack.c.h.b16 %v745
    %v1282 = vunpack.c.l.b16 %v746
    %v1283 = vunpack.c.h.b16 %v746
    %v1284 = vunpack.c.l.b16 %v747
    %v1285 = vunpack.c.h.b16 %v747
    %v1286 = vunpack.c.l.b16 %v748
    %v1287 = vunpack.c.h.b16 %v748
    %v1288 = vunpack.c.l.b16 %v749
    %v1289 = vunpack.c.h.b16 %v749
    %v1290 = vunpack.c.l.b16 %v750
    %v1291 = vunpack.c.h.b16 %v750
    %v1292 = vunpack.c.l.b16 %v751
    %v1293 = vunpack.c.h.b16 %v751
    %v1294 = vunpack.c.l.b16 %v752
    %v1295 = vunpack.c.h.b16 %v752
    %v1296 = vunpack.c.l.b16 %v753
    %v1297 = vunpack.c.h.b16 %v753
    %v1298 = vunpack.c.l.b16 %v754
    %v1299 = vunpack.c.h.b16 %v754
    %v1300 = vunpack.c.l.b16 %v755
    %v1301 = vunpack.c.h.b16 %v755
    %v1302 = vunpack.c.l.b16 %v756
    %v1303 = vunpack.c.h.b16 %v756
    %v1304 = vunpack.c.l.b16 %v757
    %v1305 = vunpack.c.h.b16 %v757
    %v1306 = vunpack.c.l.b16 %v758
    %v1307 = vunpack.c.h.b16 %v758
    %v1308 = vunpack.c.l.b16 %v759
    %v1309 = vunpack.c.h.b16 %v759
    %v1310 = vunpack.c.l.b16 %v760
    %v1311 = vunpack.c.h.b16 %v760
    %v1312 = vunpack.c.l.b16 %v761
    %v1313 = vunpack.c.h.b16 %v761
    %v1314 = vunpack.c.l.b16 %v762
    %v1315 = vunpack.c.h.b16 %v762
    %v1316 = vunpack.c.l.b16 %v763
    %v1317 = vunpack.c.h.b16 %v763
    %v1318 = vunpack.c.l.b16 %v764
    %v1319 = vunpack.c.h.b16 %v764
    %v1320 = vunpack.c.l.b16 %v765
    %v1321 = vunpack.c.h.b16 %v765
    %v1322 = vunpack.c.l.b16 %v766
    %v1323 = vunpack.c.h.b16 %v766
    %v1324 = vunpack.c.l.b16 %v767
    %v1325 = vunpack.c.h.b16 %v767
    %v1326 = vunpack.c.l.b16 %v768
    %v1327 = vunpack.c.h.b16 %v768
    %v1328 = vunpack.c.l.b16 %v769
    %v1329 = vunpack.c.h.b16 %v769
    %v1330 = vunpack.c.l.b16 %v770
    %v1331 = vunpack.c.h.b16 %v770
    %v1332 = vunpack.c.l.b16 %v771
    %v1333 = vunpack.c.h.b16 %v771
    %v1334 = vunpack.c.l.b16 %v772
    %v1335 = vunpack.c.h.b16 %v772
    %v1336 = vunpack.c.l.b16 %v773
    %v1337 = vunpack.c.h.b16 %v773
    %v1338 = vunpack.c.l.b16 %v774
    %v1339 = vunpack.c.h.b16 %v774
    %v1340 = vunpack.c.l.b16 %v775
    %v1341 = vunpack.c.h.b16 %v775
    %v1342 = vunpack.c.l.b16 %v776
    %v1343 = vunpack.c.h.b16 %v776
    %v1344 = vunpack.c.l.b16 %v777
    %v1345 = vunpack.c.h.b16 %v777
    %v1346 = vunpack.c.l.b16 %v778
    %v1347 = vunpack.c.h.b16 %v778
    %v1348 = vunpack.c.l.b16 %v779
    %v1349 = vunpack.c.h.b16 %v779
    %v1350 = vunpack.c.l.b16 %v780
    %v1351 = vunpack.c.h.b16 %v780
    %v1352 = vunpack.c.l.b16 %v781
    %v1353 = vunpack.c.h.b16 %v781
    %v1354 = vunpack.c.l.b16 %v782
    %v1355 = vunpack.c.h.b16 %v782
    %v1356 = vunpack.c.l.b16 %v783
    %v1357 = vunpack.c.h.b16 %v783
    %v1358 = vunpack.c.l.b16 %v784
    %v1359 = vunpack.c.h.b16 %v784
    %v1360 = vunpack.c.l.b16 %v785
    %v1361 = vunpack.c.h.b16 %v785
    %v1362 = vunpack.c.l.b16 %v786
    %v1363 = vunpack.c.h.b16 %v786
    %v1364 = vunpack.c.l.b16 %v787
    %v1365 = vunpack.c.h.b16 %v787
    %v1366 = vunpack.c.l.b16 %v788
    %v1367 = vunpack.c.h.b16 %v788
    %v1368 = vunpack.c.l.b16 %v789
    %v1369 = vunpack.c.h.b16 %v789
    %v1370 = vunpack.c.l.b16 %v790
    %v1371 = vunpack.c.h.b16 %v790
    %v1372 = vunpack.c.l.b16 %v791
    %v1373 = vunpack.c.h.b16 %v791
    %v1374 = vunpack.c.l.b16 %v792
    %v1375 = vunpack.c.h.b16 %v792
    %v1376 = vunpack.c.l.b16 %v793
    %v1377 = vunpack.c.h.b16 %v793
    %v1378 = vunpack.c.l.b16 %v794
    %v1379 = vunpack.c.h.b16 %v794
    %v1380 = vunpack.c.l.b16 %v795
    %v1381 = vunpack.c.h.b16 %v795
    %v1382 = vunpack.c.l.b16 %v796
    %v1383 = vunpack.c.h.b16 %v796
    %v1384 = vunpack.c.l.b16 %v797
    %v1385 = vunpack.c.h.b16 %v797
    %v1386 = vunpack.c.l.b16 %v798
    %v1387 = vunpack.c.h.b16 %v798
    %v1388 = vunpack.c.l.b16 %v799
    %v1389 = vunpack.c.h.b16 %v799
    %v1390 = vunpack.c.l.b16 %v800
    %v1391 = vunpack.c.h.b16 %v800
    %v1392 = vunpack.c.l.b16 %v801
    %v1393 = vunpack.c.h.b16 %v801
    %v1394 = vunpack.c.l.b16 %v802
    %v1395 = vunpack.c.h.b16 %v802
    %v1396 = vunpack.c.l.b16 %v803
    %v1397 = vunpack.c.h.b16 %v803
    %v1398 = vunpack.c.l.b16 %v804
    %v1399 = vunpack.c.h.b16 %v804
    %v1400 = vunpack.c.l.b16 %v805
    %v1401 = vunpack.c.h.b16 %v805
    %v1402 = vunpack.c.l.b16 %v806
    %v1403 = vunpack.c.h.b16 %v806
    %v1404 = vunpack.c.l.b16 %v807
    %v1405 = vunpack.c.h.b16 %v807
    %v1406 = vunpack.c.l.b16 %v808
    %v1407 = vunpack.c.h.b16 %v808
    %v1408 = vunpack.c.l.b16 %v809
    %v1409 = vunpack.c.h.b16 %v809
    %v1410 = vunpack.c.l.b16 %v810
    %v1411 = vunpack.c.h.b16 %v810
    %v1412 = vunpack.c.l.b16 %v811
    %v1413 = vunpack.c.h.b16 %v811
    %v1414 = vunpack.c.l.b16 %v812
    %v1415 = vunpack.c.h.b16 %v812
    %v1416 = vunpack.c.l.b16 %v813
    %v1417 = vunpack.c.h.b16 %v813
    %v1418 = vunpack.c.l.b16 %v814
    %v1419 = vunpack.c.h.b16 %v814
    %v1420 = vunpack.c.l.b16 %v815
    %v1421 = vunpack.c.h.b16 %v815
    %v1422 = vunpack.c.l.b16 %v816
    %v1423 = vunpack.c.h.b16 %v816
    %v1424 = vunpack.c.l.b16 %v817
    %v1425 = vunpack.c.h.b16 %v817
    %v1426 = vunpack.c.l.b16 %v818
    %v1427 = vunpack.c.h.b16 %v818
    %v1428 = vunpack.c.l.b16 %v819
    %v1429 = vunpack.c.h.b16 %v819
    %v1430 = vunpack.c.l.b16 %v820
    %v1431 = vunpack.c.h.b16 %v820
    %v1432 = vunpack.c.l.b16 %v821
    %v1433 = vunpack.c.h.b16 %v821
    %v1434 = vunpack.c.l.b16 %v822
    %v1435 = vunpack.c.h.b16 %v822
    %v1436 = vunpack.c.l.b16 %v823
    %v1437 = vunpack.c.h.b16 %v823
    %v1438 = vunpack.c.l.b16 %v824
    %v1439 = vunpack.c.h.b16 %v824
    %v1440 = vunpack.c.l.b16 %v825
    %v1441 = vunpack.c.h.b16 %v825
    %v1442 = vunpack.c.l.b16 %v826
    %v1443 = vunpack.c.h.b16 %v826
    %v1444 = vunpack.c.l.b16 %v827
    %v1445 = vunpack.c.h.b16 %v827
    %v1446 = vunpack.c.l.b16 %v828
    %v1447 = vunpack.c.h.b16 %v828
    %v1448 = vunpack.c.l.b16 %v829
    %v1449 = vunpack.c.h.b16 %v829
    %v1450 = vunpack.c.l.b16 %v830
    %v1451 = vunpack.c.h.b16 %v830
    %v1452 = vunpack.c.l.b16 %v831
    %v1453 = vunpack.c.h.b16 %v831
    %v1454 = vunpack.c.l.b16 %v832
    %v1455 = vunpack.c.h.b16 %v832
    %v1456 = vunpack.c.l.b16 %v833
    %v1457 = vunpack.c.h.b16 %v833
    %v1458 = vunpack.c.l.b16 %v834
    %v1459 = vunpack.c.h.b16 %v834
    %v1460 = vunpack.c.l.b16 %v835
    %v1461 = vunpack.c.h.b16 %v835
    %v1462 = vunpack.c.l.b16 %v836
    %v1463 = vunpack.c.h.b16 %v836
    %v1464 = vunpack.c.l.b16 %v837
    %v1465 = vunpack.c.h.b16 %v837
    %v1466 = vunpack.c.l.b16 %v838
    %v1467 = vunpack.c.h.b16 %v838
    %v1468 = vunpack.c.l.b16 %v839
    %v1469 = vunpack.c.h.b16 %v839
    %v1470 = vunpack.c.l.b16 %v840
    %v1471 = vunpack.c.h.b16 %v840
    %v1472 = vunpack.c.l.b16 %v841
    %v1473 = vunpack.c.h.b16 %v841
    %v1474 = vunpack.c.l.b16 %v842
    %v1475 = vunpack.c.h.b16 %v842
    %v1476 = vunpack.c.l.b16 %v843
    %v1477 = vunpack.c.h.b16 %v843
    %v1478 = vunpack.c.l.b16 %v844
    %v1479 = vunpack.c.h.b16 %v844
    %v1480 = vunpack.c.l.b16 %v845
    %v1481 = vunpack.c.h.b16 %v845
    %v1482 = vunpack.c.l.b16 %v846
    %v1483 = vunpack.c.h.b16 %v846
    %v1484 = vunpack.c.l.b16 %v847
    %v1485 = vunpack.c.h.b16 %v847
    %v1486 = vunpack.c.l.b16 %v848
    %v1487 = vunpack.c.h.b16 %v848
    %v1488 = vunpack.c.l.b16 %v849
    %v1489 = vunpack.c.h.b16 %v849
    %v1490 = vunpack.c.l.b16 %v850
    %v1491 = vunpack.c.h.b16 %v850
    %v1492 = vunpack.c.l.b16 %v851
    %v1493 = vunpack.c.h.b16 %v851
    %v1494 = vunpack.c.l.b16 %v852
    %v1495 = vunpack.c.h.b16 %v852
    %v1496 = vunpack.c.l.b16 %v853
    %v1497 = vunpack.c.h.b16 %v853
    %v1498 = vunpack.c.l.b16 %v854
    %v1499 = vunpack.c.h.b16 %v854
    %v1500 = vunpack.c.l.b16 %v855
    %v1501 = vunpack.c.h.b16 %v855
    %v1502 = vunpack.c.l.b16 %v856
    %v1503 = vunpack.c.h.b16 %v856
    %v1504 = vunpack.c.l.b16 %v857
    %v1505 = vunpack.c.h.b16 %v857
    %v1506 = vunpack.c.l.b16 %v858
    %v1507 = vunpack.c.h.b16 %v858
    %v1508 = vunpack.c.l.b16 %v859
    %v1509 = vunpack.c.h.b16 %v859
    %v1510 = vunpack.c.l.b16 %v860
    %v1511 = vunpack.c.h.b16 %v860
    %v1512 = vunpack.c.l.b16 %v861
    %v1513 = vunpack.c.h.b16 %v861
    %v1514 = vunpack.c.l.b16 %v862
    %v1515 = vunpack.c.h.b16 %v862
    %v1516 = vunpack.c.l.b16 %v863
    %v1517 = vunpack.c.h.b16 %v863
    %v1518 = vunpack.c.l.b16 %v864
    %v1519 = vunpack.c.h.b16 %v864
    %v1520 = vunpack.c.l.b16 %v865
    %v1521 = vunpack.c.h.b16 %v865
    %v1522 = vunpack.c.l.b16 %v866
    %v1523 = vunpack.c.h.b16 %v866
    %v1524 = vunpack.c.l.b16 %v867
    %v1525 = vunpack.c.h.b16 %v867
    %v1526 = vunpack.c.l.b16 %v868
    %v1527 = vunpack.c.h.b16 %v868
    %v1528 = vunpack.c.l.b16 %v869
    %v1529 = vunpack.c.h.b16 %v869
    %v1530 = vunpack.c.l.b16 %v870
    %v1531 = vunpack.c.h.b16 %v870
    %v1532 = vunpack.c.l.b16 %v871
    %v1533 = vunpack.c.h.b16 %v871
    %v1534 = vunpack.c.l.b16 %v872
    %v1535 = vunpack.c.h.b16 %v872
    %v1536 = vunpack.c.l.b16 %v873
    %v1537 = vunpack.c.h.b16 %v873
    %v1538 = vunpack.c.l.b16 %v874
    %v1539 = vunpack.c.h.b16 %v874
    %v1540 = vunpack.c.l.b16 %v875
    %v1541 = vunpack.c.h.b16 %v875
    %v1542 = vunpack.c.l.b16 %v876
    %v1543 = vunpack.c.h.b16 %v876
    %v1544 = vunpack.c.l.b16 %v877
    %v1545 = vunpack.c.h.b16 %v877
    %v1546 = vunpack.c.l.b16 %v878
    %v1547 = vunpack.c.h.b16 %v878
    %v1548 = vunpack.c.l.b16 %v879
    %v1549 = vunpack.c.h.b16 %v879
    %v1550 = vunpack.c.l.b16 %v880
    %v1551 = vunpack.c.h.b16 %v880
    %v1552 = vunpack.c.l.b16 %v881
    %v1553 = vunpack.c.h.b16 %v881
    %v1554 = vunpack.c.l.b16 %v882
    %v1555 = vunpack.c.h.b16 %v882
    %v1556 = vunpack.c.l.b16 %v883
    %v1557 = vunpack.c.h.b16 %v883
    %v1558 = vunpack.c.l.b16 %v884
    %v1559 = vunpack.c.h.b16 %v884
    %v1560 = vunpack.c.l.b16 %v885
    %v1561 = vunpack.c.h.b16 %v885
    %v1562 = vunpack.c.l.b16 %v886
    %v1563 = vunpack.c.h.b16 %v886
    %v1564 = vunpack.c.l.b16 %v887
    %v1565 = vunpack.c.h.b16 %v887
    %v1566 = vunpack.c.l.b16 %v888
    %v1567 = vunpack.c.h.b16 %v888
    %v1568 = vunpack.c.l.b16 %v889
    %v1569 = vunpack.c.h.b16 %v889
    %v1570 = vunpack.c.l.b16 %v890
    %v1571 = vunpack.c.h.b16 %v890
    %v1572 = vunpack.c.l.b16 %v891
    %v1573 = vunpack.c.h.b16 %v891
    %v1574 = vunpack.c.l.b16 %v892
    %v1575 = vunpack.c.h.b16 %v892
    %v1576 = vunpack.c.l.b16 %v893
    %v1577 = vunpack.c.h.b16 %v893
    %v1578 = vunpack.c.l.b16 %v894
    %v1579 = vunpack.c.h.b16 %v894
    %v1580 = vunpack.c.l.b16 %v895
    %v1581 = vunpack.c.h.b16 %v895
    %v1582 = vunpack.c.l.b16 %v896
    %v1583 = vunpack.c.h.b16 %v896
    %v1584 = vunpack.c.l.b16 %v897
    %v1585 = vunpack.c.h.b16 %v897
    %v1586 = vunpack.c.l.b16 %v898
    %v1587 = vunpack.c.h.b16 %v898
    %v1588 = vunpack.c.l.b16 %v899
    %v1589 = vunpack.c.h.b16 %v899
    %v1590 = vunpack.c.l.b16 %v900
    %v1591 = vunpack.c.h.b16 %v900
    %v1592 = vunpack.c.l.b16 %v901
    %v1593 = vunpack.c.h.b16 %v901
    %v1594 = vunpack.c.l.b16 %v902
    %v1595 = vunpack.c.h.b16 %v902
    %v1596 = vunpack.c.l.b16 %v903
    %v1597 = vunpack.c.h.b16 %v903
    %v1598 = vunpack.c.l.b16 %v904
    %v1599 = vunpack.c.h.b16 %v904
    %v1600 = vunpack.c.l.b16 %v905
    %v1601 = vunpack.c.h.b16 %v905
    %v1602 = vunpack.c.l.b16 %v906
    %v1603 = vunpack.c.h.b16 %v906
    %v1604 = vunpack.c.l.b16 %v907
    %v1605 = vunpack.c.h.b16 %v907
    %v1606 = vunpack.c.l.b16 %v908
    %v1607 = vunpack.c.h.b16 %v908
    %v1608 = vunpack.c.l.b16 %v909
    %v1609 = vunpack.c.h.b16 %v909
    %v1610 = vunpack.c.l.b16 %v910
    %v1611 = vunpack.c.h.b16 %v910
    %v1612 = vunpack.c.l.b16 %v911
    %v1613 = vunpack.c.h.b16 %v911
    %v1614 = vunpack.c.l.b16 %v912
    %v1615 = vunpack.c.h.b16 %v912
    %v1616 = vunpack.c.l.b16 %v913
    %v1617 = vunpack.c.h.b16 %v913
    %v1618 = vunpack.c.l.b16 %v914
    %v1619 = vunpack.c.h.b16 %v914
    %v1620 = vunpack.c.l.b16 %v915
    %v1621 = vunpack.c.h.b16 %v915
    %v1622 = vunpack.c.l.b16 %v916
    %v1623 = vunpack.c.h.b16 %v916
    %v1624 = vunpack.c.l.b16 %v917
    %v1625 = vunpack.c.h.b16 %v917
    %v1626 = vunpack.c.l.b16 %v918
    %v1627 = vunpack.c.h.b16 %v918
    %v1628 = vunpack.c.l.b16 %v919
    %v1629 = vunpack.c.h.b16 %v919
    %v1630 = vunpack.c.l.b16 %v920
    %v1631 = vunpack.c.h.b16 %v920
    %v1632 = vunpack.c.l.b16 %v921
    %v1633 = vunpack.c.h.b16 %v921
    %v1634 = vunpack.c.l.b16 %v922
    %v1635 = vunpack.c.h.b16 %v922
    %v1636 = vunpack.c.l.b16 %v923
    %v1637 = vunpack.c.h.b16 %v923
    %v1638 = vunpack.c.l.b16 %v924
    %v1639 = vunpack.c.h.b16 %v924
    %v1640 = vunpack.c.l.b16 %v925
    %v1641 = vunpack.c.h.b16 %v925
    %v1642 = vunpack.c.l.b16 %v926
    %v1643 = vunpack.c.h.b16 %v926
    %v1644 = vunpack.c.l.b16 %v927
    %v1645 = vunpack.c.h.b16 %v927
    %v1646 = vunpack.c.l.b16 %v928
    %v1647 = vunpack.c.h.b16 %v928
    %v1648 = vunpack.c.l.b16 %v929
    %v1649 = vunpack.c.h.b16 %v929
    %v1650 = vunpack.c.l.b16 %v930
    %v1651 = vunpack.c.h.b16 %v930
    %v1652 = vunpack.c.l.b16 %v931
    %v1653 = vunpack.c.h.b16 %v931
    %v1654 = vunpack.c.l.b16 %v932
    %v1655 = vunpack.c.h.b16 %v932
    %v1656 = vunpack.c.l.b16 %v933
    %v1657 = vunpack.c.h.b16 %v933
    %v1658 = vunpack.c.l.b16 %v934
    %v1659 = vunpack.c.h.b16 %v934
    %v1660 = vunpack.c.l.b16 %v935
    %v1661 = vunpack.c.h.b16 %v935
    %v1662 = vunpack.c.l.b16 %v936
    %v1663 = vunpack.c.h.b16 %v936
    %v1664 = vunpack.c.l.b16 %v937
    %v1665 = vunpack.c.h.b16 %v937
    %v1666 = vunpack.c.l.b16 %v938
    %v1667 = vunpack.c.h.b16 %v938
    %v1668 = vunpack.c.l.b16 %v939
    %v1669 = vunpack.c.h.b16 %v939
    %v1670 = vunpack.c.l.b16 %v940
    %v1671 = vunpack.c.h.b16 %v940
    %v1672 = vunpack.c.l.b16 %v941
    %v1673 = vunpack.c.h.b16 %v941
    %v1674 = vunpack.c.l.b16 %v942
    %v1675 = vunpack.c.h.b16 %v942
    %v1676 = vunpack.c.l.b16 %v943
    %v1677 = vunpack.c.h.b16 %v943
    %v1678 = vunpack.c.l.b16 %v944
    %v1679 = vunpack.c.h.b16 %v944
    %v1680 = vunpack.c.l.b16 %v945
    %v1681 = vunpack.c.h.b16 %v945
    %v1682 = vunpack.c.l.b16 %v946
    %v1683 = vunpack.c.h.b16 %v946
    %v1684 = vunpack.c.l.b16 %v947
    %v1685 = vunpack.c.h.b16 %v947
    %v1686 = vunpack.c.l.b16 %v948
    %v1687 = vunpack.c.h.b16 %v948
    %v1688 = vunpack.c.l.b16 %v949
    %v1689 = vunpack.c.h.b16 %v949
    %v1690 = vunpack.c.l.b16 %v950
    %v1691 = vunpack.c.h.b16 %v950
    %v1692 = vunpack.c.l.b16 %v951
    %v1693 = vunpack.c.h.b16 %v951
    %v1694 = vunpack.c.l.b16 %v952
    %v1695 = vunpack.c.h.b16 %v952
    %v1696 = vunpack.c.l.b16 %v953
    %v1697 = vunpack.c.h.b16 %v953
    %v1698 = vunpack.c.l.b16 %v954
    %v1699 = vunpack.c.h.b16 %v954
    %v1700 = vunpack.c.l.b16 %v955
    %v1701 = vunpack.c.h.b16 %v955
    %v1702 = vunpack.c.l.b16 %v956
    %v1703 = vunpack.c.h.b16 %v956
    %v1704 = vunpack.c.l.b16 %v957
    %v1705 = vunpack.c.h.b16 %v957
    %v1706 = vunpack.c.l.b16 %v958
    %v1707 = vunpack.c.h.b16 %v958
    %v1708 = vunpack.c.l.b16 %v959
    %v1709 = vunpack.c.h.b16 %v959
    %v1710 = vunpack.c.l.b16 %v960
    %v1711 = vunpack.c.h.b16 %v960
    %v1712 = vunpack.c.l.b16 %v961
    %v1713 = vunpack.c.h.b16 %v961
    %v1714 = vunpack.c.l.b16 %v962
    %v1715 = vunpack.c.h.b16 %v962
    %v1716 = vunpack.c.l.b16 %v963
    %v1717 = vunpack.c.h.b16 %v963
    %v1718 = vunpack.c.l.b16 %v964
    %v1719 = vunpack.c.h.b16 %v964
    %v1720 = vunpack.c.l.b16 %v965
    %v1721 = vunpack.c.h.b16 %v965
    %v1722 = vunpack.c.l.b16 %v966
    %v1723 = vunpack.c.h.b16 %v966
    %v1724 = vunpack.c.l.b16 %v967
    %v1725 = vunpack.c.h.b16 %v967
    %v1726 = vunpack.c.l.b16 %v968
    %v1727 = vunpack.c.h.b16 %v968
    %v1728 = vunpack.c.l.b16 %v969
    %v1729 = vunpack.c.h.b16 %v969
    %v1730 = vunpack.c.l.b16 %v970
    %v1731 = vunpack.c.h.b16 %v970
    %v1732 = vunpack.c.l.b16 %v971
    %v1733 = vunpack.c.h.b16 %v971
    %v1734 = vunpack.c.l.b16 %v972
    %v1735 = vunpack.c.h.b16 %v972
    %v1736 = vunpack.c.l.b16 %v973
    %v1737 = vunpack.c.h.b16 %v973
    %v1738 = vunpack.c.l.b16 %v974
    %v1739 = vunpack.c.h.b16 %v974
    %v1740 = vunpack.c.l.b16 %v975
    %v1741 = vunpack.c.h.b16 %v975
    %v1742 = vunpack.c.l.b16 %v976
    %v1743 = vunpack.c.h.b16 %v976
    %v1744 = vunpack.c.l.b16 %v977
    %v1745 = vunpack.c.h.b16 %v977
    %v1746 = vunpack.c.l.b16 %v978
    %v1747 = vunpack.c.h.b16 %v978
    %v1748 = vunpack.c.l.b16 %v979
    %v1749 = vunpack.c.h.b16 %v979
    %v1750 = vunpack.c.l.b16 %v980
    %v1751 = vunpack.c.h.b16 %v980
    %v1752 = vunpack.c.l.b16 %v981
    %v1753 = vunpack.c.h.b16 %v981
    %v1754 = vunpack.c.l.b16 %v982
    %v1755 = vunpack.c.h.b16 %v982
    %v1756 = vunpack.c.l.b16 %v983
    %v1757 = vunpack.c.h.b16 %v983
    %v1758 = vunpack.c.l.b16 %v984
    %v1759 = vunpack.c.h.b16 %v984
    %v1760 = vunpack.c.l.b16 %v985
    %v1761 = vunpack.c.h.b16 %v985
    %v1762 = vunpack.c.l.b16 %v986
    %v1763 = vunpack.c.h.b16 %v986
    %v1764 = vunpack.c.l.b16 %v987
    %v1765 = vunpack.c.h.b16 %v987
    %v1766 = vunpack.c.l.b16 %v988
    %v1767 = vunpack.c.h.b16 %v988
    %v1768 = vunpack.c.l.b16 %v989
    %v1769 = vunpack.c.h.b16 %v989
    %v1770 = vunpack.c.l.b16 %v990
    %v1771 = vunpack.c.h.b16 %v990
    %v1772 = vunpack.c.l.b16 %v991
    %v1773 = vunpack.c.h.b16 %v991
    %v1774 = vunpack.c.l.b16 %v992
    %v1775 = vunpack.c.h.b16 %v992
    %v1776 = vunpack.c.l.b16 %v993
    %v1777 = vunpack.c.h.b16 %v993
    %v1778 = vunpack.c.l.b16 %v994
    %v1779 = vunpack.c.h.b16 %v994
    %v1780 = vunpack.c.l.b16 %v995
    %v1781 = vunpack.c.h.b16 %v995
    %v1782 = vunpack.c.l.b16 %v996
    %v1783 = vunpack.c.h.b16 %v996
    %v1784 = vunpack.c.l.b16 %v997
    %v1785 = vunpack.c.h.b16 %v997
    %v1786 = vunpack.c.l.b16 %v998
    %v1787 = vunpack.c.h.b16 %v998
    %v1788 = vunpack.c.l.b16 %v999
    %v1789 = vunpack.c.h.b16 %v999
    %v1790 = vpack.c.b16 %v1282, %v1278
    %v1791 = vpack.c.b16 %v1283, %v1279
    %v1792 = vpack.c.b16 %v1284, %v1280
    %v1793 = vpack.c.b16 %v1285, %v1281
    %v1794 = vpack.c.b16 %v1290, %v1286
    %v1795 = vpack.c.b16 %v1291, %v1287
    %v1796 = vpack.c.b16 %v1292, %v1288
    %v1797 = vpack.c.b16 %v1293, %v1289
    %v1798 = vpack.c.b16 %v1298, %v1294
    %v1799 = vpack.c.b16 %v1299, %v1295
    %v1800 = vpack.c.b16 %v1300, %v1296
    %v1801 = vpack.c.b16 %v1301, %v1297
    %v1802 = vpack.c.b16 %v1306, %v1302
    %v1803 = vpack.c.b16 %v1307, %v1303
    %v1804 = vpack.c.b16 %v1308, %v1304
    %v1805 = vpack.c.b16 %v1309, %v1305
    %v1806 = vpack.c.b16 %v1314, %v1310
    %v1807 = vpack.c.b16 %v1315, %v1311
    %v1808 = vpack.c.b16 %v1316, %v1312
    %v1809 = vpack.c.b16 %v1317, %v1313
    %v1810 = vpack.c.b16 %v1322, %v1318
    %v1811 = vpack.c.b16 %v1323, %v1319
    %v1812 = vpack.c.b16 %v1324, %v1320
    %v1813 = vpack.c.b16 %v1325, %v1321
    %v1814 = vpack.c.b16 %v1330, %v1326
    %v1815 = vpack.c.b16 %v1331, %v1327
    %v1816 = vpack.c.b16 %v1332, %v1328
    %v1817 = vpack.c.b16 %v1333, %v1329
    %v1818 = vpack.c.b16 %v1338, %v1334
    %v1819 = vpack.c.b16 %v1339, %v1335
    %v1820 = vpack.c.b16 %v1340, %v1336
    %v1821 = vpack.c.b16 %v1341, %v1337
    %v1822 = vpack.c.b16 %v1346, %v1342
    %v1823 = vpack.c.b16 %v1347, %v1343
    %v1824 = vpack.c.b16 %v1348, %v1344
    %v1825 = vpack.c.b16 %v1349, %v1345
    %v1826 = vpack.c.b16 %v1354, %v1350
    %v1827 = vpack.c.b16 %v1355, %v1351
    %v1828 = vpack.c.b16 %v1356, %v1352
    %v1829 = vpack.c.b16 %v1357, %v1353
    %v1830 = vpack.c.b16 %v1362, %v1358
    %v1831 = vpack.c.b16 %v1363, %v1359
    %v1832 = vpack.c.b16 %v1364, %v1360
    %v1833 = vpack.c.b16 %v1365, %v1361
    %v1834 = vpack.c.b16 %v1370, %v1366
    %v1835 = vpack.c.b16 %v1371, %v1367
    %v1836 = vpack.c.b16 %v1372, %v1368
    %v1837 = vpack.c.b16 %v1373, %v1369
    %v1838 = vpack.c.b16 %v1378, %v1374
    %v1839 = vpack.c.b16 %v1379, %v1375
    %v1840 = vpack.c.b16 %v1380, %v1376
    %v1841 = vpack.c.b16 %v1381, %v1377
    %v1842 = vpack.c.b16 %v1386, %v1382
    %v1843 = vpack.c.b16 %v1387, %v1383
    %v1844 = vpack.c.b16 %v1388, %v1384
    %v1845 = vpack.c.b16 %v1389, %v1385
    %v1846 = vpack.c.b16 %v1394, %v1390
    %v1847 = vpack.c.b16 %v1395, %v1391
    %v1848 = vpack.c.b16 %v1396, %v1392
    %v1849 = vpack.c.b16 %v1397, %v1393
    %v1850 = vpack.c.b16 %v1402, %v1398
    %v1851 = vpack.c.b16 %v1403, %v1399
    %v1852 = vpack.c.b16 %v1404, %v1400
    %v1853 = vpack.c.b16 %v1405, %v1401
    %v1854 = vpack.c.b16 %v1410, %v1406
    %v1855 = vpack.c.b16 %v1411, %v1407
    %v1856 = vpack.c.b16 %v1412, %v1408
    %v1857 = vpack.c.b16 %v1413, %v1409
    %v1858 = vpack.c.b16 %v1418, %v1414
    %v1859 = vpack.c.b16 %v1419, %v1415
    %v1860 = vpack.c.b16 %v1420, %v1416
    %v1861 = vpack.c.b16 %v1421, %v1417
    %v1862 = vpack.c.b16 %v1426, %v1422
    %v1863 = vpack.c.b16 %v1427, %v1423
    %v1864 = vpack.c.b16 %v1428, %v1424
    %v1865 = vpack.c.b16 %v1429, %v1425
    %v1866 = vpack.c.b16 %v1434, %v1430
    %v1867 = vpack.c.b16 %v1435, %v1431
    %v1868 = vpack.c.b16 %v1436, %v1432
    %v1869 = vpack.c.b16 %v1437, %v1433
    %v1870 = vpack.c.b16 %v1442, %v1438
    %v1871 = vpack.c.b16 %v1443, %v1439
    %v1872 = vpack.c.b16 %v1444, %v1440
    %v1873 = vpack.c.b16 %v1445, %v1441
    %v1874 = vpack.c.b16 %v1450, %v1446
    %v1875 = vpack.c.b16 %v1451, %v1447
    %v1876 = vpack.c.b16 %v1452, %v1448
    %v1877 = vpack.c.b16 %v1453, %v1449
    %v1878 = vpack.c.b16 %v1458, %v1454
    %v1879 = vpack.c.b16 %v1459, %v1455
    %v1880 = vpack.c.b16 %v1460, %v1456
    %v1881 = vpack.c.b16 %v1461, %v1457
    %v1882 = vpack.c.b16 %v1466, %v1462
    %v1883 = vpack.c.b16 %v1467, %v1463
    %v1884 = vpack.c.b16 %v1468, %v1464
    %v1885 = vpack.c.b16 %v1469, %v1465
    %v1886 = vpack.c.b16 %v1474, %v1470
    %v1887 = vpack.c.b16 %v1475, %v1471
    %v1888 = vpack.c.b16 %v1476, %v1472
    %v1889 = vpack.c.b16 %v1477, %v1473
    %v1890 = vpack.c.b16 %v1482, %v1478
    %v1891 = vpack.c.b16 %v1483, %v1479
    %v1892 = vpack.c.b16 %v1484, %v1480
    %v1893 = vpack.c.b16 %v1485, %v1481
    %v1894 = vpack.c.b16 %v1490, %v1486
    %v1895 = vpack.c.b16 %v1491, %v1487
    %v1896 = vpack.c.b16 %v1492, %v1488
    %v1897 = vpack.c.b16 %v1493, %v1489
    %v1898 = vpack.c.b16 %v1498, %v1494
    %v1899 = vpack.c.b16 %v1499, %v1495
    %v1900 = vpack.c.b16 %v1500, %v1496
    %v1901 = vpack.c.b16 %v1501, %v1497
    %v1902 = vpack.c.b16 %v1506, %v1502
    %v1903 = vpack.c.b16 %v1507, %v1503
    %v1904 = vpack.c.b16 %v1508, %v1504
    %v1905 = vpack.c.b16 %v1509, %v1505
    %v1906 = vpack.c.b16 %v1514, %v1510
    %v1907 = vpack.c.b16 %v1515, %v1511
    %v1908 = vpack.c.b16 %v1516, %v1512
    %v1909 = vpack.c.b16 %v1517, %v1513
    %v1910 = vpack.c.b16 %v1522, %v1518
    %v1911 = vpack.c.b16 %v1523, %v1519
    %v1912 = vpack.c.b16 %v1524, %v1520
    %v1913 = vpack.c.b16 %v1525, %v1521
    %v1914 = vpack.c.b16 %v1530, %v1526
    %v1915 = vpack.c.b16 %v1531, %v1527
    %v1916 = vpack.c.b16 %v1532, %v1528
    %v1917 = vpack.c.b16 %v1533, %v1529
    %v1918 = vpack.c.b16 %v1538, %v1534
    %v1919 = vpack.c.b16 %v1539, %v1535
    %v1920 = vpack.c.b16 %v1540, %v1536
    %v1921 = vpack.c.b16 %v1541, %v1537
    %v1922 = vpack.c.b16 %v1546, %v1542
    %v1923 = vpack.c.b16 %v1547, %v1543
    %v1924 = vpack.c.b16 %v1548, %v1544
    %v1925 = vpack.c.b16 %v1549, %v1545
    %v1926 = vpack.c.b16 %v1554, %v1550
    %v1927 = vpack.c.b16 %v1555, %v1551
    %v1928 = vpack.c.b16 %v1556, %v1552
    %v1929 = vpack.c.b16 %v1557, %v1553
    %v1930 = vpack.c.b16 %v1562, %v1558
    %v1931 = vpack.c.b16 %v1563, %v1559
    %v1932 = vpack.c.b16 %v1564, %v1560
    %v1933 = vpack.c.b16 %v1565, %v1561
    %v1934 = vpack.c.b16 %v1570, %v1566
    %v1935 = vpack.c.b16 %v1571, %v1567
    %v1936 = vpack.c.b16 %v1572, %v1568
    %v1937 = vpack.c.b16 %v1573, %v1569
    %v1938 = vpack.c.b16 %v1578, %v1574
    %v1939 = vpack.c.b16 %v1579, %v1575
    %v1940 = vpack.c.b16 %v1580, %v1576
    %v1941 = vpack.c.b16 %v1581, %v1577
    %v1942 = vpack.c.b16 %v1586, %v1582
    %v1943 = vpack.c.b16 %v1587, %v1583
    %v1944 = vpack.c.b16 %v1588, %v1584
    %v1945 = vpack.c.b16 %v1589, %v1585
    %v1946 = vpack.c.b16 %v1594, %v1590
    %v1947 = vpack.c.b16 %v1595, %v1591
    %v1948 = vpack.c.b16 %v1596, %v1592
    %v1949 = vpack.c.b16 %v1597, %v1593
    %v1950 = vpack.c.b16 %v1602, %v1598
    %v1951 = vpack.c.b16 %v1603, %v1599
    %v1952 = vpack.c.b16 %v1604, %v1600
    %v1953 = vpack.c.b16 %v1605, %v1601
    %v1954 = vpack.c.b16 %v1610, %v1606
    %v1955 = vpack.c.b16 %v1611, %v1607
    %v1956 = vpack.c.b16 %v1612, %v1608
    %v1957 = vpack.c.b16 %v1613, %v1609
    %v1958 = vpack.c.b16 %v1618, %v1614
    %v1959 = vpack.c.b16 %v1619, %v1615
    %v1960 = vpack.c.b16 %v1620, %v1616
    %v1961 = vpack.c.b16 %v1621, %v1617
    %v1962 = vpack.c.b16 %v1626, %v1622
    %v1963 = vpack.c.b16 %v1627, %v1623
    %v1964 = vpack.c.b16 %v1628, %v1624
    %v1965 = vpack.c.b16 %v1629, %v1625
    %v1966 = vpack.c.b16 %v1634, %v1630
    %v1967 = vpack.c.b16 %v1635, %v1631
    %v1968 = vpack.c.b16 %v1636, %v1632
    %v1969 = vpack.c.b16 %v1637, %v1633
    %v1970 = vpack.c.b16 %v1642, %v1638
    %v1971 = vpack.c.b16 %v1643, %v1639
    %v1972 = vpack.c.b16 %v1644, %v1640
    %v1973 = vpack.c.b16 %v1645, %v1641
    %v1974 = vpack.c.b16 %v1650, %v1646
    %v1975 = vpack.c.b16 %v1651, %v1647
    %v1976 = vpack.c.b16 %v1652, %v1648
    %v1977 = vpack.c.b16 %v1653, %v1649
    %v1978 = vpack.c.b16 %v1658, %v1654
    %v1979 = vpack.c.b16 %v1659, %v1655
    %v1980 = vpack.c.b16 %v1660, %v1656
    %v1981 = vpack.c.b16 %v1661, %v1657
    %v1982 = vpack.c.b16 %v1666, %v1662
    %v1983 = vpack.c.b16 %v1667, %v1663
    %v1984 = vpack.c.b16 %v1668, %v1664
    %v1985 = vpack.c.b16 %v1669, %v1665
    %v1986 = vpack.c.b16 %v1674, %v1670
    %v1987 = vpack.c.b16 %v1675, %v1671
    %v1988 = vpack.c.b16 %v1676, %v1672
    %v1989 = vpack.c.b16 %v1677, %v1673
    %v1990 = vpack.c.b16 %v1682, %v1678
    %v1991 = vpack.c.b16 %v1683, %v1679
    %v1992 = vpack.c.b16 %v1684, %v1680
    %v1993 = vpack.c.b16 %v1685, %v1681
    %v1994 = vpack.c.b16 %v1690, %v1686
    %v1995 = vpack.c.b16 %v1691, %v1687
    %v1996 = vpack.c.b16 %v1692, %v1688
    %v1997 = vpack.c.b16 %v1693, %v1689
    %v1998 = vpack.c.b16 %v1698, %v1694
    %v1999 = vpack.c.b16 %v1699, %v1695
    %v2000 = vpack.c.b16 %v1700, %v1696
    %v2001 = vpack.c.b16 %v1701, %v1697
    %v2002 = vpack.c.b16 %v1706, %v1702
    %v2003 = vpack.c.b16 %v1707, %v1703
    %v2004 = vpack.c.b16 %v1708, %v1704
    %v2005 = vpack.c.b16 %v1709, %v1705
    %v2006 = vpack.c.b16 %v1714, %v1710
    %v2007 = vpack.c.b16 %v1715, %v1711
    %v2008 = vpack.c.b16 %v1716, %v1712
    %v2009 = vpack.c.b16 %v1717, %v1713
    %v2010 = vpack.c.b16 %v1722, %v1718
    %v2011 = vpack.c.b16 %v1723, %v1719
    %v2012 = vpack.c.b16 %v1724, %v1720
    %v2013 = vpack.c.b16 %v1725, %v1721
    %v2014 = vpack.c.b16 %v1730, %v1726
    %v2015 = vpack.c.b16 %v1731, %v1727
    %v2016 = vpack.c.b16 %v1732, %v1728
    %v2017 = vpack.c.b16 %v1733, %v1729
    %v2018 = vpack.c.b16 %v1738, %v1734
    %v2019 = vpack.c.b16 %v1739, %v1735
    %v2020 = vpack.c.b16 %v1740, %v1736
    %v2021 = vpack.c.b16 %v1741, %v1737
    %v2022 = vpack.c.b16 %v1746, %v1742
    %v2023 = vpack.c.b16 %v1747, %v1743
    %v2024 = vpack.c.b16 %v1748, %v1744
    %v2025 = vpack.c.b16 %v1749, %v1745
    %v2026 = vpack.c.b16 %v1754, %v1750
    %v2027 = vpack.c.b16 %v1755, %v1751
    %v2028 = vpack.c.b16 %v1756, %v1752
    %v2029 = vpack.c.b16 %v1757, %v1753
    %v2030 = vpack.c.b16 %v1762, %v1758
    %v2031 = vpack.c.b16 %v1763, %v1759
    %v2032 = vpack.c.b16 %v1764, %v1760
    %v2033 = vpack.c.b16 %v1765, %v1761
    %v2034 = vpack.c.b16 %v1770, %v1766
    %v2035 = vpack.c.b16 %v1771, %v1767
    %v2036 = vpack.c.b16 %v1772, %v1768
    %v2037 = vpack.c.b16 %v1773, %v1769
    %v2038 = vpack.c.b16 %v1778, %v1774
    %v2039 = vpack.c.b16 %v1779, %v1775
    %v2040 = vpack.c.b16 %v1780, %v1776
    %v2041 = vpack.c.b16 %v1781, %v1777
    %v2042 = vpack.c.b16 %v1786, %v1782
    %v2043 = vpack.c.b16 %v1787, %v1783
    %v2044 = vpack.c.b16 %v1788, %v1784
    %v2045 = vpack.c.b16 %v1789, %v1785
    %2302 = vmatprep.subr.bf16.mxu0 %v1791
    %2303 = vmatpush1.bf16.msra.mxu0 %v1790
    %2304 = vmatprep.subr.bf16.mxu0 %v1795
    %2305 = vmatpush1.bf16.msra.mxu0 %v1794
    %2306 = vmatprep.subr.bf16.mxu0 %v1799
    %2307 = vmatpush1.bf16.msra.mxu0 %v1798
    %2308 = vmatprep.subr.bf16.mxu0 %v1803
    %2309 = vmatpush1.bf16.msra.mxu0 %v1802
    %2310 = vmatprep.subr.bf16.mxu0 %v1807
    %2311 = vmatpush1.bf16.msra.mxu0 %v1806
    %2312 = vmatprep.subr.bf16.mxu0 %v1811
    %2313 = vmatpush1.bf16.msra.mxu0 %v1810
    %2314 = vmatprep.subr.bf16.mxu0 %v1815
    %2315 = vmatpush1.bf16.msra.mxu0 %v1814
    %2316 = vmatprep.subr.bf16.mxu0 %v1819
    %2317 = vmatpush1.bf16.msra.mxu0 %v1818
    %2318 = vmatprep.subr.bf16.mxu0 %v1823
    %2319 = vmatpush1.bf16.msra.mxu0 %v1822
    %2320 = vmatprep.subr.bf16.mxu0 %v1827
    %2321 = vmatpush1.bf16.msra.mxu0 %v1826
    %2322 = vmatprep.subr.bf16.mxu0 %v1831
    %2323 = vmatpush1.bf16.msra.mxu0 %v1830
    %2324 = vmatprep.subr.bf16.mxu0 %v1835
    %2325 = vmatpush1.bf16.msra.mxu0 %v1834
    %2326 = vmatprep.subr.bf16.mxu0 %v1839
    %2327 = vmatpush1.bf16.msra.mxu0 %v1838
    %2328 = vmatprep.subr.bf16.mxu0 %v1843
    %2329 = vmatpush1.bf16.msra.mxu0 %v1842
    %2330 = vmatprep.subr.bf16.mxu0 %v1847
    %2331 = vmatpush1.bf16.msra.mxu0 %v1846
    %2332 = vmatprep.subr.bf16.mxu0 %v1851
    %2333 = vmatpush1.bf16.msra.mxu0 %v1850
    %2334 = vmatprep.mubr.bf16.mxu0 %v737
    %2335 = vmatmul.mubr.bf16.gmra.mrb[0].mxu0 %v736
    %v2336 = vpop.f32.mrb[0].mxu0
    %v2337 = vadd.f32 %v1005, %v2336
    %v2338 = vpop.f32.mrb[0].mxu0
    %v2339 = vadd.f32 %v1009, %v2338
    %v2340 = vpop.f32.mrb[0].mxu0
    %v2341 = vadd.f32 %v1005, %v2340
    %v2342 = vpop.f32.mrb[0].mxu0
    %v2343 = vadd.f32 %v1009, %v2342
    %2344 = vdwg.mxu0
    %2345 = vmatprep.subr.bf16.mxu0 %v1855
    %2346 = vmatpush1.bf16.msra.mxu0 %v1854
    %2347 = vmatprep.subr.bf16.mxu0 %v1859
    %2348 = vmatpush1.bf16.msra.mxu0 %v1858
    %2349 = vmatprep.subr.bf16.mxu0 %v1863
    %2350 = vmatpush1.bf16.msra.mxu0 %v1862
    %2351 = vmatprep.subr.bf16.mxu0 %v1867
    %2352 = vmatpush1.bf16.msra.mxu0 %v1866
    %2353 = vmatprep.subr.bf16.mxu0 %v1871
    %2354 = vmatpush1.bf16.msra.mxu0 %v1870
    %2355 = vmatprep.subr.bf16.mxu0 %v1875
    %2356 = vmatpush1.bf16.msra.mxu0 %v1874
    %2357 = vmatprep.subr.bf16.mxu0 %v1879
    %2358 = vmatpush1.bf16.msra.mxu0 %v1878
    %2359 = vmatprep.subr.bf16.mxu0 %v1883
    %2360 = vmatpush1.bf16.msra.mxu0 %v1882
    %2361 = vmatprep.subr.bf16.mxu0 %v1887
    %2362 = vmatpush1.bf16.msra.mxu0 %v1886
    %2363 = vmatprep.subr.bf16.mxu0 %v1891
    %2364 = vmatpush1.bf16.msra.mxu0 %v1890
    %2365 = vmatprep.subr.bf16.mxu0 %v1895
    %2366 = vmatpush1.bf16.msra.mxu0 %v1894
    %2367 = vmatprep.subr.bf16.mxu0 %v1899
    %2368 = vmatpush1.bf16.msra.mxu0 %v1898
    %2369 = vmatprep.subr.bf16.mxu0 %v1903
    %2370 = vmatpush1.bf16.msra.mxu0 %v1902
    %2371 = vmatprep.subr.bf16.mxu0 %v1907
    %2372 = vmatpush1.bf16.msra.mxu0 %v1906
    %2373 = vmatprep.subr.bf16.mxu0 %v1911
    %2374 = vmatpush1.bf16.msra.mxu0 %v1910
    %2375 = vmatprep.subr.bf16.mxu0 %v1915
    %2376 = vmatpush1.bf16.msra.mxu0 %v1914
    %2377 = vmatprep.mubr.bf16.mxu0 %v739
    %2378 = vmatmul.mubr.bf16.gmra.mrb[0].mxu0 %v738
    %v2379 = vpop.f32.mrb[0].mxu0
    %v2380 = vadd.f32 %v2337, %v2379
    %v2381 = vpop.f32.mrb[0].mxu0
    %v2382 = vadd.f32 %v2339, %v2381
    %v2383 = vpop.f32.mrb[0].mxu0
    %v2384 = vadd.f32 %v2341, %v2383
    %v2385 = vpop.f32.mrb[0].mxu0
    %v2386 = vadd.f32 %v2343, %v2385
    %2387 = vdwg.mxu0
    %2388 = vmatprep.subr.bf16.mxu0 %v1919
    %2389 = vmatpush1.bf16.msra.mxu0 %v1918
    %2390 = vmatprep.subr.bf16.mxu0 %v1923
    %2391 = vmatpush1.bf16.msra.mxu0 %v1922
    %2392 = vmatprep.subr.bf16.mxu0 %v1927
    %2393 = vmatpush1.bf16.msra.mxu0 %v1926
    %2394 = vmatprep.subr.bf16.mxu0 %v1931
    %2395 = vmatpush1.bf16.msra.mxu0 %v1930
    %2396 = vmatprep.subr.bf16.mxu0 %v1935
    %2397 = vmatpush1.bf16.msra.mxu0 %v1934
    %2398 = vmatprep.subr.bf16.mxu0 %v1939
    %2399 = vmatpush1.bf16.msra.mxu0 %v1938
    %2400 = vmatprep.subr.bf16.mxu0 %v1943
    %2401 = vmatpush1.bf16.msra.mxu0 %v1942
    %2402 = vmatprep.subr.bf16.mxu0 %v1947
    %2403 = vmatpush1.bf16.msra.mxu0 %v1946
    %2404 = vmatprep.subr.bf16.mxu0 %v1951
    %2405 = vmatpush1.bf16.msra.mxu0 %v1950
    %2406 = vmatprep.subr.bf16.mxu0 %v1955
    %2407 = vmatpush1.bf16.msra.mxu0 %v1954
    %2408 = vmatprep.subr.bf16.mxu0 %v1959
    %2409 = vmatpush1.bf16.msra.mxu0 %v1958
    %2410 = vmatprep.subr.bf16.mxu0 %v1963
    %2411 = vmatpush1.bf16.msra.mxu0 %v1962
    %2412 = vmatprep.subr.bf16.mxu0 %v1967
    %2413 = vmatpush1.bf16.msra.mxu0 %v1966
    %2414 = vmatprep.subr.bf16.mxu0 %v1971
    %2415 = vmatpush1.bf16.msra.mxu0 %v1970
    %2416 = vmatprep.subr.bf16.mxu0 %v1975
    %2417 = vmatpush1.bf16.msra.mxu0 %v1974
    %2418 = vmatprep.subr.bf16.mxu0 %v1979
    %2419 = vmatpush1.bf16.msra.mxu0 %v1978
    %2420 = vmatprep.mubr.bf16.mxu0 %v741
    %2421 = vmatmul.mubr.bf16.gmra.mrb[0].mxu0 %v740
    %v2422 = vpop.f32.mrb[0].mxu0
    %v2423 = vadd.f32 %v2380, %v2422
    %v2424 = vpop.f32.mrb[0].mxu0
    %v2425 = vadd.f32 %v2382, %v2424
    %v2426 = vpop.f32.mrb[0].mxu0
    %v2427 = vadd.f32 %v2384, %v2426
    %v2428 = vpop.f32.mrb[0].mxu0
    %v2429 = vadd.f32 %v2386, %v2428
    %2430 = vdwg.mxu0
    %2431 = vmatprep.subr.bf16.mxu0 %v1983
    %2432 = vmatpush1.bf16.msra.mxu0 %v1982
    %2433 = vmatprep.subr.bf16.mxu0 %v1987
    %2434 = vmatpush1.bf16.msra.mxu0 %v1986
    %2435 = vmatprep.subr.bf16.mxu0 %v1991
    %2436 = vmatpush1.bf16.msra.mxu0 %v1990
    %2437 = vmatprep.subr.bf16.mxu0 %v1995
    %2438 = vmatpush1.bf16.msra.mxu0 %v1994
    %2439 = vmatprep.subr.bf16.mxu0 %v1999
    %2440 = vmatpush1.bf16.msra.mxu0 %v1998
    %2441 = vmatprep.subr.bf16.mxu0 %v2003
    %2442 = vmatpush1.bf16.msra.mxu0 %v2002
    %2443 = vmatprep.subr.bf16.mxu0 %v2007
    %2444 = vmatpush1.bf16.msra.mxu0 %v2006
    %2445 = vmatprep.subr.bf16.mxu0 %v2011
    %2446 = vmatpush1.bf16.msra.mxu0 %v2010
    %2447 = vmatprep.subr.bf16.mxu0 %v2015
    %2448 = vmatpush1.bf16.msra.mxu0 %v2014
    %2449 = vmatprep.subr.bf16.mxu0 %v2019
    %2450 = vmatpush1.bf16.msra.mxu0 %v2018
    %2451 = vmatprep.subr.bf16.mxu0 %v2023
    %2452 = vmatpush1.bf16.msra.mxu0 %v2022
    %2453 = vmatprep.subr.bf16.mxu0 %v2027
    %2454 = vmatpush1.bf16.msra.mxu0 %v2026
    %2455 = vmatprep.subr.bf16.mxu0 %v2031
    %2456 = vmatpush1.bf16.msra.mxu0 %v2030
    %2457 = vmatprep.subr.bf16.mxu0 %v2035
    %2458 = vmatpush1.bf16.msra.mxu0 %v2034
    %2459 = vmatprep.subr.bf16.mxu0 %v2039
    %2460 = vmatpush1.bf16.msra.mxu0 %v2038
    %2461 = vmatprep.subr.bf16.mxu0 %v2043
    %2462 = vmatpush1.bf16.msra.mxu0 %v2042
    %2463 = vmatprep.mubr.bf16.mxu0 %v743
    %2464 = vmatmul.mubr.bf16.gmra.mrb[0].mxu0 %v742
    %v2465 = vpop.f32.mrb[0].mxu0
    %v2466 = vadd.f32 %v2423, %v2465
    %v2467 = vpop.f32.mrb[0].mxu0
    %v2468 = vadd.f32 %v2425, %v2467
    %v2469 = vpop.f32.mrb[0].mxu0
    %v2470 = vadd.f32 %v2427, %v2469
    %v2471 = vpop.f32.mrb[0].mxu0
    %v2472 = vadd.f32 %v2429, %v2471
    %2473 = vdwg.mxu0
    %2474 = vmatprep.subr.bf16.mxu0 %v1793
    %2475 = vmatpush1.bf16.msra.mxu0 %v1792
    %2476 = vmatprep.subr.bf16.mxu0 %v1797
    %2477 = vmatpush1.bf16.msra.mxu0 %v1796
    %2478 = vmatprep.subr.bf16.mxu0 %v1801
    %2479 = vmatpush1.bf16.msra.mxu0 %v1800
    %2480 = vmatprep.subr.bf16.mxu0 %v1805
    %2481 = vmatpush1.bf16.msra.mxu0 %v1804
    %2482 = vmatprep.subr.bf16.mxu0 %v1809
    %2483 = vmatpush1.bf16.msra.mxu0 %v1808
    %2484 = vmatprep.subr.bf16.mxu0 %v1813
    %2485 = vmatpush1.bf16.msra.mxu0 %v1812
    %2486 = vmatprep.subr.bf16.mxu0 %v1817
    %2487 = vmatpush1.bf16.msra.mxu0 %v1816
    %2488 = vmatprep.subr.bf16.mxu0 %v1821
    %2489 = vmatpush1.bf16.msra.mxu0 %v1820
    %2490 = vmatprep.subr.bf16.mxu0 %v1825
    %2491 = vmatpush1.bf16.msra.mxu0 %v1824
    %2492 = vmatprep.subr.bf16.mxu0 %v1829
    %2493 = vmatpush1.bf16.msra.mxu0 %v1828
    %2494 = vmatprep.subr.bf16.mxu0 %v1833
    %2495 = vmatpush1.bf16.msra.mxu0 %v1832
    %2496 = vmatprep.subr.bf16.mxu0 %v1837
    %2497 = vmatpush1.bf16.msra.mxu0 %v1836
    %2498 = vmatprep.subr.bf16.mxu0 %v1841
    %2499 = vmatpush1.bf16.msra.mxu0 %v1840
    %2500 = vmatprep.subr.bf16.mxu0 %v1845
    %2501 = vmatpush1.bf16.msra.mxu0 %v1844
    %2502 = vmatprep.subr.bf16.mxu0 %v1849
    %2503 = vmatpush1.bf16.msra.mxu0 %v1848
    %2504 = vmatprep.subr.bf16.mxu0 %v1853
    %2505 = vmatpush1.bf16.msra.mxu0 %v1852
    %2506 = vmatprep.mubr.bf16.mxu0 %v737
    %2507 = vmatmul.mubr.bf16.gmra.mrb[0].mxu0 %v736
    %v2508 = vpop.f32.mrb[0].mxu0
    %v2509 = vadd.f32 %v1013, %v2508
    %v2510 = vpop.f32.mrb[0].mxu0
    %v2511 = vadd.f32 %v1017, %v2510
    %v2512 = vpop.f32.mrb[0].mxu0
    %v2513 = vadd.f32 %v1013, %v2512
    %v2514 = vpop.f32.mrb[0].mxu0
    %v2515 = vadd.f32 %v1017, %v2514
    %2516 = vdwg.mxu0
    %2517 = vmatprep.subr.bf16.mxu0 %v1857
    %2518 = vmatpush1.bf16.msra.mxu0 %v1856
    %2519 = vmatprep.subr.bf16.mxu0 %v1861
    %2520 = vmatpush1.bf16.msra.mxu0 %v1860
    %2521 = vmatprep.subr.bf16.mxu0 %v1865
    %2522 = vmatpush1.bf16.msra.mxu0 %v1864
    %2523 = vmatprep.subr.bf16.mxu0 %v1869
    %2524 = vmatpush1.bf16.msra.mxu0 %v1868
    %2525 = vmatprep.subr.bf16.mxu0 %v1873
    %2526 = vmatpush1.bf16.msra.mxu0 %v1872
    %2527 = vmatprep.subr.bf16.mxu0 %v1877
    %2528 = vmatpush1.bf16.msra.mxu0 %v1876
    %2529 = vmatprep.subr.bf16.mxu0 %v1881
    %2530 = vmatpush1.bf16.msra.mxu0 %v1880
    %2531 = vmatprep.subr.bf16.mxu0 %v1885
    %2532 = vmatpush1.bf16.msra.mxu0 %v1884
    %2533 = vmatprep.subr.bf16.mxu0 %v1889
    %2534 = vmatpush1.bf16.msra.mxu0 %v1888
    %2535 = vmatprep.subr.bf16.mxu0 %v1893
    %2536 = vmatpush1.bf16.msra.mxu0 %v1892
    %2537 = vmatprep.subr.bf16.mxu0 %v1897
    %2538 = vmatpush1.bf16.msra.mxu0 %v1896
    %2539 = vmatprep.subr.bf16.mxu0 %v1901
    %2540 = vmatpush1.bf16.msra.mxu0 %v1900
    %2541 = vmatprep.subr.bf16.mxu0 %v1905
    %2542 = vmatpush1.bf16.msra.mxu0 %v1904
    %2543 = vmatprep.subr.bf16.mxu0 %v1909
    %2544 = vmatpush1.bf16.msra.mxu0 %v1908
    %2545 = vmatprep.subr.bf16.mxu0 %v1913
    %2546 = vmatpush1.bf16.msra.mxu0 %v1912
    %2547 = vmatprep.subr.bf16.mxu0 %v1917
    %2548 = vmatpush1.bf16.msra.mxu0 %v1916
    %2549 = vmatprep.mubr.bf16.mxu0 %v739
    %2550 = vmatmul.mubr.bf16.gmra.mrb[0].mxu0 %v738
    %v2551 = vpop.f32.mrb[0].mxu0
    %v2552 = vadd.f32 %v2509, %v2551
    %v2553 = vpop.f32.mrb[0].mxu0
    %v2554 = vadd.f32 %v2511, %v2553
    %v2555 = vpop.f32.mrb[0].mxu0
    %v2556 = vadd.f32 %v2513, %v2555
    %v2557 = vpop.f32.mrb[0].mxu0
    %v2558 = vadd.f32 %v2515, %v2557
    %2559 = vdwg.mxu0
    %2560 = vmatprep.subr.bf16.mxu0 %v1921
    %2561 = vmatpush1.bf16.msra.mxu0 %v1920
    %2562 = vmatprep.subr.bf16.mxu0 %v1925
    %2563 = vmatpush1.bf16.msra.mxu0 %v1924
    %2564 = vmatprep.subr.bf16.mxu0 %v1929
    %2565 = vmatpush1.bf16.msra.mxu0 %v1928
    %2566 = vmatprep.subr.bf16.mxu0 %v1933
    %2567 = vmatpush1.bf16.msra.mxu0 %v1932
    %2568 = vmatprep.subr.bf16.mxu0 %v1937
    %2569 = vmatpush1.bf16.msra.mxu0 %v1936
    %2570 = vmatprep.subr.bf16.mxu0 %v1941
    %2571 = vmatpush1.bf16.msra.mxu0 %v1940
    %2572 = vmatprep.subr.bf16.mxu0 %v1945
    %2573 = vmatpush1.bf16.msra.mxu0 %v1944
    %2574 = vmatprep.subr.bf16.mxu0 %v1949
    %2575 = vmatpush1.bf16.msra.mxu0 %v1948
    %2576 = vmatprep.subr.bf16.mxu0 %v1953
    %2577 = vmatpush1.bf16.msra.mxu0 %v1952
    %2578 = vmatprep.subr.bf16.mxu0 %v1957
    %2579 = vmatpush1.bf16.msra.mxu0 %v1956
    %2580 = vmatprep.subr.bf16.mxu0 %v1961
    %2581 = vmatpush1.bf16.msra.mxu0 %v1960
    %2582 = vmatprep.subr.bf16.mxu0 %v1965
    %2583 = vmatpush1.bf16.msra.mxu0 %v1964
    %2584 = vmatprep.subr.bf16.mxu0 %v1969
    %2585 = vmatpush1.bf16.msra.mxu0 %v1968
    %2586 = vmatprep.subr.bf16.mxu0 %v1973
    %2587 = vmatpush1.bf16.msra.mxu0 %v1972
    %2588 = vmatprep.subr.bf16.mxu0 %v1977
    %2589 = vmatpush1.bf16.msra.mxu0 %v1976
    %2590 = vmatprep.subr.bf16.mxu0 %v1981
    %2591 = vmatpush1.bf16.msra.mxu0 %v1980
    %2592 = vmatprep.mubr.bf16.mxu0 %v741
    %2593 = vmatmul.mubr.bf16.gmra.mrb[0].mxu0 %v740
    %v2594 = vpop.f32.mrb[0].mxu0
    %v2595 = vadd.f32 %v2552, %v2594
    %v2596 = vpop.f32.mrb[0].mxu0
    %v2597 = vadd.f32 %v2554, %v2596
    %v2598 = vpop.f32.mrb[0].mxu0
    %v2599 = vadd.f32 %v2556, %v2598
    %v2600 = vpop.f32.mrb[0].mxu0
    %v2601 = vadd.f32 %v2558, %v2600
    %2602 = vdwg.mxu0
    %2603 = vmatprep.subr.bf16.mxu0 %v1985
    %2604 = vmatpush1.bf16.msra.mxu0 %v1984
    %2605 = vmatprep.subr.bf16.mxu0 %v1989
    %2606 = vmatpush1.bf16.msra.mxu0 %v1988
    %2607 = vmatprep.subr.bf16.mxu0 %v1993
    %2608 = vmatpush1.bf16.msra.mxu0 %v1992
    %2609 = vmatprep.subr.bf16.mxu0 %v1997
    %2610 = vmatpush1.bf16.msra.mxu0 %v1996
    %2611 = vmatprep.subr.bf16.mxu0 %v2001
    %2612 = vmatpush1.bf16.msra.mxu0 %v2000
    %2613 = vmatprep.subr.bf16.mxu0 %v2005
    %2614 = vmatpush1.bf16.msra.mxu0 %v2004
    %2615 = vmatprep.subr.bf16.mxu0 %v2009
    %2616 = vmatpush1.bf16.msra.mxu0 %v2008
    %2617 = vmatprep.subr.bf16.mxu0 %v2013
    %2618 = vmatpush1.bf16.msra.mxu0 %v2012
    %2619 = vmatprep.subr.bf16.mxu0 %v2017
    %2620 = vmatpush1.bf16.msra.mxu0 %v2016
    %2621 = vmatprep.subr.bf16.mxu0 %v2021
    %2622 = vmatpush1.bf16.msra.mxu0 %v2020
    %2623 = vmatprep.subr.bf16.mxu0 %v2025
    %2624 = vmatpush1.bf16.msra.mxu0 %v2024
    %2625 = vmatprep.subr.bf16.mxu0 %v2029
    %2626 = vmatpush1.bf16.msra.mxu0 %v2028
    %2627 = vmatprep.subr.bf16.mxu0 %v2033
    %2628 = vmatpush1.bf16.msra.mxu0 %v2032
    %2629 = vmatprep.subr.bf16.mxu0 %v2037
    %2630 = vmatpush1.bf16.msra.mxu0 %v2036
    %2631 = vmatprep.subr.bf16.mxu0 %v2041
    %2632 = vmatpush1.bf16.msra.mxu0 %v2040
    %2633 = vmatprep.subr.bf16.mxu0 %v2045
    %2634 = vmatpush1.bf16.msra.mxu0 %v2044
    %2635 = vmatprep.mubr.bf16.mxu0 %v743
    %2636 = vmatmul.mubr.bf16.gmra.mrb[0].mxu0 %v742
    %v2637 = vpop.f32.mrb[0].mxu0
    %v2638 = vadd.f32 %v2595, %v2637
    %v2639 = vpop.f32.mrb[0].mxu0
    %v2640 = vadd.f32 %v2597, %v2639
    %v2641 = vpop.f32.mrb[0].mxu0
    %v2642 = vadd.f32 %v2599, %v2641
    %v2643 = vpop.f32.mrb[0].mxu0
    %v2644 = vadd.f32 %v2601, %v2643
    %2645 = vdwg.mxu0
    %v2646 = vmax.f32 %v2466, 0.0
    %v2647 = vmax.f32 %v2468, 0.0
    %v2648 = vmax.f32 %v2638, 0.0
    %v2649 = vmax.f32 %v2640, 0.0
    %v2650 = vmax.f32 %v2470, 0.0
    %v2651 = vmax.f32 %v2472, 0.0
    %v2652 = vmax.f32 %v2642, 0.0
    %v2653 = vmax.f32 %v2644, 0.0
    %v2654 = vpack.c.bf16 %v2650, %v2646
    %v2655 = vpack.c.bf16 %v2651, %v2647
    %v2656 = vpack.c.bf16 %v2652, %v2648
    %v2657 = vpack.c.bf16 %v2653, %v2649
    %v2658 = vld [vmem:[#allocation10] sm:$0xff]
    %v2659 = vld [vmem:[#allocation10 + $0x8] sm:$0xff]
    %v2660 = vld [vmem:[#allocation10 + $0x10] sm:$0xff]
    %v2661 = vld [vmem:[#allocation10 + $0x18] sm:$0xff]
    %v2662 = vld [vmem:[#allocation10 + $0x20] sm:$0xff]
    %v2663 = vld [vmem:[#allocation10 + $0x28] sm:$0xff]
    %v2664 = vld [vmem:[#allocation10 + $0x30] sm:$0xff]
    %v2665 = vld [vmem:[#allocation10 + $0x38] sm:$0xff]
    %v2666 = vld [vmem:[#allocation10 + $0x40] sm:$0xff]
    %v2667 = vld [vmem:[#allocation10 + $0x48] sm:$0xff]
    %v2668 = vld [vmem:[#allocation10 + $0x50] sm:$0xff]
    %v2669 = vld [vmem:[#allocation10 + $0x58] sm:$0xff]
    %v2670 = vld [vmem:[#allocation10 + $0x60] sm:$0xff]
    %v2671 = vld [vmem:[#allocation10 + $0x68] sm:$0xff]
    %v2672 = vld [vmem:[#allocation10 + $0x70] sm:$0xff]
    %v2673 = vld [vmem:[#allocation10 + $0x78] sm:$0xff]
    %v2674 = vld [vmem:[#allocation10 + $0x80] sm:$0xff]
    %v2675 = vld [vmem:[#allocation10 + $0x88] sm:$0xff]
    %v2676 = vld [vmem:[#allocation10 + $0x90] sm:$0xff]
    %v2677 = vld [vmem:[#allocation10 + $0x98] sm:$0xff]
    %v2678 = vld [vmem:[#allocation10 + $0xa0] sm:$0xff]
    %v2679 = vld [vmem:[#allocation10 + $0xa8] sm:$0xff]
    %v2680 = vld [vmem:[#allocation10 + $0xb0] sm:$0xff]
    %v2681 = vld [vmem:[#allocation10 + $0xb8] sm:$0xff]
    %v2682 = vld [vmem:[#allocation10 + $0xc0] sm:$0xff]
    %v2683 = vld [vmem:[#allocation10 + $0xc8] sm:$0xff]
    %v2684 = vld [vmem:[#allocation10 + $0xd0] sm:$0xff]
    %v2685 = vld [vmem:[#allocation10 + $0xd8] sm:$0xff]
    %v2686 = vld [vmem:[#allocation10 + $0xe0] sm:$0xff]
    %v2687 = vld [vmem:[#allocation10 + $0xe8] sm:$0xff]
    %v2688 = vld [vmem:[#allocation10 + $0xf0] sm:$0xff]
    %v2689 = vld [vmem:[#allocation10 + $0xf8] sm:$0xff]
    %v2690 = vld [vmem:[#allocation10 + $0x100] sm:$0xff]
    %v2691 = vld [vmem:[#allocation10 + $0x108] sm:$0xff]
    %v2692 = vld [vmem:[#allocation10 + $0x110] sm:$0xff]
    %v2693 = vld [vmem:[#allocation10 + $0x118] sm:$0xff]
    %v2694 = vld [vmem:[#allocation10 + $0x120] sm:$0xff]
    %v2695 = vld [vmem:[#allocation10 + $0x128] sm:$0xff]
    %v2696 = vld [vmem:[#allocation10 + $0x130] sm:$0xff]
    %v2697 = vld [vmem:[#allocation10 + $0x138] sm:$0xff]
    %v2698 = vld [vmem:[#allocation10 + $0x140] sm:$0xff]
    %v2699 = vld [vmem:[#allocation10 + $0x148] sm:$0xff]
    %v2700 = vld [vmem:[#allocation10 + $0x150] sm:$0xff]
    %v2701 = vld [vmem:[#allocation10 + $0x158] sm:$0xff]
    %v2702 = vld [vmem:[#allocation10 + $0x160] sm:$0xff]
    %v2703 = vld [vmem:[#allocation10 + $0x168] sm:$0xff]
    %v2704 = vld [vmem:[#allocation10 + $0x170] sm:$0xff]
    %v2705 = vld [vmem:[#allocation10 + $0x178] sm:$0xff]
    %v2706 = vld [vmem:[#allocation10 + $0x180] sm:$0xff]
    %v2707 = vld [vmem:[#allocation10 + $0x188] sm:$0xff]
    %v2708 = vld [vmem:[#allocation10 + $0x190] sm:$0xff]
    %v2709 = vld [vmem:[#allocation10 + $0x198] sm:$0xff]
    %v2710 = vld [vmem:[#allocation10 + $0x1a0] sm:$0xff]
    %v2711 = vld [vmem:[#allocation10 + $0x1a8] sm:$0xff]
    %v2712 = vld [vmem:[#allocation10 + $0x1b0] sm:$0xff]
    %v2713 = vld [vmem:[#allocation10 + $0x1b8] sm:$0xff]
    %v2714 = vld [vmem:[#allocation10 + $0x1c0] sm:$0xff]
    %v2715 = vld [vmem:[#allocation10 + $0x1c8] sm:$0xff]
    %v2716 = vld [vmem:[#allocation10 + $0x1d0] sm:$0xff]
    %v2717 = vld [vmem:[#allocation10 + $0x1d8] sm:$0xff]
    %v2718 = vld [vmem:[#allocation10 + $0x1e0] sm:$0xff]
    %v2719 = vld [vmem:[#allocation10 + $0x1e8] sm:$0xff]
    %v2720 = vld [vmem:[#allocation10 + $0x1f0] sm:$0xff]
    %v2721 = vld [vmem:[#allocation10 + $0x1f8] sm:$0xff]
    %v2722 = vld [vmem:[%s6] sm:$0x3]
    %v2724 = vlaneseq
    %v2725 = vshrl.u32 %v2724, 7
    %v2726 = vsub.s32 0, %v2725
    %v2727 = vrot.slane %v2722, %v2726
    %v2728 = vlaneseq
    %v2729 = vshrl.u32 %v2728, 7
    %v2730 = vsub.s32 1, %v2729
    %v2731 = vrot.slane %v2722, %v2730
    %v2798 = vunpack.c.l.b16 %v2658
    %v2799 = vunpack.c.h.b16 %v2658
    %v2800 = vunpack.c.l.b16 %v2659
    %v2801 = vunpack.c.h.b16 %v2659
    %v2802 = vunpack.c.l.b16 %v2660
    %v2803 = vunpack.c.h.b16 %v2660
    %v2804 = vunpack.c.l.b16 %v2661
    %v2805 = vunpack.c.h.b16 %v2661
    %v2806 = vunpack.c.l.b16 %v2662
    %v2807 = vunpack.c.h.b16 %v2662
    %v2808 = vunpack.c.l.b16 %v2663
    %v2809 = vunpack.c.h.b16 %v2663
    %v2810 = vunpack.c.l.b16 %v2664
    %v2811 = vunpack.c.h.b16 %v2664
    %v2812 = vunpack.c.l.b16 %v2665
    %v2813 = vunpack.c.h.b16 %v2665
    %v2814 = vunpack.c.l.b16 %v2666
    %v2815 = vunpack.c.h.b16 %v2666
    %v2816 = vunpack.c.l.b16 %v2667
    %v2817 = vunpack.c.h.b16 %v2667
    %v2818 = vunpack.c.l.b16 %v2668
    %v2819 = vunpack.c.h.b16 %v2668
    %v2820 = vunpack.c.l.b16 %v2669
    %v2821 = vunpack.c.h.b16 %v2669
    %v2822 = vunpack.c.l.b16 %v2670
    %v2823 = vunpack.c.h.b16 %v2670
    %v2824 = vunpack.c.l.b16 %v2671
    %v2825 = vunpack.c.h.b16 %v2671
    %v2826 = vunpack.c.l.b16 %v2672
    %v2827 = vunpack.c.h.b16 %v2672
    %v2828 = vunpack.c.l.b16 %v2673
    %v2829 = vunpack.c.h.b16 %v2673
    %v2830 = vunpack.c.l.b16 %v2674
    %v2831 = vunpack.c.h.b16 %v2674
    %v2832 = vunpack.c.l.b16 %v2675
    %v2833 = vunpack.c.h.b16 %v2675
    %v2834 = vunpack.c.l.b16 %v2676
    %v2835 = vunpack.c.h.b16 %v2676
    %v2836 = vunpack.c.l.b16 %v2677
    %v2837 = vunpack.c.h.b16 %v2677
    %v2838 = vunpack.c.l.b16 %v2678
    %v2839 = vunpack.c.h.b16 %v2678
    %v2840 = vunpack.c.l.b16 %v2679
    %v2841 = vunpack.c.h.b16 %v2679
    %v2842 = vunpack.c.l.b16 %v2680
    %v2843 = vunpack.c.h.b16 %v2680
    %v2844 = vunpack.c.l.b16 %v2681
    %v2845 = vunpack.c.h.b16 %v2681
    %v2846 = vunpack.c.l.b16 %v2682
    %v2847 = vunpack.c.h.b16 %v2682
    %v2848 = vunpack.c.l.b16 %v2683
    %v2849 = vunpack.c.h.b16 %v2683
    %v2850 = vunpack.c.l.b16 %v2684
    %v2851 = vunpack.c.h.b16 %v2684
    %v2852 = vunpack.c.l.b16 %v2685
    %v2853 = vunpack.c.h.b16 %v2685
    %v2854 = vunpack.c.l.b16 %v2686
    %v2855 = vunpack.c.h.b16 %v2686
    %v2856 = vunpack.c.l.b16 %v2687
    %v2857 = vunpack.c.h.b16 %v2687
    %v2858 = vunpack.c.l.b16 %v2688
    %v2859 = vunpack.c.h.b16 %v2688
    %v2860 = vunpack.c.l.b16 %v2689
    %v2861 = vunpack.c.h.b16 %v2689
    %v2862 = vunpack.c.l.b16 %v2690
    %v2863 = vunpack.c.h.b16 %v2690
    %v2864 = vunpack.c.l.b16 %v2691
    %v2865 = vunpack.c.h.b16 %v2691
    %v2866 = vunpack.c.l.b16 %v2692
    %v2867 = vunpack.c.h.b16 %v2692
    %v2868 = vunpack.c.l.b16 %v2693
    %v2869 = vunpack.c.h.b16 %v2693
    %v2870 = vunpack.c.l.b16 %v2694
    %v2871 = vunpack.c.h.b16 %v2694
    %v2872 = vunpack.c.l.b16 %v2695
    %v2873 = vunpack.c.h.b16 %v2695
    %v2874 = vunpack.c.l.b16 %v2696
    %v2875 = vunpack.c.h.b16 %v2696
    %v2876 = vunpack.c.l.b16 %v2697
    %v2877 = vunpack.c.h.b16 %v2697
    %v2878 = vunpack.c.l.b16 %v2698
    %v2879 = vunpack.c.h.b16 %v2698
    %v2880 = vunpack.c.l.b16 %v2699
    %v2881 = vunpack.c.h.b16 %v2699
    %v2882 = vunpack.c.l.b16 %v2700
    %v2883 = vunpack.c.h.b16 %v2700
    %v2884 = vunpack.c.l.b16 %v2701
    %v2885 = vunpack.c.h.b16 %v2701
    %v2886 = vunpack.c.l.b16 %v2702
    %v2887 = vunpack.c.h.b16 %v2702
    %v2888 = vunpack.c.l.b16 %v2703
    %v2889 = vunpack.c.h.b16 %v2703
    %v2890 = vunpack.c.l.b16 %v2704
    %v2891 = vunpack.c.h.b16 %v2704
    %v2892 = vunpack.c.l.b16 %v2705
    %v2893 = vunpack.c.h.b16 %v2705
    %v2894 = vunpack.c.l.b16 %v2706
    %v2895 = vunpack.c.h.b16 %v2706
    %v2896 = vunpack.c.l.b16 %v2707
    %v2897 = vunpack.c.h.b16 %v2707
    %v2898 = vunpack.c.l.b16 %v2708
    %v2899 = vunpack.c.h.b16 %v2708
    %v2900 = vunpack.c.l.b16 %v2709
    %v2901 = vunpack.c.h.b16 %v2709
    %v2902 = vunpack.c.l.b16 %v2710
    %v2903 = vunpack.c.h.b16 %v2710
    %v2904 = vunpack.c.l.b16 %v2711
    %v2905 = vunpack.c.h.b16 %v2711
    %v2906 = vunpack.c.l.b16 %v2712
    %v2907 = vunpack.c.h.b16 %v2712
    %v2908 = vunpack.c.l.b16 %v2713
    %v2909 = vunpack.c.h.b16 %v2713
    %v2910 = vunpack.c.l.b16 %v2714
    %v2911 = vunpack.c.h.b16 %v2714
    %v2912 = vunpack.c.l.b16 %v2715
    %v2913 = vunpack.c.h.b16 %v2715
    %v2914 = vunpack.c.l.b16 %v2716
    %v2915 = vunpack.c.h.b16 %v2716
    %v2916 = vunpack.c.l.b16 %v2717
    %v2917 = vunpack.c.h.b16 %v2717
    %v2918 = vunpack.c.l.b16 %v2718
    %v2919 = vunpack.c.h.b16 %v2718
    %v2920 = vunpack.c.l.b16 %v2719
    %v2921 = vunpack.c.h.b16 %v2719
    %v2922 = vunpack.c.l.b16 %v2720
    %v2923 = vunpack.c.h.b16 %v2720
    %v2924 = vunpack.c.l.b16 %v2721
    %v2925 = vunpack.c.h.b16 %v2721
    %v2926 = vpack.c.b16 %v2800, %v2798
    %v2927 = vpack.c.b16 %v2801, %v2799
    %v2928 = vpack.c.b16 %v2804, %v2802
    %v2929 = vpack.c.b16 %v2805, %v2803
    %v2930 = vpack.c.b16 %v2808, %v2806
    %v2931 = vpack.c.b16 %v2809, %v2807
    %v2932 = vpack.c.b16 %v2812, %v2810
    %v2933 = vpack.c.b16 %v2813, %v2811
    %v2934 = vpack.c.b16 %v2816, %v2814
    %v2935 = vpack.c.b16 %v2817, %v2815
    %v2936 = vpack.c.b16 %v2820, %v2818
    %v2937 = vpack.c.b16 %v2821, %v2819
    %v2938 = vpack.c.b16 %v2824, %v2822
    %v2939 = vpack.c.b16 %v2825, %v2823
    %v2940 = vpack.c.b16 %v2828, %v2826
    %v2941 = vpack.c.b16 %v2829, %v2827
    %v2942 = vpack.c.b16 %v2832, %v2830
    %v2943 = vpack.c.b16 %v2833, %v2831
    %v2944 = vpack.c.b16 %v2836, %v2834
    %v2945 = vpack.c.b16 %v2837, %v2835
    %v2946 = vpack.c.b16 %v2840, %v2838
    %v2947 = vpack.c.b16 %v2841, %v2839
    %v2948 = vpack.c.b16 %v2844, %v2842
    %v2949 = vpack.c.b16 %v2845, %v2843
    %v2950 = vpack.c.b16 %v2848, %v2846
    %v2951 = vpack.c.b16 %v2849, %v2847
    %v2952 = vpack.c.b16 %v2852, %v2850
    %v2953 = vpack.c.b16 %v2853, %v2851
    %v2954 = vpack.c.b16 %v2856, %v2854
    %v2955 = vpack.c.b16 %v2857, %v2855
    %v2956 = vpack.c.b16 %v2860, %v2858
    %v2957 = vpack.c.b16 %v2861, %v2859
    %v2958 = vpack.c.b16 %v2864, %v2862
    %v2959 = vpack.c.b16 %v2865, %v2863
    %v2960 = vpack.c.b16 %v2868, %v2866
    %v2961 = vpack.c.b16 %v2869, %v2867
    %v2962 = vpack.c.b16 %v2872, %v2870
    %v2963 = vpack.c.b16 %v2873, %v2871
    %v2964 = vpack.c.b16 %v2876, %v2874
    %v2965 = vpack.c.b16 %v2877, %v2875
    %v2966 = vpack.c.b16 %v2880, %v2878
    %v2967 = vpack.c.b16 %v2881, %v2879
    %v2968 = vpack.c.b16 %v2884, %v2882
    %v2969 = vpack.c.b16 %v2885, %v2883
    %v2970 = vpack.c.b16 %v2888, %v2886
    %v2971 = vpack.c.b16 %v2889, %v2887
    %v2972 = vpack.c.b16 %v2892, %v2890
    %v2973 = vpack.c.b16 %v2893, %v2891
    %v2974 = vpack.c.b16 %v2896, %v2894
    %v2975 = vpack.c.b16 %v2897, %v2895
    %v2976 = vpack.c.b16 %v2900, %v2898
    %v2977 = vpack.c.b16 %v2901, %v2899
    %v2978 = vpack.c.b16 %v2904, %v2902
    %v2979 = vpack.c.b16 %v2905, %v2903
    %v2980 = vpack.c.b16 %v2908, %v2906
    %v2981 = vpack.c.b16 %v2909, %v2907
    %v2982 = vpack.c.b16 %v2912, %v2910
    %v2983 = vpack.c.b16 %v2913, %v2911
    %v2984 = vpack.c.b16 %v2916, %v2914
    %v2985 = vpack.c.b16 %v2917, %v2915
    %v2986 = vpack.c.b16 %v2920, %v2918
    %v2987 = vpack.c.b16 %v2921, %v2919
    %v2988 = vpack.c.b16 %v2924, %v2922
    %v2989 = vpack.c.b16 %v2925, %v2923
    %3054 = vmatprep.subr.bf16.mxu0 %v2927
    %3055 = vmatpush1.bf16.msra.mxu0 %v2926
    %3056 = vmatprep.subr.bf16.mxu0 %v2929
    %3057 = vmatpush1.bf16.msra.mxu0 %v2928
    %3058 = vmatprep.subr.bf16.mxu0 %v2931
    %3059 = vmatpush1.bf16.msra.mxu0 %v2930
    %3060 = vmatprep.subr.bf16.mxu0 %v2933
    %3061 = vmatpush1.bf16.msra.mxu0 %v2932
    %3062 = vmatprep.subr.bf16.mxu0 %v2935
    %3063 = vmatpush1.bf16.msra.mxu0 %v2934
    %3064 = vmatprep.subr.bf16.mxu0 %v2937
    %3065 = vmatpush1.bf16.msra.mxu0 %v2936
    %3066 = vmatprep.subr.bf16.mxu0 %v2939
    %3067 = vmatpush1.bf16.msra.mxu0 %v2938
    %3068 = vmatprep.subr.bf16.mxu0 %v2941
    %3069 = vmatpush1.bf16.msra.mxu0 %v2940
    %3070 = vmatprep.subr.bf16.mxu0 %v2943
    %3071 = vmatpush1.bf16.msra.mxu0 %v2942
    %3072 = vmatprep.subr.bf16.mxu0 %v2945
    %3073 = vmatpush1.bf16.msra.mxu0 %v2944
    %3074 = vmatprep.subr.bf16.mxu0 %v2947
    %3075 = vmatpush1.bf16.msra.mxu0 %v2946
    %3076 = vmatprep.subr.bf16.mxu0 %v2949
    %3077 = vmatpush1.bf16.msra.mxu0 %v2948
    %3078 = vmatprep.subr.bf16.mxu0 %v2951
    %3079 = vmatpush1.bf16.msra.mxu0 %v2950
    %3080 = vmatprep.subr.bf16.mxu0 %v2953
    %3081 = vmatpush1.bf16.msra.mxu0 %v2952
    %3082 = vmatprep.subr.bf16.mxu0 %v2955
    %3083 = vmatpush1.bf16.msra.mxu0 %v2954
    %3084 = vmatprep.subr.bf16.mxu0 %v2957
    %3085 = vmatpush1.bf16.msra.mxu0 %v2956
    %3086 = vmatprep.mubr.bf16.mxu0 %v2655
    %3087 = vmatmul.mubr.bf16.gmra.mrb[0].mxu0 %v2654
    %v3088 = vpop.f32.mrb[0].mxu0
    %v3089 = vadd.f32 %v2727, %v3088
    %v3090 = vpop.f32.mrb[0].mxu0
    %v3091 = vadd.f32 %v2731, %v3090
    %v3092 = vpop.f32.mrb[0].mxu0
    %v3093 = vadd.f32 %v2727, %v3092
    %v3094 = vpop.f32.mrb[0].mxu0
    %v3095 = vadd.f32 %v2731, %v3094
    %3096 = vdwg.mxu0
    %3097 = vmatprep.subr.bf16.mxu0 %v2959
    %3098 = vmatpush1.bf16.msra.mxu0 %v2958
    %3099 = vmatprep.subr.bf16.mxu0 %v2961
    %3100 = vmatpush1.bf16.msra.mxu0 %v2960
    %3101 = vmatprep.subr.bf16.mxu0 %v2963
    %3102 = vmatpush1.bf16.msra.mxu0 %v2962
    %3103 = vmatprep.subr.bf16.mxu0 %v2965
    %3104 = vmatpush1.bf16.msra.mxu0 %v2964
    %3105 = vmatprep.subr.bf16.mxu0 %v2967
    %3106 = vmatpush1.bf16.msra.mxu0 %v2966
    %3107 = vmatprep.subr.bf16.mxu0 %v2969
    %3108 = vmatpush1.bf16.msra.mxu0 %v2968
    %3109 = vmatprep.subr.bf16.mxu0 %v2971
    %3110 = vmatpush1.bf16.msra.mxu0 %v2970
    %3111 = vmatprep.subr.bf16.mxu0 %v2973
    %3112 = vmatpush1.bf16.msra.mxu0 %v2972
    %3113 = vmatprep.subr.bf16.mxu0 %v2975
    %3114 = vmatpush1.bf16.msra.mxu0 %v2974
    %3115 = vmatprep.subr.bf16.mxu0 %v2977
    %3116 = vmatpush1.bf16.msra.mxu0 %v2976
    %3117 = vmatprep.subr.bf16.mxu0 %v2979
    %3118 = vmatpush1.bf16.msra.mxu0 %v2978
    %3119 = vmatprep.subr.bf16.mxu0 %v2981
    %3120 = vmatpush1.bf16.msra.mxu0 %v2980
    %3121 = vmatprep.subr.bf16.mxu0 %v2983
    %3122 = vmatpush1.bf16.msra.mxu0 %v2982
    %3123 = vmatprep.subr.bf16.mxu0 %v2985
    %3124 = vmatpush1.bf16.msra.mxu0 %v2984
    %3125 = vmatprep.subr.bf16.mxu0 %v2987
    %3126 = vmatpush1.bf16.msra.mxu0 %v2986
    %3127 = vmatprep.subr.bf16.mxu0 %v2989
    %3128 = vmatpush1.bf16.msra.mxu0 %v2988
    %3129 = vmatprep.mubr.bf16.mxu0 %v2657
    %3130 = vmatmul.mubr.bf16.gmra.mrb[0].mxu0 %v2656
    %v3131 = vpop.f32.mrb[0].mxu0
    %v3132 = vadd.f32 %v3089, %v3131
    %v3133 = vpop.f32.mrb[0].mxu0
    %v3134 = vadd.f32 %v3091, %v3133
    %v3135 = vpop.f32.mrb[0].mxu0
    %v3136 = vadd.f32 %v3093, %v3135
    %v3137 = vpop.f32.mrb[0].mxu0
    %v3138 = vadd.f32 %v3095, %v3137
    %3139 = vdwg.mxu0
    %v3140 = vmax.f32 %v3132, 0.0
    %v3141 = vmax.f32 %v3134, 0.0
    %v3142 = vmax.f32 %v3136, 0.0
    %v3143 = vmax.f32 %v3138, 0.0
    %v3144 = vpack.c.bf16 %v3142, %v3140
    %v3145 = vpack.c.bf16 %v3143, %v3141
    %v3146 = vld [vmem:[#allocation11] sm:$0xf]
    %v3147 = vld [vmem:[#allocation11 + $0x4] sm:$0xf]
    %v3148 = vld [vmem:[#allocation11 + $0x8] sm:$0xf]
    %v3149 = vld [vmem:[#allocation11 + $0xc] sm:$0xf]
    %v3150 = vld [vmem:[#allocation11 + $0x10] sm:$0xf]
    %v3151 = vld [vmem:[#allocation11 + $0x14] sm:$0xf]
    %v3152 = vld [vmem:[#allocation11 + $0x18] sm:$0xf]
    %v3153 = vld [vmem:[#allocation11 + $0x1c] sm:$0xf]
    %v3154 = vld [vmem:[#allocation11 + $0x20] sm:$0xf]
    %v3155 = vld [vmem:[#allocation11 + $0x24] sm:$0xf]
    %v3156 = vld [vmem:[#allocation11 + $0x28] sm:$0xf]
    %v3157 = vld [vmem:[#allocation11 + $0x2c] sm:$0xf]
    %v3158 = vld [vmem:[#allocation11 + $0x30] sm:$0xf]
    %v3159 = vld [vmem:[#allocation11 + $0x34] sm:$0xf]
    %v3160 = vld [vmem:[#allocation11 + $0x38] sm:$0xf]
    %v3161 = vld [vmem:[#allocation11 + $0x3c] sm:$0xf]
    %v3162 = vld [vmem:[#allocation11 + $0x40] sm:$0xf]
    %v3163 = vld [vmem:[#allocation11 + $0x44] sm:$0xf]
    %v3164 = vld [vmem:[#allocation11 + $0x48] sm:$0xf]
    %v3165 = vld [vmem:[#allocation11 + $0x4c] sm:$0xf]
    %v3166 = vld [vmem:[#allocation11 + $0x50] sm:$0xf]
    %v3167 = vld [vmem:[#allocation11 + $0x54] sm:$0xf]
    %v3168 = vld [vmem:[#allocation11 + $0x58] sm:$0xf]
    %v3169 = vld [vmem:[#allocation11 + $0x5c] sm:$0xf]
    %v3170 = vld [vmem:[#allocation11 + $0x60] sm:$0xf]
    %v3171 = vld [vmem:[#allocation11 + $0x64] sm:$0xf]
    %v3172 = vld [vmem:[#allocation11 + $0x68] sm:$0xf]
    %v3173 = vld [vmem:[#allocation11 + $0x6c] sm:$0xf]
    %v3174 = vld [vmem:[#allocation11 + $0x70] sm:$0xf]
    %v3175 = vld [vmem:[#allocation11 + $0x74] sm:$0xf]
    %v3176 = vld [vmem:[#allocation11 + $0x78] sm:$0xf]
    %v3177 = vld [vmem:[#allocation11 + $0x7c] sm:$0xf]
    %v3178 = vld [vmem:[%s8] sm:$0x1]
    %v3180 = vlaneseq
    %v3181 = vshrl.u32 %v3180, 7
    %v3182 = vsub.s32 0, %v3181
    %v3183 = vrot.slane %v3178, %v3182
    %v3217 = vunpack.c.l.b16 %v3146
    %v3218 = vunpack.c.l.b16 %v3147
    %v3219 = vunpack.c.l.b16 %v3148
    %v3220 = vunpack.c.l.b16 %v3149
    %v3221 = vunpack.c.l.b16 %v3150
    %v3222 = vunpack.c.l.b16 %v3151
    %v3223 = vunpack.c.l.b16 %v3152
    %v3224 = vunpack.c.l.b16 %v3153
    %v3225 = vunpack.c.l.b16 %v3154
    %v3226 = vunpack.c.l.b16 %v3155
    %v3227 = vunpack.c.l.b16 %v3156
    %v3228 = vunpack.c.l.b16 %v3157
    %v3229 = vunpack.c.l.b16 %v3158
    %v3230 = vunpack.c.l.b16 %v3159
    %v3231 = vunpack.c.l.b16 %v3160
    %v3232 = vunpack.c.l.b16 %v3161
    %v3233 = vunpack.c.l.b16 %v3162
    %v3234 = vunpack.c.l.b16 %v3163
    %v3235 = vunpack.c.l.b16 %v3164
    %v3236 = vunpack.c.l.b16 %v3165
    %v3237 = vunpack.c.l.b16 %v3166
    %v3238 = vunpack.c.l.b16 %v3167
    %v3239 = vunpack.c.l.b16 %v3168
    %v3240 = vunpack.c.l.b16 %v3169
    %v3241 = vunpack.c.l.b16 %v3170
    %v3242 = vunpack.c.l.b16 %v3171
    %v3243 = vunpack.c.l.b16 %v3172
    %v3244 = vunpack.c.l.b16 %v3173
    %v3245 = vunpack.c.l.b16 %v3174
    %v3246 = vunpack.c.l.b16 %v3175
    %v3247 = vunpack.c.l.b16 %v3176
    %v3248 = vunpack.c.l.b16 %v3177
    %v3249 = vpack.c.b16 %v3218, %v3217
    %v3250 = vpack.c.b16 %v3220, %v3219
    %v3251 = vpack.c.b16 %v3222, %v3221
    %v3252 = vpack.c.b16 %v3224, %v3223
    %v3253 = vpack.c.b16 %v3226, %v3225
    %v3254 = vpack.c.b16 %v3228, %v3227
    %v3255 = vpack.c.b16 %v3230, %v3229
    %v3256 = vpack.c.b16 %v3232, %v3231
    %v3257 = vpack.c.b16 %v3234, %v3233
    %v3258 = vpack.c.b16 %v3236, %v3235
    %v3259 = vpack.c.b16 %v3238, %v3237
    %v3260 = vpack.c.b16 %v3240, %v3239
    %v3261 = vpack.c.b16 %v3242, %v3241
    %v3262 = vpack.c.b16 %v3244, %v3243
    %v3263 = vpack.c.b16 %v3246, %v3245
    %v3264 = vpack.c.b16 %v3248, %v3247
    %3281 = vmatprep.subr.bf16.mxu0 0
    %3282 = vmatpush1.bf16.msra.mxu0 %v3249
    %3283 = vmatprep.subr.bf16.mxu0 0
    %3284 = vmatpush1.bf16.msra.mxu0 %v3250
    %3285 = vmatprep.subr.bf16.mxu0 0
    %3286 = vmatpush1.bf16.msra.mxu0 %v3251
    %3287 = vmatprep.subr.bf16.mxu0 0
    %3288 = vmatpush1.bf16.msra.mxu0 %v3252
    %3289 = vmatprep.subr.bf16.mxu0 0
    %3290 = vmatpush1.bf16.msra.mxu0 %v3253
    %3291 = vmatprep.subr.bf16.mxu0 0
    %3292 = vmatpush1.bf16.msra.mxu0 %v3254
    %3293 = vmatprep.subr.bf16.mxu0 0
    %3294 = vmatpush1.bf16.msra.mxu0 %v3255
    %3295 = vmatprep.subr.bf16.mxu0 0
    %3296 = vmatpush1.bf16.msra.mxu0 %v3256
    %3297 = vmatprep.subr.bf16.mxu0 0
    %3298 = vmatpush1.bf16.msra.mxu0 %v3257
    %3299 = vmatprep.subr.bf16.mxu0 0
    %3300 = vmatpush1.bf16.msra.mxu0 %v3258
    %3301 = vmatprep.subr.bf16.mxu0 0
    %3302 = vmatpush1.bf16.msra.mxu0 %v3259
    %3303 = vmatprep.subr.bf16.mxu0 0
    %3304 = vmatpush1.bf16.msra.mxu0 %v3260
    %3305 = vmatprep.subr.bf16.mxu0 0
    %3306 = vmatpush1.bf16.msra.mxu0 %v3261
    %3307 = vmatprep.subr.bf16.mxu0 0
    %3308 = vmatpush1.bf16.msra.mxu0 %v3262
    %3309 = vmatprep.subr.bf16.mxu0 0
    %3310 = vmatpush1.bf16.msra.mxu0 %v3263
    %3311 = vmatprep.subr.bf16.mxu0 0
    %3312 = vmatpush1.bf16.msra.mxu0 %v3264
    %3313 = vmatprep.mubr.bf16.mxu0 %v3145
    %3314 = vmatmul.mubr.bf16.gmra.mrb[0].mxu0 %v3144
    %v3315 = vpop.f32.mrb[0].mxu0
    %v3316 = vadd.f32 %v3183, %v3315
    %v3317 = vpop.f32.mrb[0].mxu0
    %v3318 = vpop.f32.mrb[0].mxu0
    %v3319 = vadd.f32 %v3183, %v3318
    %v3320 = vpop.f32.mrb[0].mxu0
    %3321 = vdwg.mxu0
    %v3322 = vpack.c.bf16 %v3319, %v3316
    %v3324 = vunpack.c.l.b16 %v3322
    %v3325 = vunpack.c.h.b16 %v3322
    %v3326 = vpack.c.b16 %v3324, %v3324
    %v3327 = vpack.c.b16 %v3325, %v3325
    %3330 = vst [vmem:[#allocation13] sm:$0xf] %v3326
    %3331 = vst [vmem:[#allocation13 + $0x4] sm:$0xf] %v3327
    // Predicated region
    $region62: #{tpu_custom_call.1} parent=1 // pred_check
      _
    $region63: #{tpu_custom_call.1} parent=1 // pred_check_branch
      %3333 = sbr.rel (0) target = $region65
    $region64: #{tpu_custom_call.1} parent=1 // pred_region
      %s3335 = ssub.s32 128, 128
      %3336 = vsyncadd [#allocation4], %s3335
      %s3337 = sshll.u32 [#allocation13], 4
      %s3338 = int_to_ptr.vmem [resolvable:$true] %s3337
      %3343 = dma.vmem_to_hbm [thread:$0]  %s3338, 128, %s9, [#allocation4], 64, 64, 4
    $region65: #{tpu_custom_call.1} parent=1 // pred_fallthru
      _
    // Predicated region
    $region66: #{tpu_custom_call.1} parent=1 // pred_check
      _
    $region67: #{tpu_custom_call.1} parent=1 // pred_check_branch
      %3345 = sbr.rel (0) target = $region69
    $region68: #{tpu_custom_call.1} parent=1 // pred_region
      %3346 = dma.done [#allocation4], 128
    $region69: #{tpu_custom_call.1} parent=1 // pred_fallthru
      _
    %3347 = vsyncpa [#allocation3], 1
    %3348 = vsyncpa [#allocation6], 1
    %3349 = vsyncpa [#allocation9], 1
    %3350 = vsyncpa [#allocation12], 1
    %3351 = vsyncpa [#allocation4], 1

// kernel: tpu_custom_call.1
$region0: #{tpu_custom_call.1}
  #allocation0 [shape = 'u32[]', space=smem, size = 0x4, offset = 0x4, fixed_abs, tag = 'smem constant byte address 0x4 - core index']
  #allocation1 [shape = 'u32[144,128]{1,0:T(1,128)}', space=vmem, size = 0x12000, scoped, tag = 'internal scratch']
  %s0 = inlined_call_operand.hbm [shape: bf16[16,128], index: 0, kind: input, shape index: {}]
  %s1 = inlined_call_operand.hbm [shape: bf16[128,1024], index: 1, kind: input, shape index: {}]
  %s2 = inlined_call_operand.hbm [shape: f32[1,1024], index: 2, kind: input, shape index: {}]
  %s3 = inlined_call_operand.hbm [shape: bf16[1024,512], index: 3, kind: input, shape index: {}]
  %s4 = inlined_call_operand.vmem [shape: f32[1,512], index: 4, kind: input, shape index: {}]
  %s5 = inlined_call_operand.hbm [shape: bf16[512,256], index: 5, kind: input, shape index: {}]
  %s6 = inlined_call_operand.vmem [shape: f32[1,256], index: 6, kind: input, shape index: {}]
  %s7 = inlined_call_operand.hbm [shape: bf16[256,128], index: 7, kind: input, shape index: {}]
  %s8 = inlined_call_operand.vmem [shape: f32[1,128], index: 8, kind: input, shape index: {}]
  %s9 = inlined_call_operand.hbm [shape: bf16[16,128], index: 9, kind: output, shape index: {}]
  %s10 = sld [smem:[#allocation0]]
  $region70: #{tpu_custom_call.1} parent=0
    _
  %s12 = ssub.s32 1, %s10
  %s13 = scalar_select 0, %s12, %s10
  $region1: #{tpu_custom_call.1} parent=0
    #allocation2 [shape = 'u8[4096]{0}', space=vmem, size = 0x1000, scoped, tag = 'input window, operand 0, single buffered']
    #allocation3 [shape = 's32[1]{0}', space=sflag, size = 0x4, scoped, tag = 'scoped memory for tpu_custom_call.1']
    #allocation4 [shape = 's32[1]{0}', space=sflag, size = 0x4, scoped, tag = 'scoped memory for tpu_custom_call.1']
    #allocation5 [shape = 'u8[262144]{0}', space=vmem, size = 0x40000, scoped, tag = 'input window, operand 1, single buffered']
    #allocation6 [shape = 's32[1]{0}', space=sflag, size = 0x4, scoped, tag = 'scoped memory for tpu_custom_call.1']
    #allocation7 [shape = 'u8[4096]{0}', space=vmem, size = 0x1000, scoped, tag = 'input window, operand 2, single buffered']
    #allocation8 [shape = 'u8[1048576]{0}', space=vmem, size = 0x100000, scoped, tag = 'input window, operand 3, single buffered']
    #allocation9 [shape = 's32[1]{0}', space=sflag, size = 0x4, scoped, tag = 'scoped memory for tpu_custom_call.1']
    #allocation10 [shape = 'u8[262144]{0}', space=vmem, size = 0x40000, scoped, tag = 'input window, operand 5, single buffered']
    #allocation11 [shape = 'u8[65536]{0}', space=vmem, size = 0x10000, scoped, tag = 'input window, operand 7, single buffered']
    #allocation12 [shape = 's32[1]{0}', space=sflag, size = 0x4, scoped, tag = 'scoped memory for tpu_custom_call.1']
    #allocation13 [shape = 'u8[4096]{0}', space=vmem, size = 0x1000, scoped, tag = 'output window, operand 0, single buffered']
    %14 = vsyncpa [#allocation3], 0
    %15 = vsyncpa [#allocation6], 0
    %16 = vsyncpa [#allocation9], 0
    %17 = vsyncpa [#allocation12], 0
    %18 = vsyncpa [#allocation4], 0
    // Predicated region
    $region2: #{tpu_custom_call.1} parent=1 // pred_check
      _
    $region3: #{tpu_custom_call.1} parent=1 // pred_check_branch
      %20 = sbr.rel (0) target = $region5
    $region4: #{tpu_custom_call.1} parent=1 // pred_region
      %s22 = ssub.s32 128, 128
      %23 = vsyncadd [#allocation3], %s22
      %s24 = sshll.u32 [#allocation2], 4
      %s25 = int_to_ptr.vmem [resolvable:$true] %s24
      %30 = dma.hbm_to_vmem [thread:$0]  %s0, 128, %s25, [#allocation3], 64, 64, 4
    $region5: #{tpu_custom_call.1} parent=1 // pred_fallthru
      _
    // Predicated region
    $region6: #{tpu_custom_call.1} parent=1 // pred_check
      _
    $region7: #{tpu_custom_call.1} parent=1 // pred_check_branch
      %32 = sbr.rel (0) target = $region9
    $region8: #{tpu_custom_call.1} parent=1 // pred_region
      %s34 = ssub.s32 8192, 8192
      %35 = vsyncadd [#allocation6], %s34
      %s36 = sshll.u32 [#allocation5], 4
      %s37 = int_to_ptr.vmem [resolvable:$true] %s36
      %42 = dma.hbm_to_vmem [thread:$0]  %s1, 8192, %s37, [#allocation6], 512, 512, 32
    $region9: #{tpu_custom_call.1} parent=1 // pred_fallthru
      _
    // Predicated region
    $region10: #{tpu_custom_call.1} parent=1 // pred_check
      _
    $region11: #{tpu_custom_call.1} parent=1 // pred_check_branch
      %44 = sbr.rel (0) target = $region13
    $region12: #{tpu_custom_call.1} parent=1 // pred_region
      %s46 = ssub.s32 128, 128
      %47 = vsyncadd [#allocation6], %s46
      %s49 = sshll.u32 [#allocation7], 4
      %s50 = int_to_ptr.vmem [resolvable:$true] %s49
      %52 = dma.hbm_to_vmem [thread:$0]  %s2, 128, %s50, [#allocation6]
    $region13: #{tpu_custom_call.1} parent=1 // pred_fallthru
      _
    // Predicated region
    $region14: #{tpu_custom_call.1} parent=1 // pred_check
      _
    $region15: #{tpu_custom_call.1} parent=1 // pred_check_branch
      %54 = sbr.rel (0) target = $region17
    $region16: #{tpu_custom_call.1} parent=1 // pred_region
      %s56 = ssub.s32 32768, 32768
      %57 = vsyncadd [#allocation9], %s56
      %s58 = sshll.u32 [#allocation8], 4
      %s59 = int_to_ptr.vmem [resolvable:$true] %s58
      %64 = dma.hbm_to_vmem [thread:$0]  %s3, 32768, %s59, [#allocation9], 256, 256, 16
    $region17: #{tpu_custom_call.1} parent=1 // pred_fallthru
      _
    // Predicated region
    $region18: #{tpu_custom_call.1} parent=1 // pred_check
      _
    $region19: #{tpu_custom_call.1} parent=1 // pred_check_branch
      %66 = sbr.rel (0) target = $region21
    $region20: #{tpu_custom_call.1} parent=1 // pred_region
      _
    $region21: #{tpu_custom_call.1} parent=1 // pred_fallthru
      _
    // Predicated region
    $region22: #{tpu_custom_call.1} parent=1 // pred_check
      _
    $region23: #{tpu_custom_call.1} parent=1 // pred_check_branch
      %68 = sbr.rel (0) target = $region25
    $region24: #{tpu_custom_call.1} parent=1 // pred_region
      %s70 = ssub.s32 8192, 8192
      %71 = vsyncadd [#allocation9], %s70
      %s72 = sshll.u32 [#allocation10], 4
      %s73 = int_to_ptr.vmem [resolvable:$true] %s72
      %78 = dma.hbm_to_vmem [thread:$0]  %s5, 8192, %s73, [#allocation9], 128, 128, 8
    $region25: #{tpu_custom_call.1} parent=1 // pred_fallthru
      _
    // Predicated region
    $region26: #{tpu_custom_call.1} parent=1 // pred_check
      _
    $region27: #{tpu_custom_call.1} parent=1 // pred_check_branch
      %80 = sbr.rel (0) target = $region29
    $region28: #{tpu_custom_call.1} parent=1 // pred_region
      _
    $region29: #{tpu_custom_call.1} parent=1 // pred_fallthru
      _
    // Predicated region
    $region30: #{tpu_custom_call.1} parent=1 // pred_check
      _
    $region31: #{tpu_custom_call.1} parent=1 // pred_check_branch
      %82 = sbr.rel (0) target = $region33
    $region32: #{tpu_custom_call.1} parent=1 // pred_region
      %s84 = ssub.s32 2048, 2048
      %85 = vsyncadd [#allocation12], %s84
      %s86 = sshll.u32 [#allocation11], 4
      %s87 = int_to_ptr.vmem [resolvable:$true] %s86
      %92 = dma.hbm_to_vmem [thread:$0]  %s7, 2048, %s87, [#allocation12], 64, 64, 4
    $region33: #{tpu_custom_call.1} parent=1 // pred_fallthru
      _
    // Predicated region
    $region34: #{tpu_custom_call.1} parent=1 // pred_check
      _
    $region35: #{tpu_custom_call.1} parent=1 // pred_check_branch
      %94 = sbr.rel (0) target = $region37
    $region36: #{tpu_custom_call.1} parent=1 // pred_region
      _
    $region37: #{tpu_custom_call.1} parent=1 // pred_fallthru
      _
    // Predicated region
    $region38: #{tpu_custom_call.1} parent=1 // pred_check
      _
    $region39: #{tpu_custom_call.1} parent=1 // pred_check_branch
      %96 = sbr.rel (0) target = $region41
    $region40: #{tpu_custom_call.1} parent=1 // pred_region
      %97 = dma.done [#allocation3], 128
    $region41: #{tpu_custom_call.1} parent=1 // pred_fallthru
      _
    // Predicated region
    $region42: #{tpu_custom_call.1} parent=1 // pred_check
      _
    $region43: #{tpu_custom_call.1} parent=1 // pred_check_branch
      %99 = sbr.rel (0) target = $region45
    $region44: #{tpu_custom_call.1} parent=1 // pred_region
      %100 = dma.done [#allocation6], 8192
    $region45: #{tpu_custom_call.1} parent=1 // pred_fallthru
      _
    // Predicated region
    $region46: #{tpu_custom_call.1} parent=1 // pred_check
      _
    $region47: #{tpu_custom_call.1} parent=1 // pred_check_branch
      %102 = sbr.rel (0) target = $region49
    $region48: #{tpu_custom_call.1} parent=1 // pred_region
      %103 = dma.done [#allocation6], 128
    $region49: #{tpu_custom_call.1} parent=1 // pred_fallthru
      _
    // Predicated region
    $region50: #{tpu_custom_call.1} parent=1 // pred_check
      _
    $region51: #{tpu_custom_call.1} parent=1 // pred_check_branch
      %105 = sbr.rel (0) target = $region53
    $region52: #{tpu_custom_call.1} parent=1 // pred_region
      %106 = dma.done [#allocation9], 32768
    $region53: #{tpu_custom_call.1} parent=1 // pred_fallthru
      _
    // Predicated region
    $region54: #{tpu_custom_call.1} parent=1 // pred_check
      _
    $region55: #{tpu_custom_call.1} parent=1 // pred_check_branch
      %108 = sbr.rel (0) target = $region57
    $region56: #{tpu_custom_call.1} parent=1 // pred_region
      %109 = dma.done [#allocation9], 8192
    $region57: #{tpu_custom_call.1} parent=1 // pred_fallthru
      _
    // Predicated region
    $region58: #{tpu_custom_call.1} parent=1 // pred_check
      _
    $region59: #{tpu_custom_call.1} parent=1 // pred_check_branch
      %111 = sbr.rel (0) target = $region61
    $region60: #{tpu_custom_call.1} parent=1 // pred_region
      %112 = dma.done [#allocation12], 2048
    $region61: #{tpu_custom_call.1} parent=1 // pred_fallthru
      _
    %v114 = vld [vmem:[#allocation2] sm:$0xf]
    %v115 = vld [vmem:[#allocation2 + $0x4] sm:$0xf]
    %v116 = vld [vmem:[#allocation5] sm:$0xff]
    %v117 = vld [vmem:[#allocation5 + $0x8] sm:$0xff]
    %v118 = vld [vmem:[#allocation5 + $0x10] sm:$0xff]
    %v119 = vld [vmem:[#allocation5 + $0x18] sm:$0xff]
    %v120 = vld [vmem:[#allocation5 + $0x20] sm:$0xff]
    %v121 = vld [vmem:[#allocation5 + $0x28] sm:$0xff]
    %v122 = vld [vmem:[#allocation5 + $0x30] sm:$0xff]
    %v123 = vld [vmem:[#allocation5 + $0x38] sm:$0xff]
    %v124 = vld [vmem:[#allocation5 + $0x40] sm:$0xff]
    %v125 = vld [vmem:[#allocation5 + $0x48] sm:$0xff]
    %v126 = vld [vmem:[#allocation5 + $0x50] sm:$0xff]
    %v127 = vld [vmem:[#allocation5 + $0x58] sm:$0xff]
    %v128 = vld [vmem:[#allocation5 + $0x60] sm:$0xff]
    %v129 = vld [vmem:[#allocation5 + $0x68] sm:$0xff]
    %v130 = vld [vmem:[#allocation5 + $0x70] sm:$0xff]
    %v131 = vld [vmem:[#allocation5 + $0x78] sm:$0xff]
    %v132 = vld [vmem:[#allocation5 + $0x80] sm:$0xff]
    %v133 = vld [vmem:[#allocation5 + $0x88] sm:$0xff]
    %v134 = vld [vmem:[#allocation5 + $0x90] sm:$0xff]
    %v135 = vld [vmem:[#allocation5 + $0x98] sm:$0xff]
    %v136 = vld [vmem:[#allocation5 + $0xa0] sm:$0xff]
    %v137 = vld [vmem:[#allocation5 + $0xa8] sm:$0xff]
    %v138 = vld [vmem:[#allocation5 + $0xb0] sm:$0xff]
    %v139 = vld [vmem:[#allocation5 + $0xb8] sm:$0xff]
    %v140 = vld [vmem:[#allocation5 + $0xc0] sm:$0xff]
    %v141 = vld [vmem:[#allocation5 + $0xc8] sm:$0xff]
    %v142 = vld [vmem:[#allocation5 + $0xd0] sm:$0xff]
    %v143 = vld [vmem:[#allocation5 + $0xd8] sm:$0xff]
    %v144 = vld [vmem:[#allocation5 + $0xe0] sm:$0xff]
    %v145 = vld [vmem:[#allocation5 + $0xe8] sm:$0xff]
    %v146 = vld [vmem:[#allocation5 + $0xf0] sm:$0xff]
    %v147 = vld [vmem:[#allocation5 + $0xf8] sm:$0xff]
    %v148 = vld [vmem:[#allocation5 + $0x100] sm:$0xff]
    %v149 = vld [vmem:[#allocation5 + $0x108] sm:$0xff]
    %v150 = vld [vmem:[#allocation5 + $0x110] sm:$0xff]
    %v151 = vld [vmem:[#allocation5 + $0x118] sm:$0xff]
    %v152 = vld [vmem:[#allocation5 + $0x120] sm:$0xff]
    %v153 = vld [vmem:[#allocation5 + $0x128] sm:$0xff]
    %v154 = vld [vmem:[#allocation5 + $0x130] sm:$0xff]
    %v155 = vld [vmem:[#allocation5 + $0x138] sm:$0xff]
    %v156 = vld [vmem:[#allocation5 + $0x140] sm:$0xff]
    %v157 = vld [vmem:[#allocation5 + $0x148] sm:$0xff]
    %v158 = vld [vmem:[#allocation5 + $0x150] sm:$0xff]
    %v159 = vld [vmem:[#allocation5 + $0x158] sm:$0xff]
    %v160 = vld [vmem:[#allocation5 + $0x160] sm:$0xff]
    %v161 = vld [vmem:[#allocation5 + $0x168] sm:$0xff]
    %v162 = vld [vmem:[#allocation5 + $0x170] sm:$0xff]
    %v163 = vld [vmem:[#allocation5 + $0x178] sm:$0xff]
    %v164 = vld [vmem:[#allocation5 + $0x180] sm:$0xff]
    %v165 = vld [vmem:[#allocation5 + $0x188] sm:$0xff]
    %v166 = vld [vmem:[#allocation5 + $0x190] sm:$0xff]
    %v167 = vld [vmem:[#allocation5 + $0x198] sm:$0xff]
    %v168 = vld [vmem:[#allocation5 + $0x1a0] sm:$0xff]
    %v169 = vld [vmem:[#allocation5 + $0x1a8] sm:$0xff]
    %v170 = vld [vmem:[#allocation5 + $0x1b0] sm:$0xff]
    %v171 = vld [vmem:[#allocation5 + $0x1b8] sm:$0xff]
    %v172 = vld [vmem:[#allocation5 + $0x1c0] sm:$0xff]
    %v173 = vld [vmem:[#allocation5 + $0x1c8] sm:$0xff]
    %v174 = vld [vmem:[#allocation5 + $0x1d0] sm:$0xff]
    %v175 = vld [vmem:[#allocation5 + $0x1d8] sm:$0xff]
    %v176 = vld [vmem:[#allocation5 + $0x1e0] sm:$0xff]
    %v177 = vld [vmem:[#allocation5 + $0x1e8] sm:$0xff]
    %v178 = vld [vmem:[#allocation5 + $0x1f0] sm:$0xff]
    %v179 = vld [vmem:[#allocation5 + $0x1f8] sm:$0xff]
    %v180 = vld [vmem:[#allocation7] sm:$0xff]
    %v182 = vlaneseq
    %v183 = vshrl.u32 %v182, 7
    %v184 = vsub.s32 0, %v183
    %v185 = vrot.slane %v180, %v184
    %v186 = vlaneseq
    %v187 = vshrl.u32 %v186, 7
    %v188 = vsub.s32 1, %v187
    %v189 = vrot.slane %v180, %v188
    %v190 = vlaneseq
    %v191 = vshrl.u32 %v190, 7
    %v192 = vsub.s32 2, %v191
    %v193 = vrot.slane %v180, %v192
    %v194 = vlaneseq
    %v195 = vshrl.u32 %v194, 7
    %v196 = vsub.s32 3, %v195
    %v197 = vrot.slane %v180, %v196
    %v198 = vlaneseq
    %v199 = vshrl.u32 %v198, 7
    %v200 = vsub.s32 4, %v199
    %v201 = vrot.slane %v180, %v200
    %v202 = vlaneseq
    %v203 = vshrl.u32 %v202, 7
    %v204 = vsub.s32 5, %v203
    %v205 = vrot.slane %v180, %v204
    %v206 = vlaneseq
    %v207 = vshrl.u32 %v206, 7
    %v208 = vsub.s32 6, %v207
    %v209 = vrot.slane %v180, %v208
    %v210 = vlaneseq
    %v211 = vshrl.u32 %v210, 7
    %v212 = vsub.s32 7, %v211
    %v213 = vrot.slane %v180, %v212
    %v224 = vunpack.c.l.b16 %v114
    %v225 = vunpack.c.l.b16 %v115
    %v226 = vpack.c.b16 %v225, %v224
    %v292 = vunpack.c.l.b16 %v116
    %v293 = vunpack.c.h.b16 %v116
    %v294 = vunpack.c.l.b16 %v117
    %v295 = vunpack.c.h.b16 %v117
    %v296 = vunpack.c.l.b16 %v118
    %v297 = vunpack.c.h.b16 %v118
    %v298 = vunpack.c.l.b16 %v119
    %v299 = vunpack.c.h.b16 %v119
    %v300 = vunpack.c.l.b16 %v120
    %v301 = vunpack.c.h.b16 %v120
    %v302 = vunpack.c.l.b16 %v121
    %v303 = vunpack.c.h.b16 %v121
    %v304 = vunpack.c.l.b16 %v122
    %v305 = vunpack.c.h.b16 %v122
    %v306 = vunpack.c.l.b16 %v123
    %v307 = vunpack.c.h.b16 %v123
    %v308 = vunpack.c.l.b16 %v124
    %v309 = vunpack.c.h.b16 %v124
    %v310 = vunpack.c.l.b16 %v125
    %v311 = vunpack.c.h.b16 %v125
    %v312 = vunpack.c.l.b16 %v126
    %v313 = vunpack.c.h.b16 %v126
    %v314 = vunpack.c.l.b16 %v127
    %v315 = vunpack.c.h.b16 %v127
    %v316 = vunpack.c.l.b16 %v128
    %v317 = vunpack.c.h.b16 %v128
    %v318 = vunpack.c.l.b16 %v129
    %v319 = vunpack.c.h.b16 %v129
    %v320 = vunpack.c.l.b16 %v130
    %v321 = vunpack.c.h.b16 %v130
    %v322 = vunpack.c.l.b16 %v131
    %v323 = vunpack.c.h.b16 %v131
    %v324 = vunpack.c.l.b16 %v132
    %v325 = vunpack.c.h.b16 %v132
    %v326 = vunpack.c.l.b16 %v133
    %v327 = vunpack.c.h.b16 %v133
    %v328 = vunpack.c.l.b16 %v134
    %v329 = vunpack.c.h.b16 %v134
    %v330 = vunpack.c.l.b16 %v135
    %v331 = vunpack.c.h.b16 %v135
    %v332 = vunpack.c.l.b16 %v136
    %v333 = vunpack.c.h.b16 %v136
    %v334 = vunpack.c.l.b16 %v137
    %v335 = vunpack.c.h.b16 %v137
    %v336 = vunpack.c.l.b16 %v138
    %v337 = vunpack.c.h.b16 %v138
    %v338 = vunpack.c.l.b16 %v139
    %v339 = vunpack.c.h.b16 %v139
    %v340 = vunpack.c.l.b16 %v140
    %v341 = vunpack.c.h.b16 %v140
    %v342 = vunpack.c.l.b16 %v141
    %v343 = vunpack.c.h.b16 %v141
    %v344 = vunpack.c.l.b16 %v142
    %v345 = vunpack.c.h.b16 %v142
    %v346 = vunpack.c.l.b16 %v143
    %v347 = vunpack.c.h.b16 %v143
    %v348 = vunpack.c.l.b16 %v144
    %v349 = vunpack.c.h.b16 %v144
    %v350 = vunpack.c.l.b16 %v145
    %v351 = vunpack.c.h.b16 %v145
    %v352 = vunpack.c.l.b16 %v146
    %v353 = vunpack.c.h.b16 %v146
    %v354 = vunpack.c.l.b16 %v147
    %v355 = vunpack.c.h.b16 %v147
    %v356 = vunpack.c.l.b16 %v148
    %v357 = vunpack.c.h.b16 %v148
    %v358 = vunpack.c.l.b16 %v149
    %v359 = vunpack.c.h.b16 %v149
    %v360 = vunpack.c.l.b16 %v150
    %v361 = vunpack.c.h.b16 %v150
    %v362 = vunpack.c.l.b16 %v151
    %v363 = vunpack.c.h.b16 %v151
    %v364 = vunpack.c.l.b16 %v152
    %v365 = vunpack.c.h.b16 %v152
    %v366 = vunpack.c.l.b16 %v153
    %v367 = vunpack.c.h.b16 %v153
    %v368 = vunpack.c.l.b16 %v154
    %v369 = vunpack.c.h.b16 %v154
    %v370 = vunpack.c.l.b16 %v155
    %v371 = vunpack.c.h.b16 %v155
    %v372 = vunpack.c.l.b16 %v156
    %v373 = vunpack.c.h.b16 %v156
    %v374 = vunpack.c.l.b16 %v157
    %v375 = vunpack.c.h.b16 %v157
    %v376 = vunpack.c.l.b16 %v158
    %v377 = vunpack.c.h.b16 %v158
    %v378 = vunpack.c.l.b16 %v159
    %v379 = vunpack.c.h.b16 %v159
    %v380 = vunpack.c.l.b16 %v160
    %v381 = vunpack.c.h.b16 %v160
    %v382 = vunpack.c.l.b16 %v161
    %v383 = vunpack.c.h.b16 %v161
    %v384 = vunpack.c.l.b16 %v162
    %v385 = vunpack.c.h.b16 %v162
    %v386 = vunpack.c.l.b16 %v163
    %v387 = vunpack.c.h.b16 %v163
    %v388 = vunpack.c.l.b16 %v164
    %v389 = vunpack.c.h.b16 %v164
    %v390 = vunpack.c.l.b16 %v165
    %v391 = vunpack.c.h.b16 %v165
    %v392 = vunpack.c.l.b16 %v166
    %v393 = vunpack.c.h.b16 %v166
    %v394 = vunpack.c.l.b16 %v167
    %v395 = vunpack.c.h.b16 %v167
    %v396 = vunpack.c.l.b16 %v168
    %v397 = vunpack.c.h.b16 %v168
    %v398 = vunpack.c.l.b16 %v169
    %v399 = vunpack.c.h.b16 %v169
    %v400 = vunpack.c.l.b16 %v170
    %v401 = vunpack.c.h.b16 %v170
    %v402 = vunpack.c.l.b16 %v171
    %v403 = vunpack.c.h.b16 %v171
    %v404 = vunpack.c.l.b16 %v172
    %v405 = vunpack.c.h.b16 %v172
    %v406 = vunpack.c.l.b16 %v173
    %v407 = vunpack.c.h.b16 %v173
    %v408 = vunpack.c.l.b16 %v174
    %v409 = vunpack.c.h.b16 %v174
    %v410 = vunpack.c.l.b16 %v175
    %v411 = vunpack.c.h.b16 %v175
    %v412 = vunpack.c.l.b16 %v176
    %v413 = vunpack.c.h.b16 %v176
    %v414 = vunpack.c.l.b16 %v177
    %v415 = vunpack.c.h.b16 %v177
    %v416 = vunpack.c.l.b16 %v178
    %v417 = vunpack.c.h.b16 %v178
    %v418 = vunpack.c.l.b16 %v179
    %v419 = vunpack.c.h.b16 %v179
    %v420 = vpack.c.b16 %v300, %v292
    %v421 = vpack.c.b16 %v301, %v293
    %v422 = vpack.c.b16 %v302, %v294
    %v423 = vpack.c.b16 %v303, %v295
    %v424 = vpack.c.b16 %v304, %v296
    %v425 = vpack.c.b16 %v305, %v297
    %v426 = vpack.c.b16 %v306, %v298
    %v427 = vpack.c.b16 %v307, %v299
    %v428 = vpack.c.b16 %v316, %v308
    %v429 = vpack.c.b16 %v317, %v309
    %v430 = vpack.c.b16 %v318, %v310
    %v431 = vpack.c.b16 %v319, %v311
    %v432 = vpack.c.b16 %v320, %v312
    %v433 = vpack.c.b16 %v321, %v313
    %v434 = vpack.c.b16 %v322, %v314
    %v435 = vpack.c.b16 %v323, %v315
    %v436 = vpack.c.b16 %v332, %v324
    %v437 = vpack.c.b16 %v333, %v325
    %v438 = vpack.c.b16 %v334, %v326
    %v439 = vpack.c.b16 %v335, %v327
    %v440 = vpack.c.b16 %v336, %v328
    %v441 = vpack.c.b16 %v337, %v329
    %v442 = vpack.c.b16 %v338, %v330
    %v443 = vpack.c.b16 %v339, %v331
    %v444 = vpack.c.b16 %v348, %v340
    %v445 = vpack.c.b16 %v349, %v341
    %v446 = vpack.c.b16 %v350, %v342
    %v447 = vpack.c.b16 %v351, %v343
    %v448 = vpack.c.b16 %v352, %v344
    %v449 = vpack.c.b16 %v353, %v345
    %v450 = vpack.c.b16 %v354, %v346
    %v451 = vpack.c.b16 %v355, %v347
    %v452 = vpack.c.b16 %v364, %v356
    %v453 = vpack.c.b16 %v365, %v357
    %v454 = vpack.c.b16 %v366, %v358
    %v455 = vpack.c.b16 %v367, %v359
    %v456 = vpack.c.b16 %v368, %v360
    %v457 = vpack.c.b16 %v369, %v361
    %v458 = vpack.c.b16 %v370, %v362
    %v459 = vpack.c.b16 %v371, %v363
    %v460 = vpack.c.b16 %v380, %v372
    %v461 = vpack.c.b16 %v381, %v373
    %v462 = vpack.c.b16 %v382, %v374
    %v463 = vpack.c.b16 %v383, %v375
    %v464 = vpack.c.b16 %v384, %v376
    %v465 = vpack.c.b16 %v385, %v377
    %v466 = vpack.c.b16 %v386, %v378
    %v467 = vpack.c.b16 %v387, %v379
    %v468 = vpack.c.b16 %v396, %v388
    %v469 = vpack.c.b16 %v397, %v389
    %v470 = vpack.c.b16 %v398, %v390
    %v471 = vpack.c.b16 %v399, %v391
    %v472 = vpack.c.b16 %v400, %v392
    %v473 = vpack.c.b16 %v401, %v393
    %v474 = vpack.c.b16 %v402, %v394
    %v475 = vpack.c.b16 %v403, %v395
    %v476 = vpack.c.b16 %v412, %v404
    %v477 = vpack.c.b16 %v413, %v405
    %v478 = vpack.c.b16 %v414, %v406
    %v479 = vpack.c.b16 %v415, %v407
    %v480 = vpack.c.b16 %v416, %v408
    %v481 = vpack.c.b16 %v417, %v409
    %v482 = vpack.c.b16 %v418, %v410
    %v483 = vpack.c.b16 %v419, %v411
    %548 = vmatprep.subr.bf16.mxu0 %v421
    %549 = vmatpush1.bf16.msra.mxu0 %v420
    %550 = vmatprep.subr.bf16.mxu0 %v429
    %551 = vmatpush1.bf16.msra.mxu0 %v428
    %552 = vmatprep.subr.bf16.mxu0 %v437
    %553 = vmatpush1.bf16.msra.mxu0 %v436
    %554 = vmatprep.subr.bf16.mxu0 %v445
    %555 = vmatpush1.bf16.msra.mxu0 %v444
    %556 = vmatprep.subr.bf16.mxu0 %v453
    %557 = vmatpush1.bf16.msra.mxu0 %v452
    %558 = vmatprep.subr.bf16.mxu0 %v461
    %559 = vmatpush1.bf16.msra.mxu0 %v460
    %560 = vmatprep.subr.bf16.mxu0 %v469
    %561 = vmatpush1.bf16.msra.mxu0 %v468
    %562 = vmatprep.subr.bf16.mxu0 %v477
    %563 = vmatpush1.bf16.msra.mxu0 %v476
    %564 = vmatprep.subr.bf16.mxu0 0
    %565 = vmatpush1.bf16.msra.mxu0 0
    %566 = vmatprep.subr.bf16.mxu0 0
    %567 = vmatpush1.bf16.msra.mxu0 0
    %568 = vmatprep.subr.bf16.mxu0 0
    %569 = vmatpush1.bf16.msra.mxu0 0
    %570 = vmatprep.subr.bf16.mxu0 0
    %571 = vmatpush1.bf16.msra.mxu0 0
    %572 = vmatprep.subr.bf16.mxu0 0
    %573 = vmatpush1.bf16.msra.mxu0 0
    %574 = vmatprep.subr.bf16.mxu0 0
    %575 = vmatpush1.bf16.msra.mxu0 0
    %576 = vmatprep.subr.bf16.mxu0 0
    %577 = vmatpush1.bf16.msra.mxu0 0
    %578 = vmatprep.subr.bf16.mxu0 0
    %579 = vmatpush1.bf16.msra.mxu0 0
    %580 = vmatprep.mubr.bf16.mxu0 0
    %581 = vmatmul.mubr.bf16.gmra.mrb[0].mxu0 %v226
    %v582 = vpop.f32.mrb[0].mxu0
    %v583 = vadd.f32 %v185, %v582
    %v584 = vpop.f32.mrb[0].mxu0
    %v585 = vadd.f32 %v189, %v584
    %v586 = vpop.f32.mrb[0].mxu0
    %v587 = vadd.f32 %v185, %v586
    %v588 = vpop.f32.mrb[0].mxu0
    %v589 = vadd.f32 %v189, %v588
    %590 = vdwg.mxu0
    %591 = vmatprep.subr.bf16.mxu0 %v423
    %592 = vmatpush1.bf16.msra.mxu0 %v422
    %593 = vmatprep.subr.bf16.mxu0 %v431
    %594 = vmatpush1.bf16.msra.mxu0 %v430
    %595 = vmatprep.subr.bf16.mxu0 %v439
    %596 = vmatpush1.bf16.msra.mxu0 %v438
    %597 = vmatprep.subr.bf16.mxu0 %v447
    %598 = vmatpush1.bf16.msra.mxu0 %v446
    %599 = vmatprep.subr.bf16.mxu0 %v455
    %600 = vmatpush1.bf16.msra.mxu0 %v454
    %601 = vmatprep.subr.bf16.mxu0 %v463
    %602 = vmatpush1.bf16.msra.mxu0 %v462
    %603 = vmatprep.subr.bf16.mxu0 %v471
    %604 = vmatpush1.bf16.msra.mxu0 %v470
    %605 = vmatprep.subr.bf16.mxu0 %v479
    %606 = vmatpush1.bf16.msra.mxu0 %v478
    %607 = vmatprep.subr.bf16.mxu0 0
    %608 = vmatpush1.bf16.msra.mxu0 0
    %609 = vmatprep.subr.bf16.mxu0 0
    %610 = vmatpush1.bf16.msra.mxu0 0
    %611 = vmatprep.subr.bf16.mxu0 0
    %612 = vmatpush1.bf16.msra.mxu0 0
    %613 = vmatprep.subr.bf16.mxu0 0
    %614 = vmatpush1.bf16.msra.mxu0 0
    %615 = vmatprep.subr.bf16.mxu0 0
    %616 = vmatpush1.bf16.msra.mxu0 0
    %617 = vmatprep.subr.bf16.mxu0 0
    %618 = vmatpush1.bf16.msra.mxu0 0
    %619 = vmatprep.subr.bf16.mxu0 0
    %620 = vmatpush1.bf16.msra.mxu0 0
    %621 = vmatprep.subr.bf16.mxu0 0
    %622 = vmatpush1.bf16.msra.mxu0 0
    %623 = vmatprep.mubr.bf16.mxu0 0
    %624 = vmatmul.mubr.bf16.gmra.mrb[0].mxu0 %v226
    %v625 = vpop.f32.mrb[0].mxu0
    %v626 = vadd.f32 %v193, %v625
    %v627 = vpop.f32.mrb[0].mxu0
    %v628 = vadd.f32 %v197, %v627
    %v629 = vpop.f32.mrb[0].mxu0
    %v630 = vadd.f32 %v193, %v629
    %v631 = vpop.f32.mrb[0].mxu0
    %v632 = vadd.f32 %v197, %v631
    %633 = vdwg.mxu0
    %634 = vmatprep.subr.bf16.mxu0 %v425
    %635 = vmatpush1.bf16.msra.mxu0 %v424
    %636 = vmatprep.subr.bf16.mxu0 %v433
    %637 = vmatpush1.bf16.msra.mxu0 %v432
    %638 = vmatprep.subr.bf16.mxu0 %v441
    %639 = vmatpush1.bf16.msra.mxu0 %v440
    %640 = vmatprep.subr.bf16.mxu0 %v449
    %641 = vmatpush1.bf16.msra.mxu0 %v448
    %642 = vmatprep.subr.bf16.mxu0 %v457
    %643 = vmatpush1.bf16.msra.mxu0 %v456
    %644 = vmatprep.subr.bf16.mxu0 %v465
    %645 = vmatpush1.bf16.msra.mxu0 %v464
    %646 = vmatprep.subr.bf16.mxu0 %v473
    %647 = vmatpush1.bf16.msra.mxu0 %v472
    %648 = vmatprep.subr.bf16.mxu0 %v481
    %649 = vmatpush1.bf16.msra.mxu0 %v480
    %650 = vmatprep.subr.bf16.mxu0 0
    %651 = vmatpush1.bf16.msra.mxu0 0
    %652 = vmatprep.subr.bf16.mxu0 0
    %653 = vmatpush1.bf16.msra.mxu0 0
    %654 = vmatprep.subr.bf16.mxu0 0
    %655 = vmatpush1.bf16.msra.mxu0 0
    %656 = vmatprep.subr.bf16.mxu0 0
    %657 = vmatpush1.bf16.msra.mxu0 0
    %658 = vmatprep.subr.bf16.mxu0 0
    %659 = vmatpush1.bf16.msra.mxu0 0
    %660 = vmatprep.subr.bf16.mxu0 0
    %661 = vmatpush1.bf16.msra.mxu0 0
    %662 = vmatprep.subr.bf16.mxu0 0
    %663 = vmatpush1.bf16.msra.mxu0 0
    %664 = vmatprep.subr.bf16.mxu0 0
    %665 = vmatpush1.bf16.msra.mxu0 0
    %666 = vmatprep.mubr.bf16.mxu0 0
    %667 = vmatmul.mubr.bf16.gmra.mrb[0].mxu0 %v226
    %v668 = vpop.f32.mrb[0].mxu0
    %v669 = vadd.f32 %v201, %v668
    %v670 = vpop.f32.mrb[0].mxu0
    %v671 = vadd.f32 %v205, %v670
    %v672 = vpop.f32.mrb[0].mxu0
    %v673 = vadd.f32 %v201, %v672
    %v674 = vpop.f32.mrb[0].mxu0
    %v675 = vadd.f32 %v205, %v674
    %676 = vdwg.mxu0
    %677 = vmatprep.subr.bf16.mxu0 %v427
    %678 = vmatpush1.bf16.msra.mxu0 %v426
    %679 = vmatprep.subr.bf16.mxu0 %v435
    %680 = vmatpush1.bf16.msra.mxu0 %v434
    %681 = vmatprep.subr.bf16.mxu0 %v443
    %682 = vmatpush1.bf16.msra.mxu0 %v442
    %683 = vmatprep.subr.bf16.mxu0 %v451
    %684 = vmatpush1.bf16.msra.mxu0 %v450
    %685 = vmatprep.subr.bf16.mxu0 %v459
    %686 = vmatpush1.bf16.msra.mxu0 %v458
    %687 = vmatprep.subr.bf16.mxu0 %v467
    %688 = vmatpush1.bf16.msra.mxu0 %v466
    %689 = vmatprep.subr.bf16.mxu0 %v475
    %690 = vmatpush1.bf16.msra.mxu0 %v474
    %691 = vmatprep.subr.bf16.mxu0 %v483
    %692 = vmatpush1.bf16.msra.mxu0 %v482
    %693 = vmatprep.subr.bf16.mxu0 0
    %694 = vmatpush1.bf16.msra.mxu0 0
    %695 = vmatprep.subr.bf16.mxu0 0
    %696 = vmatpush1.bf16.msra.mxu0 0
    %697 = vmatprep.subr.bf16.mxu0 0
    %698 = vmatpush1.bf16.msra.mxu0 0
    %699 = vmatprep.subr.bf16.mxu0 0
    %700 = vmatpush1.bf16.msra.mxu0 0
    %701 = vmatprep.subr.bf16.mxu0 0
    %702 = vmatpush1.bf16.msra.mxu0 0
    %703 = vmatprep.subr.bf16.mxu0 0
    %704 = vmatpush1.bf16.msra.mxu0 0
    %705 = vmatprep.subr.bf16.mxu0 0
    %706 = vmatpush1.bf16.msra.mxu0 0
    %707 = vmatprep.subr.bf16.mxu0 0
    %708 = vmatpush1.bf16.msra.mxu0 0
    %709 = vmatprep.mubr.bf16.mxu0 0
    %710 = vmatmul.mubr.bf16.gmra.mrb[0].mxu0 %v226
    %v711 = vpop.f32.mrb[0].mxu0
    %v712 = vadd.f32 %v209, %v711
    %v713 = vpop.f32.mrb[0].mxu0
    %v714 = vadd.f32 %v213, %v713
    %v715 = vpop.f32.mrb[0].mxu0
    %v716 = vadd.f32 %v209, %v715
    %v717 = vpop.f32.mrb[0].mxu0
    %v718 = vadd.f32 %v213, %v717
    %719 = vdwg.mxu0
    %v720 = vmax.f32 %v583, 0.0
    %v721 = vmax.f32 %v585, 0.0
    %v722 = vmax.f32 %v626, 0.0
    %v723 = vmax.f32 %v628, 0.0
    %v724 = vmax.f32 %v669, 0.0
    %v725 = vmax.f32 %v671, 0.0
    %v726 = vmax.f32 %v712, 0.0
    %v727 = vmax.f32 %v714, 0.0
    %v728 = vmax.f32 %v587, 0.0
    %v729 = vmax.f32 %v589, 0.0
    %v730 = vmax.f32 %v630, 0.0
    %v731 = vmax.f32 %v632, 0.0
    %v732 = vmax.f32 %v673, 0.0
    %v733 = vmax.f32 %v675, 0.0
    %v734 = vmax.f32 %v716, 0.0
    %v735 = vmax.f32 %v718, 0.0
    %v736 = vpack.c.bf16 %v728, %v720
    %v737 = vpack.c.bf16 %v729, %v721
    %v738 = vpack.c.bf16 %v730, %v722
    %v739 = vpack.c.bf16 %v731, %v723
    %v740 = vpack.c.bf16 %v732, %v724
    %v741 = vpack.c.bf16 %v733, %v725
    %v742 = vpack.c.bf16 %v734, %v726
    %v743 = vpack.c.bf16 %v735, %v727
    %v744 = vld [vmem:[#allocation8] sm:$0xff]
    %v745 = vld [vmem:[#allocation8 + $0x8] sm:$0xff]
    %v746 = vld [vmem:[#allocation8 + $0x10] sm:$0xff]
    %v747 = vld [vmem:[#allocation8 + $0x18] sm:$0xff]
    %v748 = vld [vmem:[#allocation8 + $0x20] sm:$0xff]
    %v749 = vld [vmem:[#allocation8 + $0x28] sm:$0xff]
    %v750 = vld [vmem:[#allocation8 + $0x30] sm:$0xff]
    %v751 = vld [vmem:[#allocation8 + $0x38] sm:$0xff]
    %v752 = vld [vmem:[#allocation8 + $0x40] sm:$0xff]
    %v753 = vld [vmem:[#allocation8 + $0x48] sm:$0xff]
    %v754 = vld [vmem:[#allocation8 + $0x50] sm:$0xff]
    %v755 = vld [vmem:[#allocation8 + $0x58] sm:$0xff]
    %v756 = vld [vmem:[#allocation8 + $0x60] sm:$0xff]
    %v757 = vld [vmem:[#allocation8 + $0x68] sm:$0xff]
    %v758 = vld [vmem:[#allocation8 + $0x70] sm:$0xff]
    %v759 = vld [vmem:[#allocation8 + $0x78] sm:$0xff]
    %v760 = vld [vmem:[#allocation8 + $0x80] sm:$0xff]
    %v761 = vld [vmem:[#allocation8 + $0x88] sm:$0xff]
    %v762 = vld [vmem:[#allocation8 + $0x90] sm:$0xff]
    %v763 = vld [vmem:[#allocation8 + $0x98] sm:$0xff]
    %v764 = vld [vmem:[#allocation8 + $0xa0] sm:$0xff]
    %v765 = vld [vmem:[#allocation8 + $0xa8] sm:$0xff]
    %v766 = vld [vmem:[#allocation8 + $0xb0] sm:$0xff]
    %v767 = vld [vmem:[#allocation8 + $0xb8] sm:$0xff]
    %v768 = vld [vmem:[#allocation8 + $0xc0] sm:$0xff]
    %v769 = vld [vmem:[#allocation8 + $0xc8] sm:$0xff]
    %v770 = vld [vmem:[#allocation8 + $0xd0] sm:$0xff]
    %v771 = vld [vmem:[#allocation8 + $0xd8] sm:$0xff]
    %v772 = vld [vmem:[#allocation8 + $0xe0] sm:$0xff]
    %v773 = vld [vmem:[#allocation8 + $0xe8] sm:$0xff]
    %v774 = vld [vmem:[#allocation8 + $0xf0] sm:$0xff]
    %v775 = vld [vmem:[#allocation8 + $0xf8] sm:$0xff]
    %v776 = vld [vmem:[#allocation8 + $0x100] sm:$0xff]
    %v777 = vld [vmem:[#allocation8 + $0x108] sm:$0xff]
    %v778 = vld [vmem:[#allocation8 + $0x110] sm:$0xff]
    %v779 = vld [vmem:[#allocation8 + $0x118] sm:$0xff]
    %v780 = vld [vmem:[#allocation8 + $0x120] sm:$0xff]
    %v781 = vld [vmem:[#allocation8 + $0x128] sm:$0xff]
    %v782 = vld [vmem:[#allocation8 + $0x130] sm:$0xff]
    %v783 = vld [vmem:[#allocation8 + $0x138] sm:$0xff]
    %v784 = vld [vmem:[#allocation8 + $0x140] sm:$0xff]
    %v785 = vld [vmem:[#allocation8 + $0x148] sm:$0xff]
    %v786 = vld [vmem:[#allocation8 + $0x150] sm:$0xff]
    %v787 = vld [vmem:[#allocation8 + $0x158] sm:$0xff]
    %v788 = vld [vmem:[#allocation8 + $0x160] sm:$0xff]
    %v789 = vld [vmem:[#allocation8 + $0x168] sm:$0xff]
    %v790 = vld [vmem:[#allocation8 + $0x170] sm:$0xff]
    %v791 = vld [vmem:[#allocation8 + $0x178] sm:$0xff]
    %v792 = vld [vmem:[#allocation8 + $0x180] sm:$0xff]
    %v793 = vld [vmem:[#allocation8 + $0x188] sm:$0xff]
    %v794 = vld [vmem:[#allocation8 + $0x190] sm:$0xff]
    %v795 = vld [vmem:[#allocation8 + $0x198] sm:$0xff]
    %v796 = vld [vmem:[#allocation8 + $0x1a0] sm:$0xff]
    %v797 = vld [vmem:[#allocation8 + $0x1a8] sm:$0xff]
    %v798 = vld [vmem:[#allocation8 + $0x1b0] sm:$0xff]
    %v799 = vld [vmem:[#allocation8 + $0x1b8] sm:$0xff]
    %v800 = vld [vmem:[#allocation8 + $0x1c0] sm:$0xff]
    %v801 = vld [vmem:[#allocation8 + $0x1c8] sm:$0xff]
    %v802 = vld [vmem:[#allocation8 + $0x1d0] sm:$0xff]
    %v803 = vld [vmem:[#allocation8 + $0x1d8] sm:$0xff]
    %v804 = vld [vmem:[#allocation8 + $0x1e0] sm:$0xff]
    %v805 = vld [vmem:[#allocation8 + $0x1e8] sm:$0xff]
    %v806 = vld [vmem:[#allocation8 + $0x1f0] sm:$0xff]
    %v807 = vld [vmem:[#allocation8 + $0x1f8] sm:$0xff]
    %v808 = vld [vmem:[#allocation8 + $0x200] sm:$0xff]
    %v809 = vld [vmem:[#allocation8 + $0x208] sm:$0xff]
    %v810 = vld [vmem:[#allocation8 + $0x210] sm:$0xff]
    %v811 = vld [vmem:[#allocation8 + $0x218] sm:$0xff]
    %v812 = vld [vmem:[#allocation8 + $0x220] sm:$0xff]
    %v813 = vld [vmem:[#allocation8 + $0x228] sm:$0xff]
    %v814 = vld [vmem:[#allocation8 + $0x230] sm:$0xff]
    %v815 = vld [vmem:[#allocation8 + $0x238] sm:$0xff]
    %v816 = vld [vmem:[#allocation8 + $0x240] sm:$0xff]
    %v817 = vld [vmem:[#allocation8 + $0x248] sm:$0xff]
    %v818 = vld [vmem:[#allocation8 + $0x250] sm:$0xff]
    %v819 = vld [vmem:[#allocation8 + $0x258] sm:$0xff]
    %v820 = vld [vmem:[#allocation8 + $0x260] sm:$0xff]
    %v821 = vld [vmem:[#allocation8 + $0x268] sm:$0xff]
    %v822 = vld [vmem:[#allocation8 + $0x270] sm:$0xff]
    %v823 = vld [vmem:[#allocation8 + $0x278] sm:$0xff]
    %v824 = vld [vmem:[#allocation8 + $0x280] sm:$0xff]
    %v825 = vld [vmem:[#allocation8 + $0x288] sm:$0xff]
    %v826 = vld [vmem:[#allocation8 + $0x290] sm:$0xff]
    %v827 = vld [vmem:[#allocation8 + $0x298] sm:$0xff]
    %v828 = vld [vmem:[#allocation8 + $0x2a0] sm:$0xff]
    %v829 = vld [vmem:[#allocation8 + $0x2a8] sm:$0xff]
    %v830 = vld [vmem:[#allocation8 + $0x2b0] sm:$0xff]
    %v831 = vld [vmem:[#allocation8 + $0x2b8] sm:$0xff]
    %v832 = vld [vmem:[#allocation8 + $0x2c0] sm:$0xff]
    %v833 = vld [vmem:[#allocation8 + $0x2c8] sm:$0xff]
    %v834 = vld [vmem:[#allocation8 + $0x2d0] sm:$0xff]
    %v835 = vld [vmem:[#allocation8 + $0x2d8] sm:$0xff]
    %v836 = vld [vmem:[#allocation8 + $0x2e0] sm:$0xff]
    %v837 = vld [vmem:[#allocation8 + $0x2e8] sm:$0xff]
    %v838 = vld [vmem:[#allocation8 + $0x2f0] sm:$0xff]
    %v839 = vld [vmem:[#allocation8 + $0x2f8] sm:$0xff]
    %v840 = vld [vmem:[#allocation8 + $0x300] sm:$0xff]
    %v841 = vld [vmem:[#allocation8 + $0x308] sm:$0xff]
    %v842 = vld [vmem:[#allocation8 + $0x310] sm:$0xff]
    %v843 = vld [vmem:[#allocation8 + $0x318] sm:$0xff]
    %v844 = vld [vmem:[#allocation8 + $0x320] sm:$0xff]
    %v845 = vld [vmem:[#allocation8 + $0x328] sm:$0xff]
    %v846 = vld [vmem:[#allocation8 + $0x330] sm:$0xff]
    %v847 = vld [vmem:[#allocation8 + $0x338] sm:$0xff]
    %v848 = vld [vmem:[#allocation8 + $0x340] sm:$0xff]
    %v849 = vld [vmem:[#allocation8 + $0x348] sm:$0xff]
    %v850 = vld [vmem:[#allocation8 + $0x350] sm:$0xff]
    %v851 = vld [vmem:[#allocation8 + $0x358] sm:$0xff]
    %v852 = vld [vmem:[#allocation8 + $0x360] sm:$0xff]
    %v853 = vld [vmem:[#allocation8 + $0x368] sm:$0xff]
    %v854 = vld [vmem:[#allocation8 + $0x370] sm:$0xff]
    %v855 = vld [vmem:[#allocation8 + $0x378] sm:$0xff]
    %v856 = vld [vmem:[#allocation8 + $0x380] sm:$0xff]
    %v857 = vld [vmem:[#allocation8 + $0x388] sm:$0xff]
    %v858 = vld [vmem:[#allocation8 + $0x390] sm:$0xff]
    %v859 = vld [vmem:[#allocation8 + $0x398] sm:$0xff]
    %v860 = vld [vmem:[#allocation8 + $0x3a0] sm:$0xff]
    %v861 = vld [vmem:[#allocation8 + $0x3a8] sm:$0xff]
    %v862 = vld [vmem:[#allocation8 + $0x3b0] sm:$0xff]
    %v863 = vld [vmem:[#allocation8 + $0x3b8] sm:$0xff]
    %v864 = vld [vmem:[#allocation8 + $0x3c0] sm:$0xff]
    %v865 = vld [vmem:[#allocation8 + $0x3c8] sm:$0xff]
    %v866 = vld [vmem:[#allocation8 + $0x3d0] sm:$0xff]
    %v867 = vld [vmem:[#allocation8 + $0x3d8] sm:$0xff]
    %v868 = vld [vmem:[#allocation8 + $0x3e0] sm:$0xff]
    %v869 = vld [vmem:[#allocation8 + $0x3e8] sm:$0xff]
    %v870 = vld [vmem:[#allocation8 + $0x3f0] sm:$0xff]
    %v871 = vld [vmem:[#allocation8 + $0x3f8] sm:$0xff]
    %v872 = vld [vmem:[#allocation8 + $0x400] sm:$0xff]
    %v873 = vld [vmem:[#allocation8 + $0x408] sm:$0xff]
    %v874 = vld [vmem:[#allocation8 + $0x410] sm:$0xff]
    %v875 = vld [vmem:[#allocation8 + $0x418] sm:$0xff]
    %v876 = vld [vmem:[#allocation8 + $0x420] sm:$0xff]
    %v877 = vld [vmem:[#allocation8 + $0x428] sm:$0xff]
    %v878 = vld [vmem:[#allocation8 + $0x430] sm:$0xff]
    %v879 = vld [vmem:[#allocation8 + $0x438] sm:$0xff]
    %v880 = vld [vmem:[#allocation8 + $0x440] sm:$0xff]
    %v881 = vld [vmem:[#allocation8 + $0x448] sm:$0xff]
    %v882 = vld [vmem:[#allocation8 + $0x450] sm:$0xff]
    %v883 = vld [vmem:[#allocation8 + $0x458] sm:$0xff]
    %v884 = vld [vmem:[#allocation8 + $0x460] sm:$0xff]
    %v885 = vld [vmem:[#allocation8 + $0x468] sm:$0xff]
    %v886 = vld [vmem:[#allocation8 + $0x470] sm:$0xff]
    %v887 = vld [vmem:[#allocation8 + $0x478] sm:$0xff]
    %v888 = vld [vmem:[#allocation8 + $0x480] sm:$0xff]
    %v889 = vld [vmem:[#allocation8 + $0x488] sm:$0xff]
    %v890 = vld [vmem:[#allocation8 + $0x490] sm:$0xff]
    %v891 = vld [vmem:[#allocation8 + $0x498] sm:$0xff]
    %v892 = vld [vmem:[#allocation8 + $0x4a0] sm:$0xff]
    %v893 = vld [vmem:[#allocation8 + $0x4a8] sm:$0xff]
    %v894 = vld [vmem:[#allocation8 + $0x4b0] sm:$0xff]
    %v895 = vld [vmem:[#allocation8 + $0x4b8] sm:$0xff]
    %v896 = vld [vmem:[#allocation8 + $0x4c0] sm:$0xff]
    %v897 = vld [vmem:[#allocation8 + $0x4c8] sm:$0xff]
    %v898 = vld [vmem:[#allocation8 + $0x4d0] sm:$0xff]
    %v899 = vld [vmem:[#allocation8 + $0x4d8] sm:$0xff]
    %v900 = vld [vmem:[#allocation8 + $0x4e0] sm:$0xff]
    %v901 = vld [vmem:[#allocation8 + $0x4e8] sm:$0xff]
    %v902 = vld [vmem:[#allocation8 + $0x4f0] sm:$0xff]
    %v903 = vld [vmem:[#allocation8 + $0x4f8] sm:$0xff]
    %v904 = vld [vmem:[#allocation8 + $0x500] sm:$0xff]
    %v905 = vld [vmem:[#allocation8 + $0x508] sm:$0xff]
    %v906 = vld [vmem:[#allocation8 + $0x510] sm:$0xff]
    %v907 = vld [vmem:[#allocation8 + $0x518] sm:$0xff]
    %v908 = vld [vmem:[#allocation8 + $0x520] sm:$0xff]
    %v909 = vld [vmem:[#allocation8 + $0x528] sm:$0xff]
    %v910 = vld [vmem:[#allocation8 + $0x530] sm:$0xff]
    %v911 = vld [vmem:[#allocation8 + $0x538] sm:$0xff]
    %v912 = vld [vmem:[#allocation8 + $0x540] sm:$0xff]
    %v913 = vld [vmem:[#allocation8 + $0x548] sm:$0xff]
    %v914 = vld [vmem:[#allocation8 + $0x550] sm:$0xff]
    %v915 = vld [vmem:[#allocation8 + $0x558] sm:$0xff]
    %v916 = vld [vmem:[#allocation8 + $0x560] sm:$0xff]
    %v917 = vld [vmem:[#allocation8 + $0x568] sm:$0xff]
    %v918 = vld [vmem:[#allocation8 + $0x570] sm:$0xff]
    %v919 = vld [vmem:[#allocation8 + $0x578] sm:$0xff]
    %v920 = vld [vmem:[#allocation8 + $0x580] sm:$0xff]
    %v921 = vld [vmem:[#allocation8 + $0x588] sm:$0xff]
    %v922 = vld [vmem:[#allocation8 + $0x590] sm:$0xff]
    %v923 = vld [vmem:[#allocation8 + $0x598] sm:$0xff]
    %v924 = vld [vmem:[#allocation8 + $0x5a0] sm:$0xff]
    %v925 = vld [vmem:[#allocation8 + $0x5a8] sm:$0xff]
    %v926 = vld [vmem:[#allocation8 + $0x5b0] sm:$0xff]
    %v927 = vld [vmem:[#allocation8 + $0x5b8] sm:$0xff]
    %v928 = vld [vmem:[#allocation8 + $0x5c0] sm:$0xff]
    %v929 = vld [vmem:[#allocation8 + $0x5c8] sm:$0xff]
    %v930 = vld [vmem:[#allocation8 + $0x5d0] sm:$0xff]
    %v931 = vld [vmem:[#allocation8 + $0x5d8] sm:$0xff]
    %v932 = vld [vmem:[#allocation8 + $0x5e0] sm:$0xff]
    %v933 = vld [vmem:[#allocation8 + $0x5e8] sm:$0xff]
    %v934 = vld [vmem:[#allocation8 + $0x5f0] sm:$0xff]
    %v935 = vld [vmem:[#allocation8 + $0x5f8] sm:$0xff]
    %v936 = vld [vmem:[#allocation8 + $0x600] sm:$0xff]
    %v937 = vld [vmem:[#allocation8 + $0x608] sm:$0xff]
    %v938 = vld [vmem:[#allocation8 + $0x610] sm:$0xff]
    %v939 = vld [vmem:[#allocation8 + $0x618] sm:$0xff]
    %v940 = vld [vmem:[#allocation8 + $0x620] sm:$0xff]
    %v941 = vld [vmem:[#allocation8 + $0x628] sm:$0xff]
    %v942 = vld [vmem:[#allocation8 + $0x630] sm:$0xff]
    %v943 = vld [vmem:[#allocation8 + $0x638] sm:$0xff]
    %v944 = vld [vmem:[#allocation8 + $0x640] sm:$0xff]
    %v945 = vld [vmem:[#allocation8 + $0x648] sm:$0xff]
    %v946 = vld [vmem:[#allocation8 + $0x650] sm:$0xff]
    %v947 = vld [vmem:[#allocation8 + $0x658] sm:$0xff]
    %v948 = vld [vmem:[#allocation8 + $0x660] sm:$0xff]
    %v949 = vld [vmem:[#allocation8 + $0x668] sm:$0xff]
    %v950 = vld [vmem:[#allocation8 + $0x670] sm:$0xff]
    %v951 = vld [vmem:[#allocation8 + $0x678] sm:$0xff]
    %v952 = vld [vmem:[#allocation8 + $0x680] sm:$0xff]
    %v953 = vld [vmem:[#allocation8 + $0x688] sm:$0xff]
    %v954 = vld [vmem:[#allocation8 + $0x690] sm:$0xff]
    %v955 = vld [vmem:[#allocation8 + $0x698] sm:$0xff]
    %v956 = vld [vmem:[#allocation8 + $0x6a0] sm:$0xff]
    %v957 = vld [vmem:[#allocation8 + $0x6a8] sm:$0xff]
    %v958 = vld [vmem:[#allocation8 + $0x6b0] sm:$0xff]
    %v959 = vld [vmem:[#allocation8 + $0x6b8] sm:$0xff]
    %v960 = vld [vmem:[#allocation8 + $0x6c0] sm:$0xff]
    %v961 = vld [vmem:[#allocation8 + $0x6c8] sm:$0xff]
    %v962 = vld [vmem:[#allocation8 + $0x6d0] sm:$0xff]
    %v963 = vld [vmem:[#allocation8 + $0x6d8] sm:$0xff]
    %v964 = vld [vmem:[#allocation8 + $0x6e0] sm:$0xff]
    %v965 = vld [vmem:[#allocation8 + $0x6e8] sm:$0xff]
    %v966 = vld [vmem:[#allocation8 + $0x6f0] sm:$0xff]
    %v967 = vld [vmem:[#allocation8 + $0x6f8] sm:$0xff]
    %v968 = vld [vmem:[#allocation8 + $0x700] sm:$0xff]
    %v969 = vld [vmem:[#allocation8 + $0x708] sm:$0xff]
    %v970 = vld [vmem:[#allocation8 + $0x710] sm:$0xff]
    %v971 = vld [vmem:[#allocation8 + $0x718] sm:$0xff]
    %v972 = vld [vmem:[#allocation8 + $0x720] sm:$0xff]
    %v973 = vld [vmem:[#allocation8 + $0x728] sm:$0xff]
    %v974 = vld [vmem:[#allocation8 + $0x730] sm:$0xff]
    %v975 = vld [vmem:[#allocation8 + $0x738] sm:$0xff]
    %v976 = vld [vmem:[#allocation8 + $0x740] sm:$0xff]
    %v977 = vld [vmem:[#allocation8 + $0x748] sm:$0xff]
    %v978 = vld [vmem:[#allocation8 + $0x750] sm:$0xff]
    %v979 = vld [vmem:[#allocation8 + $0x758] sm:$0xff]
    %v980 = vld [vmem:[#allocation8 + $0x760] sm:$0xff]
    %v981 = vld [vmem:[#allocation8 + $0x768] sm:$0xff]
    %v982 = vld [vmem:[#allocation8 + $0x770] sm:$0xff]
    %v983 = vld [vmem:[#allocation8 + $0x778] sm:$0xff]
    %v984 = vld [vmem:[#allocation8 + $0x780] sm:$0xff]
    %v985 = vld [vmem:[#allocation8 + $0x788] sm:$0xff]
    %v986 = vld [vmem:[#allocation8 + $0x790] sm:$0xff]
    %v987 = vld [vmem:[#allocation8 + $0x798] sm:$0xff]
    %v988 = vld [vmem:[#allocation8 + $0x7a0] sm:$0xff]
    %v989 = vld [vmem:[#allocation8 + $0x7a8] sm:$0xff]
    %v990 = vld [vmem:[#allocation8 + $0x7b0] sm:$0xff]
    %v991 = vld [vmem:[#allocation8 + $0x7b8] sm:$0xff]
    %v992 = vld [vmem:[#allocation8 + $0x7c0] sm:$0xff]
    %v993 = vld [vmem:[#allocation8 + $0x7c8] sm:$0xff]
    %v994 = vld [vmem:[#allocation8 + $0x7d0] sm:$0xff]
    %v995 = vld [vmem:[#allocation8 + $0x7d8] sm:$0xff]
    %v996 = vld [vmem:[#allocation8 + $0x7e0] sm:$0xff]
    %v997 = vld [vmem:[#allocation8 + $0x7e8] sm:$0xff]
    %v998 = vld [vmem:[#allocation8 + $0x7f0] sm:$0xff]
    %v999 = vld [vmem:[#allocation8 + $0x7f8] sm:$0xff]
    %v1000 = vld [vmem:[%s4] sm:$0xf]
    %v1002 = vlaneseq
    %v1003 = vshrl.u32 %v1002, 7
    %v1004 = vsub.s32 0, %v1003
    %v1005 = vrot.slane %v1000, %v1004
    %v1006 = vlaneseq
    %v1007 = vshrl.u32 %v1006, 7
    %v1008 = vsub.s32 1, %v1007
    %v1009 = vrot.slane %v1000, %v1008
    %v1010 = vlaneseq
    %v1011 = vshrl.u32 %v1010, 7
    %v1012 = vsub.s32 2, %v1011
    %v1013 = vrot.slane %v1000, %v1012
    %v1014 = vlaneseq
    %v1015 = vshrl.u32 %v1014, 7
    %v1016 = vsub.s32 3, %v1015
    %v1017 = vrot.slane %v1000, %v1016
    %v1278 = vunpack.c.l.b16 %v744
    %v1279 = vunpack.c.h.b16 %v744
    %v1280 = vunpack.c.l.b16 %v745
    %v1281 = vunpack.c.h.b16 %v745
    %v1282 = vunpack.c.l.b16 %v746
    %v1283 = vunpack.c.h.b16 %v746
    %v1284 = vunpack.c.l.b16 %v747
    %v1285 = vunpack.c.h.b16 %v747
    %v1286 = vunpack.c.l.b16 %v748
    %v1287 = vunpack.c.h.b16 %v748
    %v1288 = vunpack.c.l.b16 %v749
    %v1289 = vunpack.c.h.b16 %v749
    %v1290 = vunpack.c.l.b16 %v750
    %v1291 = vunpack.c.h.b16 %v750
    %v1292 = vunpack.c.l.b16 %v751
    %v1293 = vunpack.c.h.b16 %v751
    %v1294 = vunpack.c.l.b16 %v752
    %v1295 = vunpack.c.h.b16 %v752
    %v1296 = vunpack.c.l.b16 %v753
    %v1297 = vunpack.c.h.b16 %v753
    %v1298 = vunpack.c.l.b16 %v754
    %v1299 = vunpack.c.h.b16 %v754
    %v1300 = vunpack.c.l.b16 %v755
    %v1301 = vunpack.c.h.b16 %v755
    %v1302 = vunpack.c.l.b16 %v756
    %v1303 = vunpack.c.h.b16 %v756
    %v1304 = vunpack.c.l.b16 %v757
    %v1305 = vunpack.c.h.b16 %v757
    %v1306 = vunpack.c.l.b16 %v758
    %v1307 = vunpack.c.h.b16 %v758
    %v1308 = vunpack.c.l.b16 %v759
    %v1309 = vunpack.c.h.b16 %v759
    %v1310 = vunpack.c.l.b16 %v760
    %v1311 = vunpack.c.h.b16 %v760
    %v1312 = vunpack.c.l.b16 %v761
    %v1313 = vunpack.c.h.b16 %v761
    %v1314 = vunpack.c.l.b16 %v762
    %v1315 = vunpack.c.h.b16 %v762
    %v1316 = vunpack.c.l.b16 %v763
    %v1317 = vunpack.c.h.b16 %v763
    %v1318 = vunpack.c.l.b16 %v764
    %v1319 = vunpack.c.h.b16 %v764
    %v1320 = vunpack.c.l.b16 %v765
    %v1321 = vunpack.c.h.b16 %v765
    %v1322 = vunpack.c.l.b16 %v766
    %v1323 = vunpack.c.h.b16 %v766
    %v1324 = vunpack.c.l.b16 %v767
    %v1325 = vunpack.c.h.b16 %v767
    %v1326 = vunpack.c.l.b16 %v768
    %v1327 = vunpack.c.h.b16 %v768
    %v1328 = vunpack.c.l.b16 %v769
    %v1329 = vunpack.c.h.b16 %v769
    %v1330 = vunpack.c.l.b16 %v770
    %v1331 = vunpack.c.h.b16 %v770
    %v1332 = vunpack.c.l.b16 %v771
    %v1333 = vunpack.c.h.b16 %v771
    %v1334 = vunpack.c.l.b16 %v772
    %v1335 = vunpack.c.h.b16 %v772
    %v1336 = vunpack.c.l.b16 %v773
    %v1337 = vunpack.c.h.b16 %v773
    %v1338 = vunpack.c.l.b16 %v774
    %v1339 = vunpack.c.h.b16 %v774
    %v1340 = vunpack.c.l.b16 %v775
    %v1341 = vunpack.c.h.b16 %v775
    %v1342 = vunpack.c.l.b16 %v776
    %v1343 = vunpack.c.h.b16 %v776
    %v1344 = vunpack.c.l.b16 %v777
    %v1345 = vunpack.c.h.b16 %v777
    %v1346 = vunpack.c.l.b16 %v778
    %v1347 = vunpack.c.h.b16 %v778
    %v1348 = vunpack.c.l.b16 %v779
    %v1349 = vunpack.c.h.b16 %v779
    %v1350 = vunpack.c.l.b16 %v780
    %v1351 = vunpack.c.h.b16 %v780
    %v1352 = vunpack.c.l.b16 %v781
    %v1353 = vunpack.c.h.b16 %v781
    %v1354 = vunpack.c.l.b16 %v782
    %v1355 = vunpack.c.h.b16 %v782
    %v1356 = vunpack.c.l.b16 %v783
    %v1357 = vunpack.c.h.b16 %v783
    %v1358 = vunpack.c.l.b16 %v784
    %v1359 = vunpack.c.h.b16 %v784
    %v1360 = vunpack.c.l.b16 %v785
    %v1361 = vunpack.c.h.b16 %v785
    %v1362 = vunpack.c.l.b16 %v786
    %v1363 = vunpack.c.h.b16 %v786
    %v1364 = vunpack.c.l.b16 %v787
    %v1365 = vunpack.c.h.b16 %v787
    %v1366 = vunpack.c.l.b16 %v788
    %v1367 = vunpack.c.h.b16 %v788
    %v1368 = vunpack.c.l.b16 %v789
    %v1369 = vunpack.c.h.b16 %v789
    %v1370 = vunpack.c.l.b16 %v790
    %v1371 = vunpack.c.h.b16 %v790
    %v1372 = vunpack.c.l.b16 %v791
    %v1373 = vunpack.c.h.b16 %v791
    %v1374 = vunpack.c.l.b16 %v792
    %v1375 = vunpack.c.h.b16 %v792
    %v1376 = vunpack.c.l.b16 %v793
    %v1377 = vunpack.c.h.b16 %v793
    %v1378 = vunpack.c.l.b16 %v794
    %v1379 = vunpack.c.h.b16 %v794
    %v1380 = vunpack.c.l.b16 %v795
    %v1381 = vunpack.c.h.b16 %v795
    %v1382 = vunpack.c.l.b16 %v796
    %v1383 = vunpack.c.h.b16 %v796
    %v1384 = vunpack.c.l.b16 %v797
    %v1385 = vunpack.c.h.b16 %v797
    %v1386 = vunpack.c.l.b16 %v798
    %v1387 = vunpack.c.h.b16 %v798
    %v1388 = vunpack.c.l.b16 %v799
    %v1389 = vunpack.c.h.b16 %v799
    %v1390 = vunpack.c.l.b16 %v800
    %v1391 = vunpack.c.h.b16 %v800
    %v1392 = vunpack.c.l.b16 %v801
    %v1393 = vunpack.c.h.b16 %v801
    %v1394 = vunpack.c.l.b16 %v802
    %v1395 = vunpack.c.h.b16 %v802
    %v1396 = vunpack.c.l.b16 %v803
    %v1397 = vunpack.c.h.b16 %v803
    %v1398 = vunpack.c.l.b16 %v804
    %v1399 = vunpack.c.h.b16 %v804
    %v1400 = vunpack.c.l.b16 %v805
    %v1401 = vunpack.c.h.b16 %v805
    %v1402 = vunpack.c.l.b16 %v806
    %v1403 = vunpack.c.h.b16 %v806
    %v1404 = vunpack.c.l.b16 %v807
    %v1405 = vunpack.c.h.b16 %v807
    %v1406 = vunpack.c.l.b16 %v808
    %v1407 = vunpack.c.h.b16 %v808
    %v1408 = vunpack.c.l.b16 %v809
    %v1409 = vunpack.c.h.b16 %v809
    %v1410 = vunpack.c.l.b16 %v810
    %v1411 = vunpack.c.h.b16 %v810
    %v1412 = vunpack.c.l.b16 %v811
    %v1413 = vunpack.c.h.b16 %v811
    %v1414 = vunpack.c.l.b16 %v812
    %v1415 = vunpack.c.h.b16 %v812
    %v1416 = vunpack.c.l.b16 %v813
    %v1417 = vunpack.c.h.b16 %v813
    %v1418 = vunpack.c.l.b16 %v814
    %v1419 = vunpack.c.h.b16 %v814
    %v1420 = vunpack.c.l.b16 %v815
    %v1421 = vunpack.c.h.b16 %v815
    %v1422 = vunpack.c.l.b16 %v816
    %v1423 = vunpack.c.h.b16 %v816
    %v1424 = vunpack.c.l.b16 %v817
    %v1425 = vunpack.c.h.b16 %v817
    %v1426 = vunpack.c.l.b16 %v818
    %v1427 = vunpack.c.h.b16 %v818
    %v1428 = vunpack.c.l.b16 %v819
    %v1429 = vunpack.c.h.b16 %v819
    %v1430 = vunpack.c.l.b16 %v820
    %v1431 = vunpack.c.h.b16 %v820
    %v1432 = vunpack.c.l.b16 %v821
    %v1433 = vunpack.c.h.b16 %v821
    %v1434 = vunpack.c.l.b16 %v822
    %v1435 = vunpack.c.h.b16 %v822
    %v1436 = vunpack.c.l.b16 %v823
    %v1437 = vunpack.c.h.b16 %v823
    %v1438 = vunpack.c.l.b16 %v824
    %v1439 = vunpack.c.h.b16 %v824
    %v1440 = vunpack.c.l.b16 %v825
    %v1441 = vunpack.c.h.b16 %v825
    %v1442 = vunpack.c.l.b16 %v826
    %v1443 = vunpack.c.h.b16 %v826
    %v1444 = vunpack.c.l.b16 %v827
    %v1445 = vunpack.c.h.b16 %v827
    %v1446 = vunpack.c.l.b16 %v828
    %v1447 = vunpack.c.h.b16 %v828
    %v1448 = vunpack.c.l.b16 %v829
    %v1449 = vunpack.c.h.b16 %v829
    %v1450 = vunpack.c.l.b16 %v830
    %v1451 = vunpack.c.h.b16 %v830
    %v1452 = vunpack.c.l.b16 %v831
    %v1453 = vunpack.c.h.b16 %v831
    %v1454 = vunpack.c.l.b16 %v832
    %v1455 = vunpack.c.h.b16 %v832
    %v1456 = vunpack.c.l.b16 %v833
    %v1457 = vunpack.c.h.b16 %v833
    %v1458 = vunpack.c.l.b16 %v834
    %v1459 = vunpack.c.h.b16 %v834
    %v1460 = vunpack.c.l.b16 %v835
    %v1461 = vunpack.c.h.b16 %v835
    %v1462 = vunpack.c.l.b16 %v836
    %v1463 = vunpack.c.h.b16 %v836
    %v1464 = vunpack.c.l.b16 %v837
    %v1465 = vunpack.c.h.b16 %v837
    %v1466 = vunpack.c.l.b16 %v838
    %v1467 = vunpack.c.h.b16 %v838
    %v1468 = vunpack.c.l.b16 %v839
    %v1469 = vunpack.c.h.b16 %v839
    %v1470 = vunpack.c.l.b16 %v840
    %v1471 = vunpack.c.h.b16 %v840
    %v1472 = vunpack.c.l.b16 %v841
    %v1473 = vunpack.c.h.b16 %v841
    %v1474 = vunpack.c.l.b16 %v842
    %v1475 = vunpack.c.h.b16 %v842
    %v1476 = vunpack.c.l.b16 %v843
    %v1477 = vunpack.c.h.b16 %v843
    %v1478 = vunpack.c.l.b16 %v844
    %v1479 = vunpack.c.h.b16 %v844
    %v1480 = vunpack.c.l.b16 %v845
    %v1481 = vunpack.c.h.b16 %v845
    %v1482 = vunpack.c.l.b16 %v846
    %v1483 = vunpack.c.h.b16 %v846
    %v1484 = vunpack.c.l.b16 %v847
    %v1485 = vunpack.c.h.b16 %v847
    %v1486 = vunpack.c.l.b16 %v848
    %v1487 = vunpack.c.h.b16 %v848
    %v1488 = vunpack.c.l.b16 %v849
    %v1489 = vunpack.c.h.b16 %v849
    %v1490 = vunpack.c.l.b16 %v850
    %v1491 = vunpack.c.h.b16 %v850
    %v1492 = vunpack.c.l.b16 %v851
    %v1493 = vunpack.c.h.b16 %v851
    %v1494 = vunpack.c.l.b16 %v852
    %v1495 = vunpack.c.h.b16 %v852
    %v1496 = vunpack.c.l.b16 %v853
    %v1497 = vunpack.c.h.b16 %v853
    %v1498 = vunpack.c.l.b16 %v854
    %v1499 = vunpack.c.h.b16 %v854
    %v1500 = vunpack.c.l.b16 %v855
    %v1501 = vunpack.c.h.b16 %v855
    %v1502 = vunpack.c.l.b16 %v856
    %v1503 = vunpack.c.h.b16 %v856
    %v1504 = vunpack.c.l.b16 %v857
    %v1505 = vunpack.c.h.b16 %v857
    %v1506 = vunpack.c.l.b16 %v858
    %v1507 = vunpack.c.h.b16 %v858
    %v1508 = vunpack.c.l.b16 %v859
    %v1509 = vunpack.c.h.b16 %v859
    %v1510 = vunpack.c.l.b16 %v860
    %v1511 = vunpack.c.h.b16 %v860
    %v1512 = vunpack.c.l.b16 %v861
    %v1513 = vunpack.c.h.b16 %v861
    %v1514 = vunpack.c.l.b16 %v862
    %v1515 = vunpack.c.h.b16 %v862
    %v1516 = vunpack.c.l.b16 %v863
    %v1517 = vunpack.c.h.b16 %v863
    %v1518 = vunpack.c.l.b16 %v864
    %v1519 = vunpack.c.h.b16 %v864
    %v1520 = vunpack.c.l.b16 %v865
    %v1521 = vunpack.c.h.b16 %v865
    %v1522 = vunpack.c.l.b16 %v866
    %v1523 = vunpack.c.h.b16 %v866
    %v1524 = vunpack.c.l.b16 %v867
    %v1525 = vunpack.c.h.b16 %v867
    %v1526 = vunpack.c.l.b16 %v868
    %v1527 = vunpack.c.h.b16 %v868
    %v1528 = vunpack.c.l.b16 %v869
    %v1529 = vunpack.c.h.b16 %v869
    %v1530 = vunpack.c.l.b16 %v870
    %v1531 = vunpack.c.h.b16 %v870
    %v1532 = vunpack.c.l.b16 %v871
    %v1533 = vunpack.c.h.b16 %v871
    %v1534 = vunpack.c.l.b16 %v872
    %v1535 = vunpack.c.h.b16 %v872
    %v1536 = vunpack.c.l.b16 %v873
    %v1537 = vunpack.c.h.b16 %v873
    %v1538 = vunpack.c.l.b16 %v874
    %v1539 = vunpack.c.h.b16 %v874
    %v1540 = vunpack.c.l.b16 %v875
    %v1541 = vunpack.c.h.b16 %v875
    %v1542 = vunpack.c.l.b16 %v876
    %v1543 = vunpack.c.h.b16 %v876
    %v1544 = vunpack.c.l.b16 %v877
    %v1545 = vunpack.c.h.b16 %v877
    %v1546 = vunpack.c.l.b16 %v878
    %v1547 = vunpack.c.h.b16 %v878
    %v1548 = vunpack.c.l.b16 %v879
    %v1549 = vunpack.c.h.b16 %v879
    %v1550 = vunpack.c.l.b16 %v880
    %v1551 = vunpack.c.h.b16 %v880
    %v1552 = vunpack.c.l.b16 %v881
    %v1553 = vunpack.c.h.b16 %v881
    %v1554 = vunpack.c.l.b16 %v882
    %v1555 = vunpack.c.h.b16 %v882
    %v1556 = vunpack.c.l.b16 %v883
    %v1557 = vunpack.c.h.b16 %v883
    %v1558 = vunpack.c.l.b16 %v884
    %v1559 = vunpack.c.h.b16 %v884
    %v1560 = vunpack.c.l.b16 %v885
    %v1561 = vunpack.c.h.b16 %v885
    %v1562 = vunpack.c.l.b16 %v886
    %v1563 = vunpack.c.h.b16 %v886
    %v1564 = vunpack.c.l.b16 %v887
    %v1565 = vunpack.c.h.b16 %v887
    %v1566 = vunpack.c.l.b16 %v888
    %v1567 = vunpack.c.h.b16 %v888
    %v1568 = vunpack.c.l.b16 %v889
    %v1569 = vunpack.c.h.b16 %v889
    %v1570 = vunpack.c.l.b16 %v890
    %v1571 = vunpack.c.h.b16 %v890
    %v1572 = vunpack.c.l.b16 %v891
    %v1573 = vunpack.c.h.b16 %v891
    %v1574 = vunpack.c.l.b16 %v892
    %v1575 = vunpack.c.h.b16 %v892
    %v1576 = vunpack.c.l.b16 %v893
    %v1577 = vunpack.c.h.b16 %v893
    %v1578 = vunpack.c.l.b16 %v894
    %v1579 = vunpack.c.h.b16 %v894
    %v1580 = vunpack.c.l.b16 %v895
    %v1581 = vunpack.c.h.b16 %v895
    %v1582 = vunpack.c.l.b16 %v896
    %v1583 = vunpack.c.h.b16 %v896
    %v1584 = vunpack.c.l.b16 %v897
    %v1585 = vunpack.c.h.b16 %v897
    %v1586 = vunpack.c.l.b16 %v898
    %v1587 = vunpack.c.h.b16 %v898
    %v1588 = vunpack.c.l.b16 %v899
    %v1589 = vunpack.c.h.b16 %v899
    %v1590 = vunpack.c.l.b16 %v900
    %v1591 = vunpack.c.h.b16 %v900
    %v1592 = vunpack.c.l.b16 %v901
    %v1593 = vunpack.c.h.b16 %v901
    %v1594 = vunpack.c.l.b16 %v902
    %v1595 = vunpack.c.h.b16 %v902
    %v1596 = vunpack.c.l.b16 %v903
    %v1597 = vunpack.c.h.b16 %v903
    %v1598 = vunpack.c.l.b16 %v904
    %v1599 = vunpack.c.h.b16 %v904
    %v1600 = vunpack.c.l.b16 %v905
    %v1601 = vunpack.c.h.b16 %v905
    %v1602 = vunpack.c.l.b16 %v906
    %v1603 = vunpack.c.h.b16 %v906
    %v1604 = vunpack.c.l.b16 %v907
    %v1605 = vunpack.c.h.b16 %v907
    %v1606 = vunpack.c.l.b16 %v908
    %v1607 = vunpack.c.h.b16 %v908
    %v1608 = vunpack.c.l.b16 %v909
    %v1609 = vunpack.c.h.b16 %v909
    %v1610 = vunpack.c.l.b16 %v910
    %v1611 = vunpack.c.h.b16 %v910
    %v1612 = vunpack.c.l.b16 %v911
    %v1613 = vunpack.c.h.b16 %v911
    %v1614 = vunpack.c.l.b16 %v912
    %v1615 = vunpack.c.h.b16 %v912
    %v1616 = vunpack.c.l.b16 %v913
    %v1617 = vunpack.c.h.b16 %v913
    %v1618 = vunpack.c.l.b16 %v914
    %v1619 = vunpack.c.h.b16 %v914
    %v1620 = vunpack.c.l.b16 %v915
    %v1621 = vunpack.c.h.b16 %v915
    %v1622 = vunpack.c.l.b16 %v916
    %v1623 = vunpack.c.h.b16 %v916
    %v1624 = vunpack.c.l.b16 %v917
    %v1625 = vunpack.c.h.b16 %v917
    %v1626 = vunpack.c.l.b16 %v918
    %v1627 = vunpack.c.h.b16 %v918
    %v1628 = vunpack.c.l.b16 %v919
    %v1629 = vunpack.c.h.b16 %v919
    %v1630 = vunpack.c.l.b16 %v920
    %v1631 = vunpack.c.h.b16 %v920
    %v1632 = vunpack.c.l.b16 %v921
    %v1633 = vunpack.c.h.b16 %v921
    %v1634 = vunpack.c.l.b16 %v922
    %v1635 = vunpack.c.h.b16 %v922
    %v1636 = vunpack.c.l.b16 %v923
    %v1637 = vunpack.c.h.b16 %v923
    %v1638 = vunpack.c.l.b16 %v924
    %v1639 = vunpack.c.h.b16 %v924
    %v1640 = vunpack.c.l.b16 %v925
    %v1641 = vunpack.c.h.b16 %v925
    %v1642 = vunpack.c.l.b16 %v926
    %v1643 = vunpack.c.h.b16 %v926
    %v1644 = vunpack.c.l.b16 %v927
    %v1645 = vunpack.c.h.b16 %v927
    %v1646 = vunpack.c.l.b16 %v928
    %v1647 = vunpack.c.h.b16 %v928
    %v1648 = vunpack.c.l.b16 %v929
    %v1649 = vunpack.c.h.b16 %v929
    %v1650 = vunpack.c.l.b16 %v930
    %v1651 = vunpack.c.h.b16 %v930
    %v1652 = vunpack.c.l.b16 %v931
    %v1653 = vunpack.c.h.b16 %v931
    %v1654 = vunpack.c.l.b16 %v932
    %v1655 = vunpack.c.h.b16 %v932
    %v1656 = vunpack.c.l.b16 %v933
    %v1657 = vunpack.c.h.b16 %v933
    %v1658 = vunpack.c.l.b16 %v934
    %v1659 = vunpack.c.h.b16 %v934
    %v1660 = vunpack.c.l.b16 %v935
    %v1661 = vunpack.c.h.b16 %v935
    %v1662 = vunpack.c.l.b16 %v936
    %v1663 = vunpack.c.h.b16 %v936
    %v1664 = vunpack.c.l.b16 %v937
    %v1665 = vunpack.c.h.b16 %v937
    %v1666 = vunpack.c.l.b16 %v938
    %v1667 = vunpack.c.h.b16 %v938
    %v1668 = vunpack.c.l.b16 %v939
    %v1669 = vunpack.c.h.b16 %v939
    %v1670 = vunpack.c.l.b16 %v940
    %v1671 = vunpack.c.h.b16 %v940
    %v1672 = vunpack.c.l.b16 %v941
    %v1673 = vunpack.c.h.b16 %v941
    %v1674 = vunpack.c.l.b16 %v942
    %v1675 = vunpack.c.h.b16 %v942
    %v1676 = vunpack.c.l.b16 %v943
    %v1677 = vunpack.c.h.b16 %v943
    %v1678 = vunpack.c.l.b16 %v944
    %v1679 = vunpack.c.h.b16 %v944
    %v1680 = vunpack.c.l.b16 %v945
    %v1681 = vunpack.c.h.b16 %v945
    %v1682 = vunpack.c.l.b16 %v946
    %v1683 = vunpack.c.h.b16 %v946
    %v1684 = vunpack.c.l.b16 %v947
    %v1685 = vunpack.c.h.b16 %v947
    %v1686 = vunpack.c.l.b16 %v948
    %v1687 = vunpack.c.h.b16 %v948
    %v1688 = vunpack.c.l.b16 %v949
    %v1689 = vunpack.c.h.b16 %v949
    %v1690 = vunpack.c.l.b16 %v950
    %v1691 = vunpack.c.h.b16 %v950
    %v1692 = vunpack.c.l.b16 %v951
    %v1693 = vunpack.c.h.b16 %v951
    %v1694 = vunpack.c.l.b16 %v952
    %v1695 = vunpack.c.h.b16 %v952
    %v1696 = vunpack.c.l.b16 %v953
    %v1697 = vunpack.c.h.b16 %v953
    %v1698 = vunpack.c.l.b16 %v954
    %v1699 = vunpack.c.h.b16 %v954
    %v1700 = vunpack.c.l.b16 %v955
    %v1701 = vunpack.c.h.b16 %v955
    %v1702 = vunpack.c.l.b16 %v956
    %v1703 = vunpack.c.h.b16 %v956
    %v1704 = vunpack.c.l.b16 %v957
    %v1705 = vunpack.c.h.b16 %v957
    %v1706 = vunpack.c.l.b16 %v958
    %v1707 = vunpack.c.h.b16 %v958
    %v1708 = vunpack.c.l.b16 %v959
    %v1709 = vunpack.c.h.b16 %v959
    %v1710 = vunpack.c.l.b16 %v960
    %v1711 = vunpack.c.h.b16 %v960
    %v1712 = vunpack.c.l.b16 %v961
    %v1713 = vunpack.c.h.b16 %v961
    %v1714 = vunpack.c.l.b16 %v962
    %v1715 = vunpack.c.h.b16 %v962
    %v1716 = vunpack.c.l.b16 %v963
    %v1717 = vunpack.c.h.b16 %v963
    %v1718 = vunpack.c.l.b16 %v964
    %v1719 = vunpack.c.h.b16 %v964
    %v1720 = vunpack.c.l.b16 %v965
    %v1721 = vunpack.c.h.b16 %v965
    %v1722 = vunpack.c.l.b16 %v966
    %v1723 = vunpack.c.h.b16 %v966
    %v1724 = vunpack.c.l.b16 %v967
    %v1725 = vunpack.c.h.b16 %v967
    %v1726 = vunpack.c.l.b16 %v968
    %v1727 = vunpack.c.h.b16 %v968
    %v1728 = vunpack.c.l.b16 %v969
    %v1729 = vunpack.c.h.b16 %v969
    %v1730 = vunpack.c.l.b16 %v970
    %v1731 = vunpack.c.h.b16 %v970
    %v1732 = vunpack.c.l.b16 %v971
    %v1733 = vunpack.c.h.b16 %v971
    %v1734 = vunpack.c.l.b16 %v972
    %v1735 = vunpack.c.h.b16 %v972
    %v1736 = vunpack.c.l.b16 %v973
    %v1737 = vunpack.c.h.b16 %v973
    %v1738 = vunpack.c.l.b16 %v974
    %v1739 = vunpack.c.h.b16 %v974
    %v1740 = vunpack.c.l.b16 %v975
    %v1741 = vunpack.c.h.b16 %v975
    %v1742 = vunpack.c.l.b16 %v976
    %v1743 = vunpack.c.h.b16 %v976
    %v1744 = vunpack.c.l.b16 %v977
    %v1745 = vunpack.c.h.b16 %v977
    %v1746 = vunpack.c.l.b16 %v978
    %v1747 = vunpack.c.h.b16 %v978
    %v1748 = vunpack.c.l.b16 %v979
    %v1749 = vunpack.c.h.b16 %v979
    %v1750 = vunpack.c.l.b16 %v980
    %v1751 = vunpack.c.h.b16 %v980
    %v1752 = vunpack.c.l.b16 %v981
    %v1753 = vunpack.c.h.b16 %v981
    %v1754 = vunpack.c.l.b16 %v982
    %v1755 = vunpack.c.h.b16 %v982
    %v1756 = vunpack.c.l.b16 %v983
    %v1757 = vunpack.c.h.b16 %v983
    %v1758 = vunpack.c.l.b16 %v984
    %v1759 = vunpack.c.h.b16 %v984
    %v1760 = vunpack.c.l.b16 %v985
    %v1761 = vunpack.c.h.b16 %v985
    %v1762 = vunpack.c.l.b16 %v986
    %v1763 = vunpack.c.h.b16 %v986
    %v1764 = vunpack.c.l.b16 %v987
    %v1765 = vunpack.c.h.b16 %v987
    %v1766 = vunpack.c.l.b16 %v988
    %v1767 = vunpack.c.h.b16 %v988
    %v1768 = vunpack.c.l.b16 %v989
    %v1769 = vunpack.c.h.b16 %v989
    %v1770 = vunpack.c.l.b16 %v990
    %v1771 = vunpack.c.h.b16 %v990
    %v1772 = vunpack.c.l.b16 %v991
    %v1773 = vunpack.c.h.b16 %v991
    %v1774 = vunpack.c.l.b16 %v992
    %v1775 = vunpack.c.h.b16 %v992
    %v1776 = vunpack.c.l.b16 %v993
    %v1777 = vunpack.c.h.b16 %v993
    %v1778 = vunpack.c.l.b16 %v994
    %v1779 = vunpack.c.h.b16 %v994
    %v1780 = vunpack.c.l.b16 %v995
    %v1781 = vunpack.c.h.b16 %v995
    %v1782 = vunpack.c.l.b16 %v996
    %v1783 = vunpack.c.h.b16 %v996
    %v1784 = vunpack.c.l.b16 %v997
    %v1785 = vunpack.c.h.b16 %v997
    %v1786 = vunpack.c.l.b16 %v998
    %v1787 = vunpack.c.h.b16 %v998
    %v1788 = vunpack.c.l.b16 %v999
    %v1789 = vunpack.c.h.b16 %v999
    %v1790 = vpack.c.b16 %v1282, %v1278
    %v1791 = vpack.c.b16 %v1283, %v1279
    %v1792 = vpack.c.b16 %v1284, %v1280
    %v1793 = vpack.c.b16 %v1285, %v1281
    %v1794 = vpack.c.b16 %v1290, %v1286
    %v1795 = vpack.c.b16 %v1291, %v1287
    %v1796 = vpack.c.b16 %v1292, %v1288
    %v1797 = vpack.c.b16 %v1293, %v1289
    %v1798 = vpack.c.b16 %v1298, %v1294
    %v1799 = vpack.c.b16 %v1299, %v1295
    %v1800 = vpack.c.b16 %v1300, %v1296
    %v1801 = vpack.c.b16 %v1301, %v1297
    %v1802 = vpack.c.b16 %v1306, %v1302
    %v1803 = vpack.c.b16 %v1307, %v1303
    %v1804 = vpack.c.b16 %v1308, %v1304
    %v1805 = vpack.c.b16 %v1309, %v1305
    %v1806 = vpack.c.b16 %v1314, %v1310
    %v1807 = vpack.c.b16 %v1315, %v1311
    %v1808 = vpack.c.b16 %v1316, %v1312
    %v1809 = vpack.c.b16 %v1317, %v1313
    %v1810 = vpack.c.b16 %v1322, %v1318
    %v1811 = vpack.c.b16 %v1323, %v1319
    %v1812 = vpack.c.b16 %v1324, %v1320
    %v1813 = vpack.c.b16 %v1325, %v1321
    %v1814 = vpack.c.b16 %v1330, %v1326
    %v1815 = vpack.c.b16 %v1331, %v1327
    %v1816 = vpack.c.b16 %v1332, %v1328
    %v1817 = vpack.c.b16 %v1333, %v1329
    %v1818 = vpack.c.b16 %v1338, %v1334
    %v1819 = vpack.c.b16 %v1339, %v1335
    %v1820 = vpack.c.b16 %v1340, %v1336
    %v1821 = vpack.c.b16 %v1341, %v1337
    %v1822 = vpack.c.b16 %v1346, %v1342
    %v1823 = vpack.c.b16 %v1347, %v1343
    %v1824 = vpack.c.b16 %v1348, %v1344
    %v1825 = vpack.c.b16 %v1349, %v1345
    %v1826 = vpack.c.b16 %v1354, %v1350
    %v1827 = vpack.c.b16 %v1355, %v1351
    %v1828 = vpack.c.b16 %v1356, %v1352
    %v1829 = vpack.c.b16 %v1357, %v1353
    %v1830 = vpack.c.b16 %v1362, %v1358
    %v1831 = vpack.c.b16 %v1363, %v1359
    %v1832 = vpack.c.b16 %v1364, %v1360
    %v1833 = vpack.c.b16 %v1365, %v1361
    %v1834 = vpack.c.b16 %v1370, %v1366
    %v1835 = vpack.c.b16 %v1371, %v1367
    %v1836 = vpack.c.b16 %v1372, %v1368
    %v1837 = vpack.c.b16 %v1373, %v1369
    %v1838 = vpack.c.b16 %v1378, %v1374
    %v1839 = vpack.c.b16 %v1379, %v1375
    %v1840 = vpack.c.b16 %v1380, %v1376
    %v1841 = vpack.c.b16 %v1381, %v1377
    %v1842 = vpack.c.b16 %v1386, %v1382
    %v1843 = vpack.c.b16 %v1387, %v1383
    %v1844 = vpack.c.b16 %v1388, %v1384
    %v1845 = vpack.c.b16 %v1389, %v1385
    %v1846 = vpack.c.b16 %v1394, %v1390
    %v1847 = vpack.c.b16 %v1395, %v1391
    %v1848 = vpack.c.b16 %v1396, %v1392
    %v1849 = vpack.c.b16 %v1397, %v1393
    %v1850 = vpack.c.b16 %v1402, %v1398
    %v1851 = vpack.c.b16 %v1403, %v1399
    %v1852 = vpack.c.b16 %v1404, %v1400
    %v1853 = vpack.c.b16 %v1405, %v1401
    %v1854 = vpack.c.b16 %v1410, %v1406
    %v1855 = vpack.c.b16 %v1411, %v1407
    %v1856 = vpack.c.b16 %v1412, %v1408
    %v1857 = vpack.c.b16 %v1413, %v1409
    %v1858 = vpack.c.b16 %v1418, %v1414
    %v1859 = vpack.c.b16 %v1419, %v1415
    %v1860 = vpack.c.b16 %v1420, %v1416
    %v1861 = vpack.c.b16 %v1421, %v1417
    %v1862 = vpack.c.b16 %v1426, %v1422
    %v1863 = vpack.c.b16 %v1427, %v1423
    %v1864 = vpack.c.b16 %v1428, %v1424
    %v1865 = vpack.c.b16 %v1429, %v1425
    %v1866 = vpack.c.b16 %v1434, %v1430
    %v1867 = vpack.c.b16 %v1435, %v1431
    %v1868 = vpack.c.b16 %v1436, %v1432
    %v1869 = vpack.c.b16 %v1437, %v1433
    %v1870 = vpack.c.b16 %v1442, %v1438
    %v1871 = vpack.c.b16 %v1443, %v1439
    %v1872 = vpack.c.b16 %v1444, %v1440
    %v1873 = vpack.c.b16 %v1445, %v1441
    %v1874 = vpack.c.b16 %v1450, %v1446
    %v1875 = vpack.c.b16 %v1451, %v1447
    %v1876 = vpack.c.b16 %v1452, %v1448
    %v1877 = vpack.c.b16 %v1453, %v1449
    %v1878 = vpack.c.b16 %v1458, %v1454
    %v1879 = vpack.c.b16 %v1459, %v1455
    %v1880 = vpack.c.b16 %v1460, %v1456
    %v1881 = vpack.c.b16 %v1461, %v1457
    %v1882 = vpack.c.b16 %v1466, %v1462
    %v1883 = vpack.c.b16 %v1467, %v1463
    %v1884 = vpack.c.b16 %v1468, %v1464
    %v1885 = vpack.c.b16 %v1469, %v1465
    %v1886 = vpack.c.b16 %v1474, %v1470
    %v1887 = vpack.c.b16 %v1475, %v1471
    %v1888 = vpack.c.b16 %v1476, %v1472
    %v1889 = vpack.c.b16 %v1477, %v1473
    %v1890 = vpack.c.b16 %v1482, %v1478
    %v1891 = vpack.c.b16 %v1483, %v1479
    %v1892 = vpack.c.b16 %v1484, %v1480
    %v1893 = vpack.c.b16 %v1485, %v1481
    %v1894 = vpack.c.b16 %v1490, %v1486
    %v1895 = vpack.c.b16 %v1491, %v1487
    %v1896 = vpack.c.b16 %v1492, %v1488
    %v1897 = vpack.c.b16 %v1493, %v1489
    %v1898 = vpack.c.b16 %v1498, %v1494
    %v1899 = vpack.c.b16 %v1499, %v1495
    %v1900 = vpack.c.b16 %v1500, %v1496
    %v1901 = vpack.c.b16 %v1501, %v1497
    %v1902 = vpack.c.b16 %v1506, %v1502
    %v1903 = vpack.c.b16 %v1507, %v1503
    %v1904 = vpack.c.b16 %v1508, %v1504
    %v1905 = vpack.c.b16 %v1509, %v1505
    %v1906 = vpack.c.b16 %v1514, %v1510
    %v1907 = vpack.c.b16 %v1515, %v1511
    %v1908 = vpack.c.b16 %v1516, %v1512
    %v1909 = vpack.c.b16 %v1517, %v1513
    %v1910 = vpack.c.b16 %v1522, %v1518
    %v1911 = vpack.c.b16 %v1523, %v1519
    %v1912 = vpack.c.b16 %v1524, %v1520
    %v1913 = vpack.c.b16 %v1525, %v1521
    %v1914 = vpack.c.b16 %v1530, %v1526
    %v1915 = vpack.c.b16 %v1531, %v1527
    %v1916 = vpack.c.b16 %v1532, %v1528
    %v1917 = vpack.c.b16 %v1533, %v1529
    %v1918 = vpack.c.b16 %v1538, %v1534
    %v1919 = vpack.c.b16 %v1539, %v1535
    %v1920 = vpack.c.b16 %v1540, %v1536
    %v1921 = vpack.c.b16 %v1541, %v1537
    %v1922 = vpack.c.b16 %v1546, %v1542
    %v1923 = vpack.c.b16 %v1547, %v1543
    %v1924 = vpack.c.b16 %v1548, %v1544
    %v1925 = vpack.c.b16 %v1549, %v1545
    %v1926 = vpack.c.b16 %v1554, %v1550
    %v1927 = vpack.c.b16 %v1555, %v1551
    %v1928 = vpack.c.b16 %v1556, %v1552
    %v1929 = vpack.c.b16 %v1557, %v1553
    %v1930 = vpack.c.b16 %v1562, %v1558
    %v1931 = vpack.c.b16 %v1563, %v1559
    %v1932 = vpack.c.b16 %v1564, %v1560
    %v1933 = vpack.c.b16 %v1565, %v1561
    %v1934 = vpack.c.b16 %v1570, %v1566
    %v1935 = vpack.c.b16 %v1571, %v1567
    %v1936 = vpack.c.b16 %v1572, %v1568
    %v1937 = vpack.c.b16 %v1573, %v1569
    %v1938 = vpack.c.b16 %v1578, %v1574
    %v1939 = vpack.c.b16 %v1579, %v1575
    %v1940 = vpack.c.b16 %v1580, %v1576
    %v1941 = vpack.c.b16 %v1581, %v1577
    %v1942 = vpack.c.b16 %v1586, %v1582
    %v1943 = vpack.c.b16 %v1587, %v1583
    %v1944 = vpack.c.b16 %v1588, %v1584
    %v1945 = vpack.c.b16 %v1589, %v1585
    %v1946 = vpack.c.b16 %v1594, %v1590
    %v1947 = vpack.c.b16 %v1595, %v1591
    %v1948 = vpack.c.b16 %v1596, %v1592
    %v1949 = vpack.c.b16 %v1597, %v1593
    %v1950 = vpack.c.b16 %v1602, %v1598
    %v1951 = vpack.c.b16 %v1603, %v1599
    %v1952 = vpack.c.b16 %v1604, %v1600
    %v1953 = vpack.c.b16 %v1605, %v1601
    %v1954 = vpack.c.b16 %v1610, %v1606
    %v1955 = vpack.c.b16 %v1611, %v1607
    %v1956 = vpack.c.b16 %v1612, %v1608
    %v1957 = vpack.c.b16 %v1613, %v1609
    %v1958 = vpack.c.b16 %v1618, %v1614
    %v1959 = vpack.c.b16 %v1619, %v1615
    %v1960 = vpack.c.b16 %v1620, %v1616
    %v1961 = vpack.c.b16 %v1621, %v1617
    %v1962 = vpack.c.b16 %v1626, %v1622
    %v1963 = vpack.c.b16 %v1627, %v1623
    %v1964 = vpack.c.b16 %v1628, %v1624
    %v1965 = vpack.c.b16 %v1629, %v1625
    %v1966 = vpack.c.b16 %v1634, %v1630
    %v1967 = vpack.c.b16 %v1635, %v1631
    %v1968 = vpack.c.b16 %v1636, %v1632
    %v1969 = vpack.c.b16 %v1637, %v1633
    %v1970 = vpack.c.b16 %v1642, %v1638
    %v1971 = vpack.c.b16 %v1643, %v1639
    %v1972 = vpack.c.b16 %v1644, %v1640
    %v1973 = vpack.c.b16 %v1645, %v1641
    %v1974 = vpack.c.b16 %v1650, %v1646
    %v1975 = vpack.c.b16 %v1651, %v1647
    %v1976 = vpack.c.b16 %v1652, %v1648
    %v1977 = vpack.c.b16 %v1653, %v1649
    %v1978 = vpack.c.b16 %v1658, %v1654
    %v1979 = vpack.c.b16 %v1659, %v1655
    %v1980 = vpack.c.b16 %v1660, %v1656
    %v1981 = vpack.c.b16 %v1661, %v1657
    %v1982 = vpack.c.b16 %v1666, %v1662
    %v1983 = vpack.c.b16 %v1667, %v1663
    %v1984 = vpack.c.b16 %v1668, %v1664
    %v1985 = vpack.c.b16 %v1669, %v1665
    %v1986 = vpack.c.b16 %v1674, %v1670
    %v1987 = vpack.c.b16 %v1675, %v1671
    %v1988 = vpack.c.b16 %v1676, %v1672
    %v1989 = vpack.c.b16 %v1677, %v1673
    %v1990 = vpack.c.b16 %v1682, %v1678
    %v1991 = vpack.c.b16 %v1683, %v1679
    %v1992 = vpack.c.b16 %v1684, %v1680
    %v1993 = vpack.c.b16 %v1685, %v1681
    %v1994 = vpack.c.b16 %v1690, %v1686
    %v1995 = vpack.c.b16 %v1691, %v1687
    %v1996 = vpack.c.b16 %v1692, %v1688
    %v1997 = vpack.c.b16 %v1693, %v1689
    %v1998 = vpack.c.b16 %v1698, %v1694
    %v1999 = vpack.c.b16 %v1699, %v1695
    %v2000 = vpack.c.b16 %v1700, %v1696
    %v2001 = vpack.c.b16 %v1701, %v1697
    %v2002 = vpack.c.b16 %v1706, %v1702
    %v2003 = vpack.c.b16 %v1707, %v1703
    %v2004 = vpack.c.b16 %v1708, %v1704
    %v2005 = vpack.c.b16 %v1709, %v1705
    %v2006 = vpack.c.b16 %v1714, %v1710
    %v2007 = vpack.c.b16 %v1715, %v1711
    %v2008 = vpack.c.b16 %v1716, %v1712
    %v2009 = vpack.c.b16 %v1717, %v1713
    %v2010 = vpack.c.b16 %v1722, %v1718
    %v2011 = vpack.c.b16 %v1723, %v1719
    %v2012 = vpack.c.b16 %v1724, %v1720
    %v2013 = vpack.c.b16 %v1725, %v1721
    %v2014 = vpack.c.b16 %v1730, %v1726
    %v2015 = vpack.c.b16 %v1731, %v1727
    %v2016 = vpack.c.b16 %v1732, %v1728
    %v2017 = vpack.c.b16 %v1733, %v1729
    %v2018 = vpack.c.b16 %v1738, %v1734
    %v2019 = vpack.c.b16 %v1739, %v1735
    %v2020 = vpack.c.b16 %v1740, %v1736
    %v2021 = vpack.c.b16 %v1741, %v1737
    %v2022 = vpack.c.b16 %v1746, %v1742
    %v2023 = vpack.c.b16 %v1747, %v1743
    %v2024 = vpack.c.b16 %v1748, %v1744
    %v2025 = vpack.c.b16 %v1749, %v1745
    %v2026 = vpack.c.b16 %v1754, %v1750
    %v2027 = vpack.c.b16 %v1755, %v1751
    %v2028 = vpack.c.b16 %v1756, %v1752
    %v2029 = vpack.c.b16 %v1757, %v1753
    %v2030 = vpack.c.b16 %v1762, %v1758
    %v2031 = vpack.c.b16 %v1763, %v1759
    %v2032 = vpack.c.b16 %v1764, %v1760
    %v2033 = vpack.c.b16 %v1765, %v1761
    %v2034 = vpack.c.b16 %v1770, %v1766
    %v2035 = vpack.c.b16 %v1771, %v1767
    %v2036 = vpack.c.b16 %v1772, %v1768
    %v2037 = vpack.c.b16 %v1773, %v1769
    %v2038 = vpack.c.b16 %v1778, %v1774
    %v2039 = vpack.c.b16 %v1779, %v1775
    %v2040 = vpack.c.b16 %v1780, %v1776
    %v2041 = vpack.c.b16 %v1781, %v1777
    %v2042 = vpack.c.b16 %v1786, %v1782
    %v2043 = vpack.c.b16 %v1787, %v1783
    %v2044 = vpack.c.b16 %v1788, %v1784
    %v2045 = vpack.c.b16 %v1789, %v1785
    %2302 = vmatprep.subr.bf16.mxu0 %v1791
    %2303 = vmatpush1.bf16.msra.mxu0 %v1790
    %2304 = vmatprep.subr.bf16.mxu0 %v1795
    %2305 = vmatpush1.bf16.msra.mxu0 %v1794
    %2306 = vmatprep.subr.bf16.mxu0 %v1799
    %2307 = vmatpush1.bf16.msra.mxu0 %v1798
    %2308 = vmatprep.subr.bf16.mxu0 %v1803
    %2309 = vmatpush1.bf16.msra.mxu0 %v1802
    %2310 = vmatprep.subr.bf16.mxu0 %v1807
    %2311 = vmatpush1.bf16.msra.mxu0 %v1806
    %2312 = vmatprep.subr.bf16.mxu0 %v1811
    %2313 = vmatpush1.bf16.msra.mxu0 %v1810
    %2314 = vmatprep.subr.bf16.mxu0 %v1815
    %2315 = vmatpush1.bf16.msra.mxu0 %v1814
    %2316 = vmatprep.subr.bf16.mxu0 %v1819
    %2317 = vmatpush1.bf16.msra.mxu0 %v1818
    %2318 = vmatprep.subr.bf16.mxu0 %v1823
    %2319 = vmatpush1.bf16.msra.mxu0 %v1822
    %2320 = vmatprep.subr.bf16.mxu0 %v1827
    %2321 = vmatpush1.bf16.msra.mxu0 %v1826
    %2322 = vmatprep.subr.bf16.mxu0 %v1831
    %2323 = vmatpush1.bf16.msra.mxu0 %v1830
    %2324 = vmatprep.subr.bf16.mxu0 %v1835
    %2325 = vmatpush1.bf16.msra.mxu0 %v1834
    %2326 = vmatprep.subr.bf16.mxu0 %v1839
    %2327 = vmatpush1.bf16.msra.mxu0 %v1838
    %2328 = vmatprep.subr.bf16.mxu0 %v1843
    %2329 = vmatpush1.bf16.msra.mxu0 %v1842
    %2330 = vmatprep.subr.bf16.mxu0 %v1847
    %2331 = vmatpush1.bf16.msra.mxu0 %v1846
    %2332 = vmatprep.subr.bf16.mxu0 %v1851
    %2333 = vmatpush1.bf16.msra.mxu0 %v1850
    %2334 = vmatprep.mubr.bf16.mxu0 %v737
    %2335 = vmatmul.mubr.bf16.gmra.mrb[0].mxu0 %v736
    %v2336 = vpop.f32.mrb[0].mxu0
    %v2337 = vadd.f32 %v1005, %v2336
    %v2338 = vpop.f32.mrb[0].mxu0
    %v2339 = vadd.f32 %v1009, %v2338
    %v2340 = vpop.f32.mrb[0].mxu0
    %v2341 = vadd.f32 %v1005, %v2340
    %v2342 = vpop.f32.mrb[0].mxu0
    %v2343 = vadd.f32 %v1009, %v2342
    %2344 = vdwg.mxu0
    %2345 = vmatprep.subr.bf16.mxu0 %v1855
    %2346 = vmatpush1.bf16.msra.mxu0 %v1854
    %2347 = vmatprep.subr.bf16.mxu0 %v1859
    %2348 = vmatpush1.bf16.msra.mxu0 %v1858
    %2349 = vmatprep.subr.bf16.mxu0 %v1863
    %2350 = vmatpush1.bf16.msra.mxu0 %v1862
    %2351 = vmatprep.subr.bf16.mxu0 %v1867
    %2352 = vmatpush1.bf16.msra.mxu0 %v1866
    %2353 = vmatprep.subr.bf16.mxu0 %v1871
    %2354 = vmatpush1.bf16.msra.mxu0 %v1870
    %2355 = vmatprep.subr.bf16.mxu0 %v1875
    %2356 = vmatpush1.bf16.msra.mxu0 %v1874
    %2357 = vmatprep.subr.bf16.mxu0 %v1879
    %2358 = vmatpush1.bf16.msra.mxu0 %v1878
    %2359 = vmatprep.subr.bf16.mxu0 %v1883
    %2360 = vmatpush1.bf16.msra.mxu0 %v1882
    %2361 = vmatprep.subr.bf16.mxu0 %v1887
    %2362 = vmatpush1.bf16.msra.mxu0 %v1886
    %2363 = vmatprep.subr.bf16.mxu0 %v1891
    %2364 = vmatpush1.bf16.msra.mxu0 %v1890
    %2365 = vmatprep.subr.bf16.mxu0 %v1895
    %2366 = vmatpush1.bf16.msra.mxu0 %v1894
    %2367 = vmatprep.subr.bf16.mxu0 %v1899
    %2368 = vmatpush1.bf16.msra.mxu0 %v1898
    %2369 = vmatprep.subr.bf16.mxu0 %v1903
    %2370 = vmatpush1.bf16.msra.mxu0 %v1902
    %2371 = vmatprep.subr.bf16.mxu0 %v1907
    %2372 = vmatpush1.bf16.msra.mxu0 %v1906
    %2373 = vmatprep.subr.bf16.mxu0 %v1911
    %2374 = vmatpush1.bf16.msra.mxu0 %v1910
    %2375 = vmatprep.subr.bf16.mxu0 %v1915
    %2376 = vmatpush1.bf16.msra.mxu0 %v1914
    %2377 = vmatprep.mubr.bf16.mxu0 %v739
    %2378 = vmatmul.mubr.bf16.gmra.mrb[0].mxu0 %v738
    %v2379 = vpop.f32.mrb[0].mxu0
    %v2380 = vadd.f32 %v2337, %v2379
    %v2381 = vpop.f32.mrb[0].mxu0
    %v2382 = vadd.f32 %v2339, %v2381
    %v2383 = vpop.f32.mrb[0].mxu0
    %v2384 = vadd.f32 %v2341, %v2383
    %v2385 = vpop.f32.mrb[0].mxu0
    %v2386 = vadd.f32 %v2343, %v2385
    %2387 = vdwg.mxu0
    %2388 = vmatprep.subr.bf16.mxu0 %v1919
    %2389 = vmatpush1.bf16.msra.mxu0 %v1918
    %2390 = vmatprep.subr.bf16.mxu0 %v1923
    %2391 = vmatpush1.bf16.msra.mxu0 %v1922
    %2392 = vmatprep.subr.bf16.mxu0 %v1927
    %2393 = vmatpush1.bf16.msra.mxu0 %v1926
    %2394 = vmatprep.subr.bf16.mxu0 %v1931
    %2395 = vmatpush1.bf16.msra.mxu0 %v1930
    %2396 = vmatprep.subr.bf16.mxu0 %v1935
    %2397 = vmatpush1.bf16.msra.mxu0 %v1934
    %2398 = vmatprep.subr.bf16.mxu0 %v1939
    %2399 = vmatpush1.bf16.msra.mxu0 %v1938
    %2400 = vmatprep.subr.bf16.mxu0 %v1943
    %2401 = vmatpush1.bf16.msra.mxu0 %v1942
    %2402 = vmatprep.subr.bf16.mxu0 %v1947
    %2403 = vmatpush1.bf16.msra.mxu0 %v1946
    %2404 = vmatprep.subr.bf16.mxu0 %v1951
    %2405 = vmatpush1.bf16.msra.mxu0 %v1950
    %2406 = vmatprep.subr.bf16.mxu0 %v1955
    %2407 = vmatpush1.bf16.msra.mxu0 %v1954
    %2408 = vmatprep.subr.bf16.mxu0 %v1959
    %2409 = vmatpush1.bf16.msra.mxu0 %v1958
    %2410 = vmatprep.subr.bf16.mxu0 %v1963
    %2411 = vmatpush1.bf16.msra.mxu0 %v1962
    %2412 = vmatprep.subr.bf16.mxu0 %v1967
    %2413 = vmatpush1.bf16.msra.mxu0 %v1966
    %2414 = vmatprep.subr.bf16.mxu0 %v1971
    %2415 = vmatpush1.bf16.msra.mxu0 %v1970
    %2416 = vmatprep.subr.bf16.mxu0 %v1975
    %2417 = vmatpush1.bf16.msra.mxu0 %v1974
    %2418 = vmatprep.subr.bf16.mxu0 %v1979
    %2419 = vmatpush1.bf16.msra.mxu0 %v1978
    %2420 = vmatprep.mubr.bf16.mxu0 %v741
    %2421 = vmatmul.mubr.bf16.gmra.mrb[0].mxu0 %v740
    %v2422 = vpop.f32.mrb[0].mxu0
    %v2423 = vadd.f32 %v2380, %v2422
    %v2424 = vpop.f32.mrb[0].mxu0
    %v2425 = vadd.f32 %v2382, %v2424
    %v2426 = vpop.f32.mrb[0].mxu0
    %v2427 = vadd.f32 %v2384, %v2426
    %v2428 = vpop.f32.mrb[0].mxu0
    %v2429 = vadd.f32 %v2386, %v2428
    %2430 = vdwg.mxu0
    %2431 = vmatprep.subr.bf16.mxu0 %v1983
    %2432 = vmatpush1.bf16.msra.mxu0 %v1982
    %2433 = vmatprep.subr.bf16.mxu0 %v1987
    %2434 = vmatpush1.bf16.msra.mxu0 %v1986
    %2435 = vmatprep.subr.bf16.mxu0 %v1991
    %2436 = vmatpush1.bf16.msra.mxu0 %v1990
    %2437 = vmatprep.subr.bf16.mxu0 %v1995
    %2438 = vmatpush1.bf16.msra.mxu0 %v1994
    %2439 = vmatprep.subr.bf16.mxu0 %v1999
    %2440 = vmatpush1.bf16.msra.mxu0 %v1998
    %2441 = vmatprep.subr.bf16.mxu0 %v2003
    %2442 = vmatpush1.bf16.msra.mxu0 %v2002
    %2443 = vmatprep.subr.bf16.mxu0 %v2007
    %2444 = vmatpush1.bf16.msra.mxu0 %v2006
    %2445 = vmatprep.subr.bf16.mxu0 %v2011
    %2446 = vmatpush1.bf16.msra.mxu0 %v2010
    %2447 = vmatprep.subr.bf16.mxu0 %v2015
    %2448 = vmatpush1.bf16.msra.mxu0 %v2014
    %2449 = vmatprep.subr.bf16.mxu0 %v2019
    %2450 = vmatpush1.bf16.msra.mxu0 %v2018
    %2451 = vmatprep.subr.bf16.mxu0 %v2023
    %2452 = vmatpush1.bf16.msra.mxu0 %v2022
    %2453 = vmatprep.subr.bf16.mxu0 %v2027
    %2454 = vmatpush1.bf16.msra.mxu0 %v2026
    %2455 = vmatprep.subr.bf16.mxu0 %v2031
    %2456 = vmatpush1.bf16.msra.mxu0 %v2030
    %2457 = vmatprep.subr.bf16.mxu0 %v2035
    %2458 = vmatpush1.bf16.msra.mxu0 %v2034
    %2459 = vmatprep.subr.bf16.mxu0 %v2039
    %2460 = vmatpush1.bf16.msra.mxu0 %v2038
    %2461 = vmatprep.subr.bf16.mxu0 %v2043
    %2462 = vmatpush1.bf16.msra.mxu0 %v2042
    %2463 = vmatprep.mubr.bf16.mxu0 %v743
    %2464 = vmatmul.mubr.bf16.gmra.mrb[0].mxu0 %v742
    %v2465 = vpop.f32.mrb[0].mxu0
    %v2466 = vadd.f32 %v2423, %v2465
    %v2467 = vpop.f32.mrb[0].mxu0
    %v2468 = vadd.f32 %v2425, %v2467
    %v2469 = vpop.f32.mrb[0].mxu0
    %v2470 = vadd.f32 %v2427, %v2469
    %v2471 = vpop.f32.mrb[0].mxu0
    %v2472 = vadd.f32 %v2429, %v2471
    %2473 = vdwg.mxu0
    %2474 = vmatprep.subr.bf16.mxu0 %v1793
    %2475 = vmatpush1.bf16.msra.mxu0 %v1792
    %2476 = vmatprep.subr.bf16.mxu0 %v1797
    %2477 = vmatpush1.bf16.msra.mxu0 %v1796
    %2478 = vmatprep.subr.bf16.mxu0 %v1801
    %2479 = vmatpush1.bf16.msra.mxu0 %v1800
    %2480 = vmatprep.subr.bf16.mxu0 %v1805
    %2481 = vmatpush1.bf16.msra.mxu0 %v1804
    %2482 = vmatprep.subr.bf16.mxu0 %v1809
    %2483 = vmatpush1.bf16.msra.mxu0 %v1808
    %2484 = vmatprep.subr.bf16.mxu0 %v1813
    %2485 = vmatpush1.bf16.msra.mxu0 %v1812
    %2486 = vmatprep.subr.bf16.mxu0 %v1817
    %2487 = vmatpush1.bf16.msra.mxu0 %v1816
    %2488 = vmatprep.subr.bf16.mxu0 %v1821
    %2489 = vmatpush1.bf16.msra.mxu0 %v1820
    %2490 = vmatprep.subr.bf16.mxu0 %v1825
    %2491 = vmatpush1.bf16.msra.mxu0 %v1824
    %2492 = vmatprep.subr.bf16.mxu0 %v1829
    %2493 = vmatpush1.bf16.msra.mxu0 %v1828
    %2494 = vmatprep.subr.bf16.mxu0 %v1833
    %2495 = vmatpush1.bf16.msra.mxu0 %v1832
    %2496 = vmatprep.subr.bf16.mxu0 %v1837
    %2497 = vmatpush1.bf16.msra.mxu0 %v1836
    %2498 = vmatprep.subr.bf16.mxu0 %v1841
    %2499 = vmatpush1.bf16.msra.mxu0 %v1840
    %2500 = vmatprep.subr.bf16.mxu0 %v1845
    %2501 = vmatpush1.bf16.msra.mxu0 %v1844
    %2502 = vmatprep.subr.bf16.mxu0 %v1849
    %2503 = vmatpush1.bf16.msra.mxu0 %v1848
    %2504 = vmatprep.subr.bf16.mxu0 %v1853
    %2505 = vmatpush1.bf16.msra.mxu0 %v1852
    %2506 = vmatprep.mubr.bf16.mxu0 %v737
    %2507 = vmatmul.mubr.bf16.gmra.mrb[0].mxu0 %v736
    %v2508 = vpop.f32.mrb[0].mxu0
    %v2509 = vadd.f32 %v1013, %v2508
    %v2510 = vpop.f32.mrb[0].mxu0
    %v2511 = vadd.f32 %v1017, %v2510
    %v2512 = vpop.f32.mrb[0].mxu0
    %v2513 = vadd.f32 %v1013, %v2512
    %v2514 = vpop.f32.mrb[0].mxu0
    %v2515 = vadd.f32 %v1017, %v2514
    %2516 = vdwg.mxu0
    %2517 = vmatprep.subr.bf16.mxu0 %v1857
    %2518 = vmatpush1.bf16.msra.mxu0 %v1856
    %2519 = vmatprep.subr.bf16.mxu0 %v1861
    %2520 = vmatpush1.bf16.msra.mxu0 %v1860
    %2521 = vmatprep.subr.bf16.mxu0 %v1865
    %2522 = vmatpush1.bf16.msra.mxu0 %v1864
    %2523 = vmatprep.subr.bf16.mxu0 %v1869
    %2524 = vmatpush1.bf16.msra.mxu0 %v1868
    %2525 = vmatprep.subr.bf16.mxu0 %v1873
    %2526 = vmatpush1.bf16.msra.mxu0 %v1872
    %2527 = vmatprep.subr.bf16.mxu0 %v1877
    %2528 = vmatpush1.bf16.msra.mxu0 %v1876
    %2529 = vmatprep.subr.bf16.mxu0 %v1881
    %2530 = vmatpush1.bf16.msra.mxu0 %v1880
    %2531 = vmatprep.subr.bf16.mxu0 %v1885
    %2532 = vmatpush1.bf16.msra.mxu0 %v1884
    %2533 = vmatprep.subr.bf16.mxu0 %v1889
    %2534 = vmatpush1.bf16.msra.mxu0 %v1888
    %2535 = vmatprep.subr.bf16.mxu0 %v1893
    %2536 = vmatpush1.bf16.msra.mxu0 %v1892
    %2537 = vmatprep.subr.bf16.mxu0 %v1897
    %2538 = vmatpush1.bf16.msra.mxu0 %v1896
    %2539 = vmatprep.subr.bf16.mxu0 %v1901
    %2540 = vmatpush1.bf16.msra.mxu0 %v1900
    %2541 = vmatprep.subr.bf16.mxu0 %v1905
    %2542 = vmatpush1.bf16.msra.mxu0 %v1904
    %2543 = vmatprep.subr.bf16.mxu0 %v1909
    %2544 = vmatpush1.bf16.msra.mxu0 %v1908
    %2545 = vmatprep.subr.bf16.mxu0 %v1913
    %2546 = vmatpush1.bf16.msra.mxu0 %v1912
    %2547 = vmatprep.subr.bf16.mxu0 %v1917
    %2548 = vmatpush1.bf16.msra.mxu0 %v1916
    %2549 = vmatprep.mubr.bf16.mxu0 %v739
    %2550 = vmatmul.mubr.bf16.gmra.mrb[0].mxu0 %v738
    %v2551 = vpop.f32.mrb[0].mxu0
    %v2552 = vadd.f32 %v2509, %v2551
    %v2553 = vpop.f32.mrb[0].mxu0
    %v2554 = vadd.f32 %v2511, %v2553
    %v2555 = vpop.f32.mrb[0].mxu0
    %v2556 = vadd.f32 %v2513, %v2555
    %v2557 = vpop.f32.mrb[0].mxu0
    %v2558 = vadd.f32 %v2515, %v2557
    %2559 = vdwg.mxu0
    %2560 = vmatprep.subr.bf16.mxu0 %v1921
    %2561 = vmatpush1.bf16.msra.mxu0 %v1920
    %2562 = vmatprep.subr.bf16.mxu0 %v1925
    %2563 = vmatpush1.bf16.msra.mxu0 %v1924
    %2564 = vmatprep.subr.bf16.mxu0 %v1929
    %2565 = vmatpush1.bf16.msra.mxu0 %v1928
    %2566 = vmatprep.subr.bf16.mxu0 %v1933
    %2567 = vmatpush1.bf16.msra.mxu0 %v1932
    %2568 = vmatprep.subr.bf16.mxu0 %v1937
    %2569 = vmatpush1.bf16.msra.mxu0 %v1936
    %2570 = vmatprep.subr.bf16.mxu0 %v1941
    %2571 = vmatpush1.bf16.msra.mxu0 %v1940
    %2572 = vmatprep.subr.bf16.mxu0 %v1945
    %2573 = vmatpush1.bf16.msra.mxu0 %v1944
    %2574 = vmatprep.subr.bf16.mxu0 %v1949
    %2575 = vmatpush1.bf16.msra.mxu0 %v1948
    %2576 = vmatprep.subr.bf16.mxu0 %v1953
    %2577 = vmatpush1.bf16.msra.mxu0 %v1952
    %2578 = vmatprep.subr.bf16.mxu0 %v1957
    %2579 = vmatpush1.bf16.msra.mxu0 %v1956
    %2580 = vmatprep.subr.bf16.mxu0 %v1961
    %2581 = vmatpush1.bf16.msra.mxu0 %v1960
    %2582 = vmatprep.subr.bf16.mxu0 %v1965
    %2583 = vmatpush1.bf16.msra.mxu0 %v1964
    %2584 = vmatprep.subr.bf16.mxu0 %v1969
    %2585 = vmatpush1.bf16.msra.mxu0 %v1968
    %2586 = vmatprep.subr.bf16.mxu0 %v1973
    %2587 = vmatpush1.bf16.msra.mxu0 %v1972
    %2588 = vmatprep.subr.bf16.mxu0 %v1977
    %2589 = vmatpush1.bf16.msra.mxu0 %v1976
    %2590 = vmatprep.subr.bf16.mxu0 %v1981
    %2591 = vmatpush1.bf16.msra.mxu0 %v1980
    %2592 = vmatprep.mubr.bf16.mxu0 %v741
    %2593 = vmatmul.mubr.bf16.gmra.mrb[0].mxu0 %v740
    %v2594 = vpop.f32.mrb[0].mxu0
    %v2595 = vadd.f32 %v2552, %v2594
    %v2596 = vpop.f32.mrb[0].mxu0
    %v2597 = vadd.f32 %v2554, %v2596
    %v2598 = vpop.f32.mrb[0].mxu0
    %v2599 = vadd.f32 %v2556, %v2598
    %v2600 = vpop.f32.mrb[0].mxu0
    %v2601 = vadd.f32 %v2558, %v2600
    %2602 = vdwg.mxu0
    %2603 = vmatprep.subr.bf16.mxu0 %v1985
    %2604 = vmatpush1.bf16.msra.mxu0 %v1984
    %2605 = vmatprep.subr.bf16.mxu0 %v1989
    %2606 = vmatpush1.bf16.msra.mxu0 %v1988
    %2607 = vmatprep.subr.bf16.mxu0 %v1993
    %2608 = vmatpush1.bf16.msra.mxu0 %v1992
    %2609 = vmatprep.subr.bf16.mxu0 %v1997
    %2610 = vmatpush1.bf16.msra.mxu0 %v1996
    %2611 = vmatprep.subr.bf16.mxu0 %v2001
    %2612 = vmatpush1.bf16.msra.mxu0 %v2000
    %2613 = vmatprep.subr.bf16.mxu0 %v2005
    %2614 = vmatpush1.bf16.msra.mxu0 %v2004
    %2615 = vmatprep.subr.bf16.mxu0 %v2009
    %2616 = vmatpush1.bf16.msra.mxu0 %v2008
    %2617 = vmatprep.subr.bf16.mxu0 %v2013
    %2618 = vmatpush1.bf16.msra.mxu0 %v2012
    %2619 = vmatprep.subr.bf16.mxu0 %v2017
    %2620 = vmatpush1.bf16.msra.mxu0 %v2016
    %2621 = vmatprep.subr.bf16.mxu0 %v2021
    %2622 = vmatpush1.bf16.msra.mxu0 %v2020
    %2623 = vmatprep.subr.bf16.mxu0 %v2025
    %2624 = vmatpush1.bf16.msra.mxu0 %v2024
    %2625 = vmatprep.subr.bf16.mxu0 %v2029
    %2626 = vmatpush1.bf16.msra.mxu0 %v2028
    %2627 = vmatprep.subr.bf16.mxu0 %v2033
    %2628 = vmatpush1.bf16.msra.mxu0 %v2032
    %2629 = vmatprep.subr.bf16.mxu0 %v2037
    %2630 = vmatpush1.bf16.msra.mxu0 %v2036
    %2631 = vmatprep.subr.bf16.mxu0 %v2041
    %2632 = vmatpush1.bf16.msra.mxu0 %v2040
    %2633 = vmatprep.subr.bf16.mxu0 %v2045
    %2634 = vmatpush1.bf16.msra.mxu0 %v2044
    %2635 = vmatprep.mubr.bf16.mxu0 %v743
    %2636 = vmatmul.mubr.bf16.gmra.mrb[0].mxu0 %v742
    %v2637 = vpop.f32.mrb[0].mxu0
    %v2638 = vadd.f32 %v2595, %v2637
    %v2639 = vpop.f32.mrb[0].mxu0
    %v2640 = vadd.f32 %v2597, %v2639
    %v2641 = vpop.f32.mrb[0].mxu0
    %v2642 = vadd.f32 %v2599, %v2641
    %v2643 = vpop.f32.mrb[0].mxu0
    %v2644 = vadd.f32 %v2601, %v2643
    %2645 = vdwg.mxu0
    %v2646 = vmax.f32 %v2466, 0.0
    %v2647 = vmax.f32 %v2468, 0.0
    %v2648 = vmax.f32 %v2638, 0.0
    %v2649 = vmax.f32 %v2640, 0.0
    %v2650 = vmax.f32 %v2470, 0.0
    %v2651 = vmax.f32 %v2472, 0.0
    %v2652 = vmax.f32 %v2642, 0.0
    %v2653 = vmax.f32 %v2644, 0.0
    %v2654 = vpack.c.bf16 %v2650, %v2646
    %v2655 = vpack.c.bf16 %v2651, %v2647
    %v2656 = vpack.c.bf16 %v2652, %v2648
    %v2657 = vpack.c.bf16 %v2653, %v2649
    %v2658 = vld [vmem:[#allocation10] sm:$0xff]
    %v2659 = vld [vmem:[#allocation10 + $0x8] sm:$0xff]
    %v2660 = vld [vmem:[#allocation10 + $0x10] sm:$0xff]
    %v2661 = vld [vmem:[#allocation10 + $0x18] sm:$0xff]
    %v2662 = vld [vmem:[#allocation10 + $0x20] sm:$0xff]
    %v2663 = vld [vmem:[#allocation10 + $0x28] sm:$0xff]
    %v2664 = vld [vmem:[#allocation10 + $0x30] sm:$0xff]
    %v2665 = vld [vmem:[#allocation10 + $0x38] sm:$0xff]
    %v2666 = vld [vmem:[#allocation10 + $0x40] sm:$0xff]
    %v2667 = vld [vmem:[#allocation10 + $0x48] sm:$0xff]
    %v2668 = vld [vmem:[#allocation10 + $0x50] sm:$0xff]
    %v2669 = vld [vmem:[#allocation10 + $0x58] sm:$0xff]
    %v2670 = vld [vmem:[#allocation10 + $0x60] sm:$0xff]
    %v2671 = vld [vmem:[#allocation10 + $0x68] sm:$0xff]
    %v2672 = vld [vmem:[#allocation10 + $0x70] sm:$0xff]
    %v2673 = vld [vmem:[#allocation10 + $0x78] sm:$0xff]
    %v2674 = vld [vmem:[#allocation10 + $0x80] sm:$0xff]
    %v2675 = vld [vmem:[#allocation10 + $0x88] sm:$0xff]
    %v2676 = vld [vmem:[#allocation10 + $0x90] sm:$0xff]
    %v2677 = vld [vmem:[#allocation10 + $0x98] sm:$0xff]
    %v2678 = vld [vmem:[#allocation10 + $0xa0] sm:$0xff]
    %v2679 = vld [vmem:[#allocation10 + $0xa8] sm:$0xff]
    %v2680 = vld [vmem:[#allocation10 + $0xb0] sm:$0xff]
    %v2681 = vld [vmem:[#allocation10 + $0xb8] sm:$0xff]
    %v2682 = vld [vmem:[#allocation10 + $0xc0] sm:$0xff]
    %v2683 = vld [vmem:[#allocation10 + $0xc8] sm:$0xff]
    %v2684 = vld [vmem:[#allocation10 + $0xd0] sm:$0xff]
    %v2685 = vld [vmem:[#allocation10 + $0xd8] sm:$0xff]
    %v2686 = vld [vmem:[#allocation10 + $0xe0] sm:$0xff]
    %v2687 = vld [vmem:[#allocation10 + $0xe8] sm:$0xff]
    %v2688 = vld [vmem:[#allocation10 + $0xf0] sm:$0xff]
    %v2689 = vld [vmem:[#allocation10 + $0xf8] sm:$0xff]
    %v2690 = vld [vmem:[#allocation10 + $0x100] sm:$0xff]
    %v2691 = vld [vmem:[#allocation10 + $0x108] sm:$0xff]
    %v2692 = vld [vmem:[#allocation10 + $0x110] sm:$0xff]
    %v2693 = vld [vmem:[#allocation10 + $0x118] sm:$0xff]
    %v2694 = vld [vmem:[#allocation10 + $0x120] sm:$0xff]
    %v2695 = vld [vmem:[#allocation10 + $0x128] sm:$0xff]
    %v2696 = vld [vmem:[#allocation10 + $0x130] sm:$0xff]
    %v2697 = vld [vmem:[#allocation10 + $0x138] sm:$0xff]
    %v2698 = vld [vmem:[#allocation10 + $0x140] sm:$0xff]
    %v2699 = vld [vmem:[#allocation10 + $0x148] sm:$0xff]
    %v2700 = vld [vmem:[#allocation10 + $0x150] sm:$0xff]
    %v2701 = vld [vmem:[#allocation10 + $0x158] sm:$0xff]
    %v2702 = vld [vmem:[#allocation10 + $0x160] sm:$0xff]
    %v2703 = vld [vmem:[#allocation10 + $0x168] sm:$0xff]
    %v2704 = vld [vmem:[#allocation10 + $0x170] sm:$0xff]
    %v2705 = vld [vmem:[#allocation10 + $0x178] sm:$0xff]
    %v2706 = vld [vmem:[#allocation10 + $0x180] sm:$0xff]
    %v2707 = vld [vmem:[#allocation10 + $0x188] sm:$0xff]
    %v2708 = vld [vmem:[#allocation10 + $0x190] sm:$0xff]
    %v2709 = vld [vmem:[#allocation10 + $0x198] sm:$0xff]
    %v2710 = vld [vmem:[#allocation10 + $0x1a0] sm:$0xff]
    %v2711 = vld [vmem:[#allocation10 + $0x1a8] sm:$0xff]
    %v2712 = vld [vmem:[#allocation10 + $0x1b0] sm:$0xff]
    %v2713 = vld [vmem:[#allocation10 + $0x1b8] sm:$0xff]
    %v2714 = vld [vmem:[#allocation10 + $0x1c0] sm:$0xff]
    %v2715 = vld [vmem:[#allocation10 + $0x1c8] sm:$0xff]
    %v2716 = vld [vmem:[#allocation10 + $0x1d0] sm:$0xff]
    %v2717 = vld [vmem:[#allocation10 + $0x1d8] sm:$0xff]
    %v2718 = vld [vmem:[#allocation10 + $0x1e0] sm:$0xff]
    %v2719 = vld [vmem:[#allocation10 + $0x1e8] sm:$0xff]
    %v2720 = vld [vmem:[#allocation10 + $0x1f0] sm:$0xff]
    %v2721 = vld [vmem:[#allocation10 + $0x1f8] sm:$0xff]
    %v2722 = vld [vmem:[%s6] sm:$0x3]
    %v2724 = vlaneseq
    %v2725 = vshrl.u32 %v2724, 7
    %v2726 = vsub.s32 0, %v2725
    %v2727 = vrot.slane %v2722, %v2726
    %v2728 = vlaneseq
    %v2729 = vshrl.u32 %v2728, 7
    %v2730 = vsub.s32 1, %v2729
    %v2731 = vrot.slane %v2722, %v2730
    %v2798 = vunpack.c.l.b16 %v2658
    %v2799 = vunpack.c.h.b16 %v2658
    %v2800 = vunpack.c.l.b16 %v2659
    %v2801 = vunpack.c.h.b16 %v2659
    %v2802 = vunpack.c.l.b16 %v2660
    %v2803 = vunpack.c.h.b16 %v2660
    %v2804 = vunpack.c.l.b16 %v2661
    %v2805 = vunpack.c.h.b16 %v2661
    %v2806 = vunpack.c.l.b16 %v2662
    %v2807 = vunpack.c.h.b16 %v2662
    %v2808 = vunpack.c.l.b16 %v2663
    %v2809 = vunpack.c.h.b16 %v2663
    %v2810 = vunpack.c.l.b16 %v2664
    %v2811 = vunpack.c.h.b16 %v2664
    %v2812 = vunpack.c.l.b16 %v2665
    %v2813 = vunpack.c.h.b16 %v2665
    %v2814 = vunpack.c.l.b16 %v2666
    %v2815 = vunpack.c.h.b16 %v2666
    %v2816 = vunpack.c.l.b16 %v2667
    %v2817 = vunpack.c.h.b16 %v2667
    %v2818 = vunpack.c.l.b16 %v2668
    %v2819 = vunpack.c.h.b16 %v2668
    %v2820 = vunpack.c.l.b16 %v2669
    %v2821 = vunpack.c.h.b16 %v2669
    %v2822 = vunpack.c.l.b16 %v2670
    %v2823 = vunpack.c.h.b16 %v2670
    %v2824 = vunpack.c.l.b16 %v2671
    %v2825 = vunpack.c.h.b16 %v2671
    %v2826 = vunpack.c.l.b16 %v2672
    %v2827 = vunpack.c.h.b16 %v2672
    %v2828 = vunpack.c.l.b16 %v2673
    %v2829 = vunpack.c.h.b16 %v2673
    %v2830 = vunpack.c.l.b16 %v2674
    %v2831 = vunpack.c.h.b16 %v2674
    %v2832 = vunpack.c.l.b16 %v2675
    %v2833 = vunpack.c.h.b16 %v2675
    %v2834 = vunpack.c.l.b16 %v2676
    %v2835 = vunpack.c.h.b16 %v2676
    %v2836 = vunpack.c.l.b16 %v2677
    %v2837 = vunpack.c.h.b16 %v2677
    %v2838 = vunpack.c.l.b16 %v2678
    %v2839 = vunpack.c.h.b16 %v2678
    %v2840 = vunpack.c.l.b16 %v2679
    %v2841 = vunpack.c.h.b16 %v2679
    %v2842 = vunpack.c.l.b16 %v2680
    %v2843 = vunpack.c.h.b16 %v2680
    %v2844 = vunpack.c.l.b16 %v2681
    %v2845 = vunpack.c.h.b16 %v2681
    %v2846 = vunpack.c.l.b16 %v2682
    %v2847 = vunpack.c.h.b16 %v2682
    %v2848 = vunpack.c.l.b16 %v2683
    %v2849 = vunpack.c.h.b16 %v2683
    %v2850 = vunpack.c.l.b16 %v2684
    %v2851 = vunpack.c.h.b16 %v2684
    %v2852 = vunpack.c.l.b16 %v2685
    %v2853 = vunpack.c.h.b16 %v2685
    %v2854 = vunpack.c.l.b16 %v2686
    %v2855 = vunpack.c.h.b16 %v2686
    %v2856 = vunpack.c.l.b16 %v2687
    %v2857 = vunpack.c.h.b16 %v2687
    %v2858 = vunpack.c.l.b16 %v2688
    %v2859 = vunpack.c.h.b16 %v2688
    %v2860 = vunpack.c.l.b16 %v2689
    %v2861 = vunpack.c.h.b16 %v2689
    %v2862 = vunpack.c.l.b16 %v2690
    %v2863 = vunpack.c.h.b16 %v2690
    %v2864 = vunpack.c.l.b16 %v2691
    %v2865 = vunpack.c.h.b16 %v2691
    %v2866 = vunpack.c.l.b16 %v2692
    %v2867 = vunpack.c.h.b16 %v2692
    %v2868 = vunpack.c.l.b16 %v2693
    %v2869 = vunpack.c.h.b16 %v2693
    %v2870 = vunpack.c.l.b16 %v2694
    %v2871 = vunpack.c.h.b16 %v2694
    %v2872 = vunpack.c.l.b16 %v2695
    %v2873 = vunpack.c.h.b16 %v2695
    %v2874 = vunpack.c.l.b16 %v2696
    %v2875 = vunpack.c.h.b16 %v2696
    %v2876 = vunpack.c.l.b16 %v2697
    %v2877 = vunpack.c.h.b16 %v2697
    %v2878 = vunpack.c.l.b16 %v2698
    %v2879 = vunpack.c.h.b16 %v2698
    %v2880 = vunpack.c.l.b16 %v2699
    %v2881 = vunpack.c.h.b16 %v2699
    %v2882 = vunpack.c.l.b16 %v2700
    %v2883 = vunpack.c.h.b16 %v2700
    %v2884 = vunpack.c.l.b16 %v2701
    %v2885 = vunpack.c.h.b16 %v2701
    %v2886 = vunpack.c.l.b16 %v2702
    %v2887 = vunpack.c.h.b16 %v2702
    %v2888 = vunpack.c.l.b16 %v2703
    %v2889 = vunpack.c.h.b16 %v2703
    %v2890 = vunpack.c.l.b16 %v2704
    %v2891 = vunpack.c.h.b16 %v2704
    %v2892 = vunpack.c.l.b16 %v2705
    %v2893 = vunpack.c.h.b16 %v2705
    %v2894 = vunpack.c.l.b16 %v2706
    %v2895 = vunpack.c.h.b16 %v2706
    %v2896 = vunpack.c.l.b16 %v2707
    %v2897 = vunpack.c.h.b16 %v2707
    %v2898 = vunpack.c.l.b16 %v2708
    %v2899 = vunpack.c.h.b16 %v2708
    %v2900 = vunpack.c.l.b16 %v2709
    %v2901 = vunpack.c.h.b16 %v2709
    %v2902 = vunpack.c.l.b16 %v2710
    %v2903 = vunpack.c.h.b16 %v2710
    %v2904 = vunpack.c.l.b16 %v2711
    %v2905 = vunpack.c.h.b16 %v2711
    %v2906 = vunpack.c.l.b16 %v2712
    %v2907 = vunpack.c.h.b16 %v2712
    %v2908 = vunpack.c.l.b16 %v2713
    %v2909 = vunpack.c.h.b16 %v2713
    %v2910 = vunpack.c.l.b16 %v2714
    %v2911 = vunpack.c.h.b16 %v2714
    %v2912 = vunpack.c.l.b16 %v2715
    %v2913 = vunpack.c.h.b16 %v2715
    %v2914 = vunpack.c.l.b16 %v2716
    %v2915 = vunpack.c.h.b16 %v2716
    %v2916 = vunpack.c.l.b16 %v2717
    %v2917 = vunpack.c.h.b16 %v2717
    %v2918 = vunpack.c.l.b16 %v2718
    %v2919 = vunpack.c.h.b16 %v2718
    %v2920 = vunpack.c.l.b16 %v2719
    %v2921 = vunpack.c.h.b16 %v2719
    %v2922 = vunpack.c.l.b16 %v2720
    %v2923 = vunpack.c.h.b16 %v2720
    %v2924 = vunpack.c.l.b16 %v2721
    %v2925 = vunpack.c.h.b16 %v2721
    %v2926 = vpack.c.b16 %v2800, %v2798
    %v2927 = vpack.c.b16 %v2801, %v2799
    %v2928 = vpack.c.b16 %v2804, %v2802
    %v2929 = vpack.c.b16 %v2805, %v2803
    %v2930 = vpack.c.b16 %v2808, %v2806
    %v2931 = vpack.c.b16 %v2809, %v2807
    %v2932 = vpack.c.b16 %v2812, %v2810
    %v2933 = vpack.c.b16 %v2813, %v2811
    %v2934 = vpack.c.b16 %v2816, %v2814
    %v2935 = vpack.c.b16 %v2817, %v2815
    %v2936 = vpack.c.b16 %v2820, %v2818
    %v2937 = vpack.c.b16 %v2821, %v2819
    %v2938 = vpack.c.b16 %v2824, %v2822
    %v2939 = vpack.c.b16 %v2825, %v2823
    %v2940 = vpack.c.b16 %v2828, %v2826
    %v2941 = vpack.c.b16 %v2829, %v2827
    %v2942 = vpack.c.b16 %v2832, %v2830
    %v2943 = vpack.c.b16 %v2833, %v2831
    %v2944 = vpack.c.b16 %v2836, %v2834
    %v2945 = vpack.c.b16 %v2837, %v2835
    %v2946 = vpack.c.b16 %v2840, %v2838
    %v2947 = vpack.c.b16 %v2841, %v2839
    %v2948 = vpack.c.b16 %v2844, %v2842
    %v2949 = vpack.c.b16 %v2845, %v2843
    %v2950 = vpack.c.b16 %v2848, %v2846
    %v2951 = vpack.c.b16 %v2849, %v2847
    %v2952 = vpack.c.b16 %v2852, %v2850
    %v2953 = vpack.c.b16 %v2853, %v2851
    %v2954 = vpack.c.b16 %v2856, %v2854
    %v2955 = vpack.c.b16 %v2857, %v2855
    %v2956 = vpack.c.b16 %v2860, %v2858
    %v2957 = vpack.c.b16 %v2861, %v2859
    %v2958 = vpack.c.b16 %v2864, %v2862
    %v2959 = vpack.c.b16 %v2865, %v2863
    %v2960 = vpack.c.b16 %v2868, %v2866
    %v2961 = vpack.c.b16 %v2869, %v2867
    %v2962 = vpack.c.b16 %v2872, %v2870
    %v2963 = vpack.c.b16 %v2873, %v2871
    %v2964 = vpack.c.b16 %v2876, %v2874
    %v2965 = vpack.c.b16 %v2877, %v2875
    %v2966 = vpack.c.b16 %v2880, %v2878
    %v2967 = vpack.c.b16 %v2881, %v2879
    %v2968 = vpack.c.b16 %v2884, %v2882
    %v2969 = vpack.c.b16 %v2885, %v2883
    %v2970 = vpack.c.b16 %v2888, %v2886
    %v2971 = vpack.c.b16 %v2889, %v2887
    %v2972 = vpack.c.b16 %v2892, %v2890
    %v2973 = vpack.c.b16 %v2893, %v2891
    %v2974 = vpack.c.b16 %v2896, %v2894
    %v2975 = vpack.c.b16 %v2897, %v2895
    %v2976 = vpack.c.b16 %v2900, %v2898
    %v2977 = vpack.c.b16 %v2901, %v2899
    %v2978 = vpack.c.b16 %v2904, %v2902
    %v2979 = vpack.c.b16 %v2905, %v2903
    %v2980 = vpack.c.b16 %v2908, %v2906
    %v2981 = vpack.c.b16 %v2909, %v2907
    %v2982 = vpack.c.b16 %v2912, %v2910
    %v2983 = vpack.c.b16 %v2913, %v2911
    %v2984 = vpack.c.b16 %v2916, %v2914
    %v2985 = vpack.c.b16 %v2917, %v2915
    %v2986 = vpack.c.b16 %v2920, %v2918
    %v2987 = vpack.c.b16 %v2921, %v2919
    %v2988 = vpack.c.b16 %v2924, %v2922
    %v2989 = vpack.c.b16 %v2925, %v2923
    %3054 = vmatprep.subr.bf16.mxu0 %v2927
    %3055 = vmatpush1.bf16.msra.mxu0 %v2926
    %3056 = vmatprep.subr.bf16.mxu0 %v2929
    %3057 = vmatpush1.bf16.msra.mxu0 %v2928
    %3058 = vmatprep.subr.bf16.mxu0 %v2931
    %3059 = vmatpush1.bf16.msra.mxu0 %v2930
    %3060 = vmatprep.subr.bf16.mxu0 %v2933
    %3061 = vmatpush1.bf16.msra.mxu0 %v2932
    %3062 = vmatprep.subr.bf16.mxu0 %v2935
    %3063 = vmatpush1.bf16.msra.mxu0 %v2934
    %3064 = vmatprep.subr.bf16.mxu0 %v2937
    %3065 = vmatpush1.bf16.msra.mxu0 %v2936
    %3066 = vmatprep.subr.bf16.mxu0 %v2939
    %3067 = vmatpush1.bf16.msra.mxu0 %v2938
    %3068 = vmatprep.subr.bf16.mxu0 %v2941
    %3069 = vmatpush1.bf16.msra.mxu0 %v2940
    %3070 = vmatprep.subr.bf16.mxu0 %v2943
    %3071 = vmatpush1.bf16.msra.mxu0 %v2942
    %3072 = vmatprep.subr.bf16.mxu0 %v2945
    %3073 = vmatpush1.bf16.msra.mxu0 %v2944
    %3074 = vmatprep.subr.bf16.mxu0 %v2947
    %3075 = vmatpush1.bf16.msra.mxu0 %v2946
    %3076 = vmatprep.subr.bf16.mxu0 %v2949
    %3077 = vmatpush1.bf16.msra.mxu0 %v2948
    %3078 = vmatprep.subr.bf16.mxu0 %v2951
    %3079 = vmatpush1.bf16.msra.mxu0 %v2950
    %3080 = vmatprep.subr.bf16.mxu0 %v2953
    %3081 = vmatpush1.bf16.msra.mxu0 %v2952
    %3082 = vmatprep.subr.bf16.mxu0 %v2955
    %3083 = vmatpush1.bf16.msra.mxu0 %v2954
    %3084 = vmatprep.subr.bf16.mxu0 %v2957
    %3085 = vmatpush1.bf16.msra.mxu0 %v2956
    %3086 = vmatprep.mubr.bf16.mxu0 %v2655
    %3087 = vmatmul.mubr.bf16.gmra.mrb[0].mxu0 %v2654
    %v3088 = vpop.f32.mrb[0].mxu0
    %v3089 = vadd.f32 %v2727, %v3088
    %v3090 = vpop.f32.mrb[0].mxu0
    %v3091 = vadd.f32 %v2731, %v3090
    %v3092 = vpop.f32.mrb[0].mxu0
    %v3093 = vadd.f32 %v2727, %v3092
    %v3094 = vpop.f32.mrb[0].mxu0
    %v3095 = vadd.f32 %v2731, %v3094
    %3096 = vdwg.mxu0
    %3097 = vmatprep.subr.bf16.mxu0 %v2959
    %3098 = vmatpush1.bf16.msra.mxu0 %v2958
    %3099 = vmatprep.subr.bf16.mxu0 %v2961
    %3100 = vmatpush1.bf16.msra.mxu0 %v2960
    %3101 = vmatprep.subr.bf16.mxu0 %v2963
    %3102 = vmatpush1.bf16.msra.mxu0 %v2962
    %3103 = vmatprep.subr.bf16.mxu0 %v2965
    %3104 = vmatpush1.bf16.msra.mxu0 %v2964
    %3105 = vmatprep.subr.bf16.mxu0 %v2967
    %3106 = vmatpush1.bf16.msra.mxu0 %v2966
    %3107 = vmatprep.subr.bf16.mxu0 %v2969
    %3108 = vmatpush1.bf16.msra.mxu0 %v2968
    %3109 = vmatprep.subr.bf16.mxu0 %v2971
    %3110 = vmatpush1.bf16.msra.mxu0 %v2970
    %3111 = vmatprep.subr.bf16.mxu0 %v2973
    %3112 = vmatpush1.bf16.msra.mxu0 %v2972
    %3113 = vmatprep.subr.bf16.mxu0 %v2975
    %3114 = vmatpush1.bf16.msra.mxu0 %v2974
    %3115 = vmatprep.subr.bf16.mxu0 %v2977
    %3116 = vmatpush1.bf16.msra.mxu0 %v2976
    %3117 = vmatprep.subr.bf16.mxu0 %v2979
    %3118 = vmatpush1.bf16.msra.mxu0 %v2978
    %3119 = vmatprep.subr.bf16.mxu0 %v2981
    %3120 = vmatpush1.bf16.msra.mxu0 %v2980
    %3121 = vmatprep.subr.bf16.mxu0 %v2983
    %3122 = vmatpush1.bf16.msra.mxu0 %v2982
    %3123 = vmatprep.subr.bf16.mxu0 %v2985
    %3124 = vmatpush1.bf16.msra.mxu0 %v2984
    %3125 = vmatprep.subr.bf16.mxu0 %v2987
    %3126 = vmatpush1.bf16.msra.mxu0 %v2986
    %3127 = vmatprep.subr.bf16.mxu0 %v2989
    %3128 = vmatpush1.bf16.msra.mxu0 %v2988
    %3129 = vmatprep.mubr.bf16.mxu0 %v2657
    %3130 = vmatmul.mubr.bf16.gmra.mrb[0].mxu0 %v2656
    %v3131 = vpop.f32.mrb[0].mxu0
    %v3132 = vadd.f32 %v3089, %v3131
    %v3133 = vpop.f32.mrb[0].mxu0
    %v3134 = vadd.f32 %v3091, %v3133
    %v3135 = vpop.f32.mrb[0].mxu0
    %v3136 = vadd.f32 %v3093, %v3135
    %v3137 = vpop.f32.mrb[0].mxu0
    %v3138 = vadd.f32 %v3095, %v3137
    %3139 = vdwg.mxu0
    %v3140 = vmax.f32 %v3132, 0.0
    %v3141 = vmax.f32 %v3134, 0.0
    %v3142 = vmax.f32 %v3136, 0.0
    %v3143 = vmax.f32 %v3138, 0.0
    %v3144 = vpack.c.bf16 %v3142, %v3140
    %v3145 = vpack.c.bf16 %v3143, %v3141
    %v3146 = vld [vmem:[#allocation11] sm:$0xf]
    %v3147 = vld [vmem:[#allocation11 + $0x4] sm:$0xf]
    %v3148 = vld [vmem:[#allocation11 + $0x8] sm:$0xf]
    %v3149 = vld [vmem:[#allocation11 + $0xc] sm:$0xf]
    %v3150 = vld [vmem:[#allocation11 + $0x10] sm:$0xf]
    %v3151 = vld [vmem:[#allocation11 + $0x14] sm:$0xf]
    %v3152 = vld [vmem:[#allocation11 + $0x18] sm:$0xf]
    %v3153 = vld [vmem:[#allocation11 + $0x1c] sm:$0xf]
    %v3154 = vld [vmem:[#allocation11 + $0x20] sm:$0xf]
    %v3155 = vld [vmem:[#allocation11 + $0x24] sm:$0xf]
    %v3156 = vld [vmem:[#allocation11 + $0x28] sm:$0xf]
    %v3157 = vld [vmem:[#allocation11 + $0x2c] sm:$0xf]
    %v3158 = vld [vmem:[#allocation11 + $0x30] sm:$0xf]
    %v3159 = vld [vmem:[#allocation11 + $0x34] sm:$0xf]
    %v3160 = vld [vmem:[#allocation11 + $0x38] sm:$0xf]
    %v3161 = vld [vmem:[#allocation11 + $0x3c] sm:$0xf]
    %v3162 = vld [vmem:[#allocation11 + $0x40] sm:$0xf]
    %v3163 = vld [vmem:[#allocation11 + $0x44] sm:$0xf]
    %v3164 = vld [vmem:[#allocation11 + $0x48] sm:$0xf]
    %v3165 = vld [vmem:[#allocation11 + $0x4c] sm:$0xf]
    %v3166 = vld [vmem:[#allocation11 + $0x50] sm:$0xf]
    %v3167 = vld [vmem:[#allocation11 + $0x54] sm:$0xf]
    %v3168 = vld [vmem:[#allocation11 + $0x58] sm:$0xf]
    %v3169 = vld [vmem:[#allocation11 + $0x5c] sm:$0xf]
    %v3170 = vld [vmem:[#allocation11 + $0x60] sm:$0xf]
    %v3171 = vld [vmem:[#allocation11 + $0x64] sm:$0xf]
    %v3172 = vld [vmem:[#allocation11 + $0x68] sm:$0xf]
    %v3173 = vld [vmem:[#allocation11 + $0x6c] sm:$0xf]
    %v3174 = vld [vmem:[#allocation11 + $0x70] sm:$0xf]
    %v3175 = vld [vmem:[#allocation11 + $0x74] sm:$0xf]
    %v3176 = vld [vmem:[#allocation11 + $0x78] sm:$0xf]
    %v3177 = vld [vmem:[#allocation11 + $0x7c] sm:$0xf]
    %v3178 = vld [vmem:[%s8] sm:$0x1]
    %v3180 = vlaneseq
    %v3181 = vshrl.u32 %v3180, 7
    %v3182 = vsub.s32 0, %v3181
    %v3183 = vrot.slane %v3178, %v3182
    %v3217 = vunpack.c.l.b16 %v3146
    %v3218 = vunpack.c.l.b16 %v3147
    %v3219 = vunpack.c.l.b16 %v3148
    %v3220 = vunpack.c.l.b16 %v3149
    %v3221 = vunpack.c.l.b16 %v3150
    %v3222 = vunpack.c.l.b16 %v3151
    %v3223 = vunpack.c.l.b16 %v3152
    %v3224 = vunpack.c.l.b16 %v3153
    %v3225 = vunpack.c.l.b16 %v3154
    %v3226 = vunpack.c.l.b16 %v3155
    %v3227 = vunpack.c.l.b16 %v3156
    %v3228 = vunpack.c.l.b16 %v3157
    %v3229 = vunpack.c.l.b16 %v3158
    %v3230 = vunpack.c.l.b16 %v3159
    %v3231 = vunpack.c.l.b16 %v3160
    %v3232 = vunpack.c.l.b16 %v3161
    %v3233 = vunpack.c.l.b16 %v3162
    %v3234 = vunpack.c.l.b16 %v3163
    %v3235 = vunpack.c.l.b16 %v3164
    %v3236 = vunpack.c.l.b16 %v3165
    %v3237 = vunpack.c.l.b16 %v3166
    %v3238 = vunpack.c.l.b16 %v3167
    %v3239 = vunpack.c.l.b16 %v3168
    %v3240 = vunpack.c.l.b16 %v3169
    %v3241 = vunpack.c.l.b16 %v3170
    %v3242 = vunpack.c.l.b16 %v3171
    %v3243 = vunpack.c.l.b16 %v3172
    %v3244 = vunpack.c.l.b16 %v3173
    %v3245 = vunpack.c.l.b16 %v3174
    %v3246 = vunpack.c.l.b16 %v3175
    %v3247 = vunpack.c.l.b16 %v3176
    %v3248 = vunpack.c.l.b16 %v3177
    %v3249 = vpack.c.b16 %v3218, %v3217
    %v3250 = vpack.c.b16 %v3220, %v3219
    %v3251 = vpack.c.b16 %v3222, %v3221
    %v3252 = vpack.c.b16 %v3224, %v3223
    %v3253 = vpack.c.b16 %v3226, %v3225
    %v3254 = vpack.c.b16 %v3228, %v3227
    %v3255 = vpack.c.b16 %v3230, %v3229
    %v3256 = vpack.c.b16 %v3232, %v3231
    %v3257 = vpack.c.b16 %v3234, %v3233
    %v3258 = vpack.c.b16 %v3236, %v3235
    %v3259 = vpack.c.b16 %v3238, %v3237
    %v3260 = vpack.c.b16 %v3240, %v3239
    %v3261 = vpack.c.b16 %v3242, %v3241
    %v3262 = vpack.c.b16 %v3244, %v3243
    %v3263 = vpack.c.b16 %v3246, %v3245
    %v3264 = vpack.c.b16 %v3248, %v3247
    %3281 = vmatprep.subr.bf16.mxu0 0
    %3282 = vmatpush1.bf16.msra.mxu0 %v3249
    %3283 = vmatprep.subr.bf16.mxu0 0
    %3284 = vmatpush1.bf16.msra.mxu0 %v3250
    %3285 = vmatprep.subr.bf16.mxu0 0
    %3286 = vmatpush1.bf16.msra.mxu0 %v3251
    %3287 = vmatprep.subr.bf16.mxu0 0
    %3288 = vmatpush1.bf16.msra.mxu0 %v3252
    %3289 = vmatprep.subr.bf16.mxu0 0
    %3290 = vmatpush1.bf16.msra.mxu0 %v3253
    %3291 = vmatprep.subr.bf16.mxu0 0
    %3292 = vmatpush1.bf16.msra.mxu0 %v3254
    %3293 = vmatprep.subr.bf16.mxu0 0
    %3294 = vmatpush1.bf16.msra.mxu0 %v3255
    %3295 = vmatprep.subr.bf16.mxu0 0
    %3296 = vmatpush1.bf16.msra.mxu0 %v3256
    %3297 = vmatprep.subr.bf16.mxu0 0
    %3298 = vmatpush1.bf16.msra.mxu0 %v3257
    %3299 = vmatprep.subr.bf16.mxu0 0
    %3300 = vmatpush1.bf16.msra.mxu0 %v3258
    %3301 = vmatprep.subr.bf16.mxu0 0
    %3302 = vmatpush1.bf16.msra.mxu0 %v3259
    %3303 = vmatprep.subr.bf16.mxu0 0
    %3304 = vmatpush1.bf16.msra.mxu0 %v3260
    %3305 = vmatprep.subr.bf16.mxu0 0
    %3306 = vmatpush1.bf16.msra.mxu0 %v3261
    %3307 = vmatprep.subr.bf16.mxu0 0
    %3308 = vmatpush1.bf16.msra.mxu0 %v3262
    %3309 = vmatprep.subr.bf16.mxu0 0
    %3310 = vmatpush1.bf16.msra.mxu0 %v3263
    %3311 = vmatprep.subr.bf16.mxu0 0
    %3312 = vmatpush1.bf16.msra.mxu0 %v3264
    %3313 = vmatprep.mubr.bf16.mxu0 %v3145
    %3314 = vmatmul.mubr.bf16.gmra.mrb[0].mxu0 %v3144
    %v3315 = vpop.f32.mrb[0].mxu0
    %v3316 = vadd.f32 %v3183, %v3315
    %v3317 = vpop.f32.mrb[0].mxu0
    %v3318 = vpop.f32.mrb[0].mxu0
    %v3319 = vadd.f32 %v3183, %v3318
    %v3320 = vpop.f32.mrb[0].mxu0
    %3321 = vdwg.mxu0
    %v3322 = vpack.c.bf16 %v3319, %v3316
    %v3324 = vunpack.c.l.b16 %v3322
    %v3325 = vunpack.c.h.b16 %v3322
    %v3326 = vpack.c.b16 %v3324, %v3324
    %v3327 = vpack.c.b16 %v3325, %v3325
    %3330 = vst [vmem:[#allocation13] sm:$0xf] %v3326
    %3331 = vst [vmem:[#allocation13 + $0x4] sm:$0xf] %v3327
    // Predicated region
    $region62: #{tpu_custom_call.1} parent=1 // pred_check
      _
    $region63: #{tpu_custom_call.1} parent=1 // pred_check_branch
      %3333 = sbr.rel (0) target = $region65
    $region64: #{tpu_custom_call.1} parent=1 // pred_region
      %s3335 = ssub.s32 128, 128
      %3336 = vsyncadd [#allocation4], %s3335
      %s3337 = sshll.u32 [#allocation13], 4
      %s3338 = int_to_ptr.vmem [resolvable:$true] %s3337
      %3343 = dma.vmem_to_hbm [thread:$0]  %s3338, 128, %s9, [#allocation4], 64, 64, 4
    $region65: #{tpu_custom_call.1} parent=1 // pred_fallthru
      _
    // Predicated region
    $region66: #{tpu_custom_call.1} parent=1 // pred_check
      _
    $region67: #{tpu_custom_call.1} parent=1 // pred_check_branch
      %3345 = sbr.rel (0) target = $region69
    $region68: #{tpu_custom_call.1} parent=1 // pred_region
      %3346 = dma.done [#allocation4], 128
    $region69: #{tpu_custom_call.1} parent=1 // pred_fallthru
      _
    %3347 = vsyncpa [#allocation3], 1
    %3348 = vsyncpa [#allocation6], 1
    %3349 = vsyncpa [#allocation9], 1
    %3350 = vsyncpa [#allocation12], 1
    %3351 = vsyncpa [#allocation4], 1

</llo_original>
